<compile_context>
chip_gen: v6e
topology: v6e:2x2x1
jax: 0.10.0
libtpu: 0.0.40
codegen_flags: <defaults>
</compile_context>

<pallas_src>
import functools

import jax
import jax.numpy as jnp
from jax import lax
from jax.experimental import pallas as pl
from jax.experimental.pallas import tpu as pltpu


# ----------------------------------------------------------------------------
# Fused EncoderBlock kernel (one grid step == one batch element)
# ----------------------------------------------------------------------------
def _encoder_block_kernel(xp_ref, dw_w_ref, dw_b_ref, pw_w_ref, pw_b_ref,
                          wq_ref, bq_ref, wk_ref, bk_ref, wv_ref, bv_ref,
                          wo_ref, bo_ref, o_ref, *, L, E, K, H):
    f32, bf16 = jnp.float32, jnp.bfloat16
    pad = (K - 1) // 2
    d = E // H
    scale = 1.0 / (float(d) ** 0.5)

    xp = xp_ref[0]                               # [L + 2*pad, E] padded input
    x = xp[pad:pad + L, :]                       # [L, E] residual input

    # ---- ConvBlock: depthwise taps (VPU) + pointwise matmul (MXU) + ReLU ----
    dw_w = dw_w_ref[...]                         # [K, E]
    acc = jnp.zeros((L, E), f32)
    for k in range(K):                           # static, unrolled taps
        acc = acc + xp[k:k + L, :] * dw_w[k:k + 1, :]
    dwc = acc + dw_b_ref[...]
    pw = jnp.dot(dwc.astype(bf16), pw_w_ref[...].astype(bf16),
                 preferred_element_type=f32) + pw_b_ref[...]
    out1 = jnp.maximum(x + pw, 0.0)              # [L, E] == ConvBlock(x)

    # ---- Multi-head self-attention, all heads resident in VMEM --------------
    out1_bf = out1.astype(bf16)
    attn_out = jnp.zeros((L, E), f32)
    for h in range(H):                           # static, unrolled heads
        q_h = (jnp.dot(out1_bf, wq_ref[h].astype(bf16),
                       preferred_element_type=f32) + bq_ref[h]) * scale  # [L,d]
        k_h = jnp.dot(out1_bf, wk_ref[h].astype(bf16),
                      preferred_element_type=f32) + bk_ref[h]            # [L,d]
        v_h = jnp.dot(out1_bf, wv_ref[h].astype(bf16),
                      preferred_element_type=f32) + bv_ref[h]            # [L,d]
        s = lax.dot_general(q_h.astype(bf16), k_h.astype(bf16),          # q @ kT
                            (((1,), (1,)), ((), ())),
                            preferred_element_type=f32)                  # [L,L]
        s = s - jnp.max(s, axis=-1, keepdims=True)
        e = jnp.exp(s)
        a = e * pl.reciprocal(jnp.sum(e, axis=-1, keepdims=True), approx=True)
        ctx_h = jnp.dot(a.astype(bf16), v_h.astype(bf16),
                        preferred_element_type=f32)                      # [L,d]
        attn_out = attn_out + jnp.dot(ctx_h.astype(bf16),
                                      wo_ref[h].astype(bf16),
                                      preferred_element_type=f32)        # [L,E]
    attn_out = attn_out + bo_ref[...]

    # torch aliasing: `out2 += attn` mutates out1 in place, so
    # out3 = out1 + out2.T == 2 * (ConvBlock(x) + attn_out)
    o_ref[0] = (2.0 * (out1 + attn_out)).astype(o_ref.dtype)


# ----------------------------------------------------------------------------
# Wrapper: one pallas_call for the whole EncoderBlock, grid over batch
# ----------------------------------------------------------------------------
def encoder_block(x, p, num_heads):
    B, L, E = x.shape
    H = num_heads
    d = E // H
    K = p["dw_w"].shape[0]
    pad = (K - 1) // 2
    Lp = L + 2 * pad

    # Pad once on the XLA side; the kernel slices the centre for the residual.
    xp = jnp.pad(x, ((0, 0), (pad, pad), (0, 0)))

    # Re-layout torch-convention weights (cheap, one-off XLA ops). Per-head
    # slices let the kernel index the leading dim instead of lane-slicing.
    pw_wT = p["pw_w"].T                                     # [E_in, E_out]
    in_w, in_b = p["in_w"], p["in_b"]
    wq = in_w[:E].reshape(H, d, E).transpose(0, 2, 1)       # [H, E, d]
    wk = in_w[E:2 * E].reshape(H, d, E).transpose(0, 2, 1)  # [H, E, d]
    wv = in_w[2 * E:].reshape(H, d, E).transpose(0, 2, 1)   # [H, E, d]
    bq = in_b[:E].reshape(H, 1, d)
    bk = in_b[E:2 * E].reshape(H, 1, d)
    bv = in_b[2 * E:].reshape(H, 1, d)
    wo = p["out_w"].T.reshape(H, d, E)                      # [H, d, E]
    bo = p["out_b"].reshape(1, E)

    def rep(shape):      # replicated (weight) block: full array, fixed index
        return pl.BlockSpec(shape, lambda *_: (0,) * len(shape))

    kernel = functools.partial(_encoder_block_kernel, L=L, E=E, K=K, H=H)
    return pl.pallas_call(
        kernel,
        grid=(B,),
        in_specs=[
            pl.BlockSpec((1, Lp, E), lambda b: (b, 0, 0)),   # padded activations
            rep((K, E)), rep((1, E)),                        # depthwise w / b
            rep((E, E)), rep((1, E)),                        # pointwise w^T / b
            rep((H, E, d)), rep((H, 1, d)),                  # Wq / bq (per head)
            rep((H, E, d)), rep((H, 1, d)),                  # Wk / bk
            rep((H, E, d)), rep((H, 1, d)),                  # Wv / bv
            rep((H, d, E)), rep((1, E)),                     # Wout / bout
        ],
        out_specs=pl.BlockSpec((1, L, E), lambda b: (b, 0, 0)),
        out_shape=jax.ShapeDtypeStruct((B, L, E), jnp.float32),
        compiler_params=pltpu.CompilerParams(
            dimension_semantics=("parallel",)),              # v7x: 2 TCs
    )(xp, p["dw_w"], p["dw_b"].reshape(1, E), pw_wT, p["pw_b"].reshape(1, E),
      wq, bq, wk, bk, wv, bv, wo, bo)


# ----------------------------------------------------------------------------
# Plain-JAX (f32) reference of the PyTorch forward, for verification
# ----------------------------------------------------------------------------
def encoder_block_ref(x, p, num_heads):
    B, L, E = x.shape
    d = E // num_heads
    K = p["dw_w"].shape[0]
    pad = (K - 1) // 2
    xp = jnp.pad(x, ((0, 0), (pad, pad), (0, 0)))
    dw = jnp.zeros_like(x)
    for k in range(K):
        dw = dw + xp[:, k:k + L, :] * p["dw_w"][k][None, None, :]
    dw = dw + p["dw_b"]
    pw = jnp.einsum("ble,oe->blo", dw, p["pw_w"]) + p["pw_b"]
    out1 = jax.nn.relu(x + pw)

    qkv = jnp.einsum("ble,fe->blf", out1, p["in_w"]) + p["in_b"]
    q, k_, v = jnp.split(qkv, 3, axis=-1)
    q = q * (d ** -0.5)

    def heads(t):
        return t.reshape(B, L, num_heads, d).transpose(0, 2, 1, 3)

    qh, kh, vh = heads(q), heads(k_), heads(v)
    s = jnp.einsum("bhqd,bhkd->bhqk", qh, kh)
    a = jax.nn.softmax(s, axis=-1)
    ctx = jnp.einsum("bhqk,bhkd->bhqd", a, vh)
    ctx = ctx.transpose(0, 2, 1, 3).reshape(B, L, E)
    attn_out = jnp.einsum("ble,fe->blf", ctx, p["out_w"]) + p["out_b"]
    return 2.0 * (out1 + attn_out)


# ----------------------------------------------------------------------------
# Deterministic parameter init (shapes follow EncoderBlock.__init__)
# ----------------------------------------------------------------------------
def init_params(key, E, K=7):
    keys = iter(jax.random.split(key, 8))

    def u(shape, scale=0.1):
        return jax.random.uniform(next(keys), shape, jnp.float32, -scale, scale)

    return {
        # ConvBlock.depthwise: Conv1d(E, E, k=7, pad=3, groups=E)
        "dw_w": u((K, E)),       # dw_w[k, c] == torch depthwise.weight[c, 0, k]
        "dw_b": u((E,)),
        # ConvBlock.pointwise: Conv1d(E, E, k=1); weight[:, :, 0] is [out, in]
        "pw_w": u((E, E)),
        "pw_b": u((E,)),
        # nn.MultiheadAttention(E, 6): in_proj (3E, E), out_proj (E, E)
        "in_w": u((3 * E, E)),
        "in_b": u((3 * E,)),
        "out_w": u((E, E)),
        "out_b": u((E,)),
    }


# ----------------------------------------------------------------------------
if __name__ == "__main__":
    key = jax.random.PRNGKey(0)
    num_heads = 6
    B, L, E = 2, 16, 48          # emb_dim must be divisible by num_heads=6
    kx, kp = jax.random.split(key)
    x = 0.5 * jax.random.normal(kx, (B, L, E), jnp.float32)
    params = init_params(kp, E)

    out = encoder_block(x, params, num_heads)
    jax.block_until_ready(out)

    ref = encoder_block_ref(x, params, num_heads)
    assert out.shape == (B, L, E)
    assert bool(jnp.isfinite(out).all())
    max_err = float(jnp.max(jnp.abs(out - ref)))
    assert bool(jnp.allclose(out, ref, rtol=5e-2, atol=5e-2)), f"max_err={max_err}"
    print("KERNEL_OK")
</pallas_src>

<mosaic_0001>
module attributes {stable_mosaic.version = 11 : i64} {
  func.func @_encoder_block_kernel(%arg0: i32, %arg1: memref<1x22x48xf32, #tpu.memory_space<vmem>>, %arg2: memref<7x48xf32, #tpu.memory_space<vmem>>, %arg3: memref<1x48xf32, #tpu.memory_space<vmem>>, %arg4: memref<48x48xf32, #tpu.memory_space<vmem>>, %arg5: memref<1x48xf32, #tpu.memory_space<vmem>>, %arg6: memref<6x48x8xf32, #tpu.memory_space<vmem>>, %arg7: memref<6x1x8xf32, #tpu.memory_space<vmem>>, %arg8: memref<6x48x8xf32, #tpu.memory_space<vmem>>, %arg9: memref<6x1x8xf32, #tpu.memory_space<vmem>>, %arg10: memref<6x48x8xf32, #tpu.memory_space<vmem>>, %arg11: memref<6x1x8xf32, #tpu.memory_space<vmem>>, %arg12: memref<6x8x48xf32, #tpu.memory_space<vmem>>, %arg13: memref<1x48xf32, #tpu.memory_space<vmem>>, %arg14: memref<1x16x48xf32, #tpu.memory_space<vmem>>) attributes {dimension_semantics = [#tpu.dimension_semantics<parallel>], iteration_bounds = array<i64: 2>, scalar_prefetch = 0 : i64, scratch_operands = 0 : i64, tpu.core_type = #tpu.core_type<tc>, window_params = [{transform_indices = @transform_0, window_bounds = array<i64: 1, 22, 48>}, {pipeline_mode = #tpu.pipeline_mode<synchronous>, transform_indices = @transform_1, window_bounds = array<i64: 7, 48>}, {pipeline_mode = #tpu.pipeline_mode<synchronous>, transform_indices = @transform_2, window_bounds = array<i64: 1, 48>}, {pipeline_mode = #tpu.pipeline_mode<synchronous>, transform_indices = @transform_3, window_bounds = array<i64: 48, 48>}, {pipeline_mode = #tpu.pipeline_mode<synchronous>, transform_indices = @transform_4, window_bounds = array<i64: 1, 48>}, {pipeline_mode = #tpu.pipeline_mode<synchronous>, transform_indices = @transform_5, window_bounds = array<i64: 6, 48, 8>}, {pipeline_mode = #tpu.pipeline_mode<synchronous>, transform_indices = @transform_6, window_bounds = array<i64: 6, 1, 8>}, {pipeline_mode = #tpu.pipeline_mode<synchronous>, transform_indices = @transform_7, window_bounds = array<i64: 6, 48, 8>}, {pipeline_mode = #tpu.pipeline_mode<synchronous>, transform_indices = @transform_8, window_bounds = array<i64: 6, 1, 8>}, {pipeline_mode = #tpu.pipeline_mode<synchronous>, transform_indices = @transform_9, window_bounds = array<i64: 6, 48, 8>}, {pipeline_mode = #tpu.pipeline_mode<synchronous>, transform_indices = @transform_10, window_bounds = array<i64: 6, 1, 8>}, {pipeline_mode = #tpu.pipeline_mode<synchronous>, transform_indices = @transform_11, window_bounds = array<i64: 6, 8, 48>}, {pipeline_mode = #tpu.pipeline_mode<synchronous>, transform_indices = @transform_12, window_bounds = array<i64: 1, 48>}, {transform_indices = @transform_13, window_bounds = array<i64: 1, 16, 48>}]} {
    %c0 = arith.constant 0 : index
    %c0_0 = arith.constant 0 : index
    %c0_1 = arith.constant 0 : index
    %0 = vector.load %arg1[%c0, %c0_0, %c0_1] : memref<1x22x48xf32, #tpu.memory_space<vmem>>, vector<1x22x48xf32>
    %1 = vector.shape_cast %0 : vector<1x22x48xf32> to vector<22x48xf32>
    %2 = vector.extract_strided_slice %1 {offsets = [3, 0], sizes = [16, 48], strides = [1, 1]} : vector<22x48xf32> to vector<16x48xf32>
    %c0_2 = arith.constant 0 : index
    %c0_3 = arith.constant 0 : index
    %3 = vector.load %arg2[%c0_2, %c0_3] : memref<7x48xf32, #tpu.memory_space<vmem>>, vector<7x48xf32>
    %cst = arith.constant 0.000000e+00 : f32
    %4 = vector.broadcast %cst : f32 to vector<16x48xf32>
    %5 = vector.extract_strided_slice %1 {offsets = [0, 0], sizes = [16, 48], strides = [1, 1]} : vector<22x48xf32> to vector<16x48xf32>
    %6 = vector.extract_strided_slice %3 {offsets = [0, 0], sizes = [1, 48], strides = [1, 1]} : vector<7x48xf32> to vector<1x48xf32>
    %7 = vector.broadcast %6 : vector<1x48xf32> to vector<16x48xf32>
    %8 = arith.mulf %5, %7 : vector<16x48xf32>
    %9 = arith.addf %4, %8 : vector<16x48xf32>
    %10 = vector.extract_strided_slice %1 {offsets = [1, 0], sizes = [16, 48], strides = [1, 1]} : vector<22x48xf32> to vector<16x48xf32>
    %11 = vector.extract_strided_slice %3 {offsets = [1, 0], sizes = [1, 48], strides = [1, 1]} : vector<7x48xf32> to vector<1x48xf32>
    %12 = vector.broadcast %11 : vector<1x48xf32> to vector<16x48xf32>
    %13 = arith.mulf %10, %12 : vector<16x48xf32>
    %14 = arith.addf %9, %13 : vector<16x48xf32>
    %15 = vector.extract_strided_slice %1 {offsets = [2, 0], sizes = [16, 48], strides = [1, 1]} : vector<22x48xf32> to vector<16x48xf32>
    %16 = vector.extract_strided_slice %3 {offsets = [2, 0], sizes = [1, 48], strides = [1, 1]} : vector<7x48xf32> to vector<1x48xf32>
    %17 = vector.broadcast %16 : vector<1x48xf32> to vector<16x48xf32>
    %18 = arith.mulf %15, %17 : vector<16x48xf32>
    %19 = arith.addf %14, %18 : vector<16x48xf32>
    %20 = vector.extract_strided_slice %1 {offsets = [3, 0], sizes = [16, 48], strides = [1, 1]} : vector<22x48xf32> to vector<16x48xf32>
    %21 = vector.extract_strided_slice %3 {offsets = [3, 0], sizes = [1, 48], strides = [1, 1]} : vector<7x48xf32> to vector<1x48xf32>
    %22 = vector.broadcast %21 : vector<1x48xf32> to vector<16x48xf32>
    %23 = arith.mulf %20, %22 : vector<16x48xf32>
    %24 = arith.addf %19, %23 : vector<16x48xf32>
    %25 = vector.extract_strided_slice %1 {offsets = [4, 0], sizes = [16, 48], strides = [1, 1]} : vector<22x48xf32> to vector<16x48xf32>
    %26 = vector.extract_strided_slice %3 {offsets = [4, 0], sizes = [1, 48], strides = [1, 1]} : vector<7x48xf32> to vector<1x48xf32>
    %27 = vector.broadcast %26 : vector<1x48xf32> to vector<16x48xf32>
    %28 = arith.mulf %25, %27 : vector<16x48xf32>
    %29 = arith.addf %24, %28 : vector<16x48xf32>
    %30 = vector.extract_strided_slice %1 {offsets = [5, 0], sizes = [16, 48], strides = [1, 1]} : vector<22x48xf32> to vector<16x48xf32>
    %31 = vector.extract_strided_slice %3 {offsets = [5, 0], sizes = [1, 48], strides = [1, 1]} : vector<7x48xf32> to vector<1x48xf32>
    %32 = vector.broadcast %31 : vector<1x48xf32> to vector<16x48xf32>
    %33 = arith.mulf %30, %32 : vector<16x48xf32>
    %34 = arith.addf %29, %33 : vector<16x48xf32>
    %35 = vector.extract_strided_slice %1 {offsets = [6, 0], sizes = [16, 48], strides = [1, 1]} : vector<22x48xf32> to vector<16x48xf32>
    %36 = vector.extract_strided_slice %3 {offsets = [6, 0], sizes = [1, 48], strides = [1, 1]} : vector<7x48xf32> to vector<1x48xf32>
    %37 = vector.broadcast %36 : vector<1x48xf32> to vector<16x48xf32>
    %38 = arith.mulf %35, %37 : vector<16x48xf32>
    %39 = arith.addf %34, %38 : vector<16x48xf32>
    %c0_4 = arith.constant 0 : index
    %c0_5 = arith.constant 0 : index
    %40 = vector.load %arg3[%c0_4, %c0_5] : memref<1x48xf32, #tpu.memory_space<vmem>>, vector<1x48xf32>
    %41 = vector.broadcast %40 : vector<1x48xf32> to vector<16x48xf32>
    %42 = arith.addf %39, %41 : vector<16x48xf32>
    %43 = arith.truncf %42 : vector<16x48xf32> to vector<16x48xbf16>
    %c0_6 = arith.constant 0 : index
    %c0_7 = arith.constant 0 : index
    %44 = vector.load %arg4[%c0_6, %c0_7] : memref<48x48xf32, #tpu.memory_space<vmem>>, vector<48x48xf32>
    %45 = arith.truncf %44 : vector<48x48xf32> to vector<48x48xbf16>
    %cst_8 = arith.constant dense<0.000000e+00> : vector<16x48xf32>
    %46 = tpu.matmul %43, %45, %cst_8 {dimension_numbers = #tpu.dot_dimension_numbers<[1], [0], [0], [1], [0, 0, 1, 1], [], []>} : vector<16x48xbf16>, vector<48x48xbf16>, vector<16x48xf32> -> vector<16x48xf32>
    %c0_9 = arith.constant 0 : index
    %c0_10 = arith.constant 0 : index
    %47 = vector.load %arg5[%c0_9, %c0_10] : memref<1x48xf32, #tpu.memory_space<vmem>>, vector<1x48xf32>
    %48 = vector.broadcast %47 : vector<1x48xf32> to vector<16x48xf32>
    %49 = arith.addf %46, %48 : vector<16x48xf32>
    %50 = arith.addf %2, %49 : vector<16x48xf32>
    %cst_11 = arith.constant 0.000000e+00 : f32
    %51 = vector.broadcast %cst_11 : f32 to vector<16x48xf32>
    %52 = arith.maximumf %50, %51 : vector<16x48xf32>
    %53 = arith.truncf %52 : vector<16x48xf32> to vector<16x48xbf16>
    %cst_12 = arith.constant 0.000000e+00 : f32
    %54 = vector.broadcast %cst_12 : f32 to vector<16x48xf32>
    %c0_13 = arith.constant 0 : index
    %c0_14 = arith.constant 0 : index
    %c0_15 = arith.constant 0 : index
    %55 = vector.load %arg6[%c0_13, %c0_14, %c0_15] : memref<6x48x8xf32, #tpu.memory_space<vmem>>, vector<1x48x8xf32>
    %56 = vector.shape_cast %55 : vector<1x48x8xf32> to vector<48x8xf32>
    %57 = arith.truncf %56 : vector<48x8xf32> to vector<48x8xbf16>
    %cst_16 = arith.constant dense<0.000000e+00> : vector<16x8xf32>
    %58 = tpu.matmul %53, %57, %cst_16 {dimension_numbers = #tpu.dot_dimension_numbers<[1], [0], [0], [1], [0, 0, 1, 1], [], []>} : vector<16x48xbf16>, vector<48x8xbf16>, vector<16x8xf32> -> vector<16x8xf32>
    %c0_17 = arith.constant 0 : index
    %c0_18 = arith.constant 0 : index
    %c0_19 = arith.constant 0 : index
    %59 = vector.load %arg7[%c0_17, %c0_18, %c0_19] : memref<6x1x8xf32, #tpu.memory_space<vmem>>, vector<1x1x8xf32>
    %60 = vector.shape_cast %59 : vector<1x1x8xf32> to vector<1x8xf32>
    %61 = vector.broadcast %60 : vector<1x8xf32> to vector<16x8xf32>
    %62 = arith.addf %58, %61 : vector<16x8xf32>
    %cst_20 = arith.constant 0.353553385 : f32
    %63 = vector.broadcast %cst_20 : f32 to vector<16x8xf32>
    %64 = arith.mulf %62, %63 : vector<16x8xf32>
    %c0_21 = arith.constant 0 : index
    %c0_22 = arith.constant 0 : index
    %c0_23 = arith.constant 0 : index
    %65 = vector.load %arg8[%c0_21, %c0_22, %c0_23] : memref<6x48x8xf32, #tpu.memory_space<vmem>>, vector<1x48x8xf32>
    %66 = vector.shape_cast %65 : vector<1x48x8xf32> to vector<48x8xf32>
    %67 = arith.truncf %66 : vector<48x8xf32> to vector<48x8xbf16>
    %cst_24 = arith.constant dense<0.000000e+00> : vector<16x8xf32>
    %68 = tpu.matmul %53, %67, %cst_24 {dimension_numbers = #tpu.dot_dimension_numbers<[1], [0], [0], [1], [0, 0, 1, 1], [], []>} : vector<16x48xbf16>, vector<48x8xbf16>, vector<16x8xf32> -> vector<16x8xf32>
    %c0_25 = arith.constant 0 : index
    %c0_26 = arith.constant 0 : index
    %c0_27 = arith.constant 0 : index
    %69 = vector.load %arg9[%c0_25, %c0_26, %c0_27] : memref<6x1x8xf32, #tpu.memory_space<vmem>>, vector<1x1x8xf32>
    %70 = vector.shape_cast %69 : vector<1x1x8xf32> to vector<1x8xf32>
    %71 = vector.broadcast %70 : vector<1x8xf32> to vector<16x8xf32>
    %72 = arith.addf %68, %71 : vector<16x8xf32>
    %c0_28 = arith.constant 0 : index
    %c0_29 = arith.constant 0 : index
    %c0_30 = arith.constant 0 : index
    %73 = vector.load %arg10[%c0_28, %c0_29, %c0_30] : memref<6x48x8xf32, #tpu.memory_space<vmem>>, vector<1x48x8xf32>
    %74 = vector.shape_cast %73 : vector<1x48x8xf32> to vector<48x8xf32>
    %75 = arith.truncf %74 : vector<48x8xf32> to vector<48x8xbf16>
    %cst_31 = arith.constant dense<0.000000e+00> : vector<16x8xf32>
    %76 = tpu.matmul %53, %75, %cst_31 {dimension_numbers = #tpu.dot_dimension_numbers<[1], [0], [0], [1], [0, 0, 1, 1], [], []>} : vector<16x48xbf16>, vector<48x8xbf16>, vector<16x8xf32> -> vector<16x8xf32>
    %c0_32 = arith.constant 0 : index
    %c0_33 = arith.constant 0 : index
    %c0_34 = arith.constant 0 : index
    %77 = vector.load %arg11[%c0_32, %c0_33, %c0_34] : memref<6x1x8xf32, #tpu.memory_space<vmem>>, vector<1x1x8xf32>
    %78 = vector.shape_cast %77 : vector<1x1x8xf32> to vector<1x8xf32>
    %79 = vector.broadcast %78 : vector<1x8xf32> to vector<16x8xf32>
    %80 = arith.addf %76, %79 : vector<16x8xf32>
    %81 = arith.truncf %64 : vector<16x8xf32> to vector<16x8xbf16>
    %82 = arith.truncf %72 : vector<16x8xf32> to vector<16x8xbf16>
    %cst_35 = arith.constant dense<0.000000e+00> : vector<16x16xf32>
    %83 = tpu.matmul %81, %82, %cst_35 {dimension_numbers = #tpu.dot_dimension_numbers<[1], [1], [0], [0], [0, 0, 1, 0], [], []>} : vector<16x8xbf16>, vector<16x8xbf16>, vector<16x16xf32> -> vector<16x16xf32>
    %cst_36 = arith.constant dense<0xFF800000> : vector<16xf32>
    %84 = vector.multi_reduction <maximumf>, %83, %cst_36 [1] : vector<16x16xf32> to vector<16xf32>
    %85 = vector.shape_cast %84 : vector<16xf32> to vector<16x1xf32>
    %86 = vector.broadcast %85 : vector<16x1xf32> to vector<16x16xf32>
    %87 = arith.subf %83, %86 : vector<16x16xf32>
    %88 = math.exp %87 : vector<16x16xf32>
    %cst_37 = arith.constant dense<0.000000e+00> : vector<16xf32>
    %89 = vector.multi_reduction <add>, %88, %cst_37 [1] : vector<16x16xf32> to vector<16xf32>
    %90 = vector.shape_cast %89 : vector<16xf32> to vector<16x1xf32>
    %91 = tpu.reciprocal %90 {approx = true} : vector<16x1xf32> -> vector<16x1xf32>
    %92 = vector.broadcast %91 : vector<16x1xf32> to vector<16x16xf32>
    %93 = arith.mulf %88, %92 : vector<16x16xf32>
    %94 = arith.truncf %93 : vector<16x16xf32> to vector<16x16xbf16>
    %95 = arith.truncf %80 : vector<16x8xf32> to vector<16x8xbf16>
    %cst_38 = arith.constant dense<0.000000e+00> : vector<16x8xf32>
    %96 = tpu.matmul %94, %95, %cst_38 {dimension_numbers = #tpu.dot_dimension_numbers<[1], [0], [0], [1], [0, 0, 1, 1], [], []>} : vector<16x16xbf16>, vector<16x8xbf16>, vector<16x8xf32> -> vector<16x8xf32>
    %97 = arith.truncf %96 : vector<16x8xf32> to vector<16x8xbf16>
    %c0_39 = arith.constant 0 : index
    %c0_40 = arith.constant 0 : index
    %c0_41 = arith.constant 0 : index
    %98 = vector.load %arg12[%c0_39, %c0_40, %c0_41] : memref<6x8x48xf32, #tpu.memory_space<vmem>>, vector<1x8x48xf32>
    %99 = vector.shape_cast %98 : vector<1x8x48xf32> to vector<8x48xf32>
    %100 = arith.truncf %99 : vector<8x48xf32> to vector<8x48xbf16>
    %cst_42 = arith.constant dense<0.000000e+00> : vector<16x48xf32>
    %101 = tpu.matmul %97, %100, %cst_42 {dimension_numbers = #tpu.dot_dimension_numbers<[1], [0], [0], [1], [0, 0, 1, 1], [], []>} : vector<16x8xbf16>, vector<8x48xbf16>, vector<16x48xf32> -> vector<16x48xf32>
    %102 = arith.addf %54, %101 : vector<16x48xf32>
    %c1 = arith.constant 1 : index
    %c0_43 = arith.constant 0 : index
    %c0_44 = arith.constant 0 : index
    %103 = vector.load %arg6[%c1, %c0_43, %c0_44] : memref<6x48x8xf32, #tpu.memory_space<vmem>>, vector<1x48x8xf32>
    %104 = vector.shape_cast %103 : vector<1x48x8xf32> to vector<48x8xf32>
    %105 = arith.truncf %104 : vector<48x8xf32> to vector<48x8xbf16>
    %cst_45 = arith.constant dense<0.000000e+00> : vector<16x8xf32>
    %106 = tpu.matmul %53, %105, %cst_45 {dimension_numbers = #tpu.dot_dimension_numbers<[1], [0], [0], [1], [0, 0, 1, 1], [], []>} : vector<16x48xbf16>, vector<48x8xbf16>, vector<16x8xf32> -> vector<16x8xf32>
    %c1_46 = arith.constant 1 : index
    %c0_47 = arith.constant 0 : index
    %c0_48 = arith.constant 0 : index
    %107 = vector.load %arg7[%c1_46, %c0_47, %c0_48] : memref<6x1x8xf32, #tpu.memory_space<vmem>>, vector<1x1x8xf32>
    %108 = vector.shape_cast %107 : vector<1x1x8xf32> to vector<1x8xf32>
    %109 = vector.broadcast %108 : vector<1x8xf32> to vector<16x8xf32>
    %110 = arith.addf %106, %109 : vector<16x8xf32>
    %cst_49 = arith.constant 0.353553385 : f32
    %111 = vector.broadcast %cst_49 : f32 to vector<16x8xf32>
    %112 = arith.mulf %110, %111 : vector<16x8xf32>
    %c1_50 = arith.constant 1 : index
    %c0_51 = arith.constant 0 : index
    %c0_52 = arith.constant 0 : index
    %113 = vector.load %arg8[%c1_50, %c0_51, %c0_52] : memref<6x48x8xf32, #tpu.memory_space<vmem>>, vector<1x48x8xf32>
    %114 = vector.shape_cast %113 : vector<1x48x8xf32> to vector<48x8xf32>
    %115 = arith.truncf %114 : vector<48x8xf32> to vector<48x8xbf16>
    %cst_53 = arith.constant dense<0.000000e+00> : vector<16x8xf32>
    %116 = tpu.matmul %53, %115, %cst_53 {dimension_numbers = #tpu.dot_dimension_numbers<[1], [0], [0], [1], [0, 0, 1, 1], [], []>} : vector<16x48xbf16>, vector<48x8xbf16>, vector<16x8xf32> -> vector<16x8xf32>
    %c1_54 = arith.constant 1 : index
    %c0_55 = arith.constant 0 : index
    %c0_56 = arith.constant 0 : index
    %117 = vector.load %arg9[%c1_54, %c0_55, %c0_56] : memref<6x1x8xf32, #tpu.memory_space<vmem>>, vector<1x1x8xf32>
    %118 = vector.shape_cast %117 : vector<1x1x8xf32> to vector<1x8xf32>
    %119 = vector.broadcast %118 : vector<1x8xf32> to vector<16x8xf32>
    %120 = arith.addf %116, %119 : vector<16x8xf32>
    %c1_57 = arith.constant 1 : index
    %c0_58 = arith.constant 0 : index
    %c0_59 = arith.constant 0 : index
    %121 = vector.load %arg10[%c1_57, %c0_58, %c0_59] : memref<6x48x8xf32, #tpu.memory_space<vmem>>, vector<1x48x8xf32>
    %122 = vector.shape_cast %121 : vector<1x48x8xf32> to vector<48x8xf32>
    %123 = arith.truncf %122 : vector<48x8xf32> to vector<48x8xbf16>
    %cst_60 = arith.constant dense<0.000000e+00> : vector<16x8xf32>
    %124 = tpu.matmul %53, %123, %cst_60 {dimension_numbers = #tpu.dot_dimension_numbers<[1], [0], [0], [1], [0, 0, 1, 1], [], []>} : vector<16x48xbf16>, vector<48x8xbf16>, vector<16x8xf32> -> vector<16x8xf32>
    %c1_61 = arith.constant 1 : index
    %c0_62 = arith.constant 0 : index
    %c0_63 = arith.constant 0 : index
    %125 = vector.load %arg11[%c1_61, %c0_62, %c0_63] : memref<6x1x8xf32, #tpu.memory_space<vmem>>, vector<1x1x8xf32>
    %126 = vector.shape_cast %125 : vector<1x1x8xf32> to vector<1x8xf32>
    %127 = vector.broadcast %126 : vector<1x8xf32> to vector<16x8xf32>
    %128 = arith.addf %124, %127 : vector<16x8xf32>
    %129 = arith.truncf %112 : vector<16x8xf32> to vector<16x8xbf16>
    %130 = arith.truncf %120 : vector<16x8xf32> to vector<16x8xbf16>
    %cst_64 = arith.constant dense<0.000000e+00> : vector<16x16xf32>
    %131 = tpu.matmul %129, %130, %cst_64 {dimension_numbers = #tpu.dot_dimension_numbers<[1], [1], [0], [0], [0, 0, 1, 0], [], []>} : vector<16x8xbf16>, vector<16x8xbf16>, vector<16x16xf32> -> vector<16x16xf32>
    %cst_65 = arith.constant dense<0xFF800000> : vector<16xf32>
    %132 = vector.multi_reduction <maximumf>, %131, %cst_65 [1] : vector<16x16xf32> to vector<16xf32>
    %133 = vector.shape_cast %132 : vector<16xf32> to vector<16x1xf32>
    %134 = vector.broadcast %133 : vector<16x1xf32> to vector<16x16xf32>
    %135 = arith.subf %131, %134 : vector<16x16xf32>
    %136 = math.exp %135 : vector<16x16xf32>
    %cst_66 = arith.constant dense<0.000000e+00> : vector<16xf32>
    %137 = vector.multi_reduction <add>, %136, %cst_66 [1] : vector<16x16xf32> to vector<16xf32>
    %138 = vector.shape_cast %137 : vector<16xf32> to vector<16x1xf32>
    %139 = tpu.reciprocal %138 {approx = true} : vector<16x1xf32> -> vector<16x1xf32>
    %140 = vector.broadcast %139 : vector<16x1xf32> to vector<16x16xf32>
    %141 = arith.mulf %136, %140 : vector<16x16xf32>
    %142 = arith.truncf %141 : vector<16x16xf32> to vector<16x16xbf16>
    %143 = arith.truncf %128 : vector<16x8xf32> to vector<16x8xbf16>
    %cst_67 = arith.constant dense<0.000000e+00> : vector<16x8xf32>
    %144 = tpu.matmul %142, %143, %cst_67 {dimension_numbers = #tpu.dot_dimension_numbers<[1], [0], [0], [1], [0, 0, 1, 1], [], []>} : vector<16x16xbf16>, vector<16x8xbf16>, vector<16x8xf32> -> vector<16x8xf32>
    %145 = arith.truncf %144 : vector<16x8xf32> to vector<16x8xbf16>
    %c1_68 = arith.constant 1 : index
    %c0_69 = arith.constant 0 : index
    %c0_70 = arith.constant 0 : index
    %146 = vector.load %arg12[%c1_68, %c0_69, %c0_70] : memref<6x8x48xf32, #tpu.memory_space<vmem>>, vector<1x8x48xf32>
    %147 = vector.shape_cast %146 : vector<1x8x48xf32> to vector<8x48xf32>
    %148 = arith.truncf %147 : vector<8x48xf32> to vector<8x48xbf16>
    %cst_71 = arith.constant dense<0.000000e+00> : vector<16x48xf32>
    %149 = tpu.matmul %145, %148, %cst_71 {dimension_numbers = #tpu.dot_dimension_numbers<[1], [0], [0], [1], [0, 0, 1, 1], [], []>} : vector<16x8xbf16>, vector<8x48xbf16>, vector<16x48xf32> -> vector<16x48xf32>
    %150 = arith.addf %102, %149 : vector<16x48xf32>
    %c2 = arith.constant 2 : index
    %c0_72 = arith.constant 0 : index
    %c0_73 = arith.constant 0 : index
    %151 = vector.load %arg6[%c2, %c0_72, %c0_73] : memref<6x48x8xf32, #tpu.memory_space<vmem>>, vector<1x48x8xf32>
    %152 = vector.shape_cast %151 : vector<1x48x8xf32> to vector<48x8xf32>
    %153 = arith.truncf %152 : vector<48x8xf32> to vector<48x8xbf16>
    %cst_74 = arith.constant dense<0.000000e+00> : vector<16x8xf32>
    %154 = tpu.matmul %53, %153, %cst_74 {dimension_numbers = #tpu.dot_dimension_numbers<[1], [0], [0], [1], [0, 0, 1, 1], [], []>} : vector<16x48xbf16>, vector<48x8xbf16>, vector<16x8xf32> -> vector<16x8xf32>
    %c2_75 = arith.constant 2 : index
    %c0_76 = arith.constant 0 : index
    %c0_77 = arith.constant 0 : index
    %155 = vector.load %arg7[%c2_75, %c0_76, %c0_77] : memref<6x1x8xf32, #tpu.memory_space<vmem>>, vector<1x1x8xf32>
    %156 = vector.shape_cast %155 : vector<1x1x8xf32> to vector<1x8xf32>
    %157 = vector.broadcast %156 : vector<1x8xf32> to vector<16x8xf32>
    %158 = arith.addf %154, %157 : vector<16x8xf32>
    %cst_78 = arith.constant 0.353553385 : f32
    %159 = vector.broadcast %cst_78 : f32 to vector<16x8xf32>
    %160 = arith.mulf %158, %159 : vector<16x8xf32>
    %c2_79 = arith.constant 2 : index
    %c0_80 = arith.constant 0 : index
    %c0_81 = arith.constant 0 : index
    %161 = vector.load %arg8[%c2_79, %c0_80, %c0_81] : memref<6x48x8xf32, #tpu.memory_space<vmem>>, vector<1x48x8xf32>
    %162 = vector.shape_cast %161 : vector<1x48x8xf32> to vector<48x8xf32>
    %163 = arith.truncf %162 : vector<48x8xf32> to vector<48x8xbf16>
    %cst_82 = arith.constant dense<0.000000e+00> : vector<16x8xf32>
    %164 = tpu.matmul %53, %163, %cst_82 {dimension_numbers = #tpu.dot_dimension_numbers<[1], [0], [0], [1], [0, 0, 1, 1], [], []>} : vector<16x48xbf16>, vector<48x8xbf16>, vector<16x8xf32> -> vector<16x8xf32>
    %c2_83 = arith.constant 2 : index
    %c0_84 = arith.constant 0 : index
    %c0_85 = arith.constant 0 : index
    %165 = vector.load %arg9[%c2_83, %c0_84, %c0_85] : memref<6x1x8xf32, #tpu.memory_space<vmem>>, vector<1x1x8xf32>
    %166 = vector.shape_cast %165 : vector<1x1x8xf32> to vector<1x8xf32>
    %167 = vector.broadcast %166 : vector<1x8xf32> to vector<16x8xf32>
    %168 = arith.addf %164, %167 : vector<16x8xf32>
    %c2_86 = arith.constant 2 : index
    %c0_87 = arith.constant 0 : index
    %c0_88 = arith.constant 0 : index
    %169 = vector.load %arg10[%c2_86, %c0_87, %c0_88] : memref<6x48x8xf32, #tpu.memory_space<vmem>>, vector<1x48x8xf32>
    %170 = vector.shape_cast %169 : vector<1x48x8xf32> to vector<48x8xf32>
    %171 = arith.truncf %170 : vector<48x8xf32> to vector<48x8xbf16>
    %cst_89 = arith.constant dense<0.000000e+00> : vector<16x8xf32>
    %172 = tpu.matmul %53, %171, %cst_89 {dimension_numbers = #tpu.dot_dimension_numbers<[1], [0], [0], [1], [0, 0, 1, 1], [], []>} : vector<16x48xbf16>, vector<48x8xbf16>, vector<16x8xf32> -> vector<16x8xf32>
    %c2_90 = arith.constant 2 : index
    %c0_91 = arith.constant 0 : index
    %c0_92 = arith.constant 0 : index
    %173 = vector.load %arg11[%c2_90, %c0_91, %c0_92] : memref<6x1x8xf32, #tpu.memory_space<vmem>>, vector<1x1x8xf32>
    %174 = vector.shape_cast %173 : vector<1x1x8xf32> to vector<1x8xf32>
    %175 = vector.broadcast %174 : vector<1x8xf32> to vector<16x8xf32>
    %176 = arith.addf %172, %175 : vector<16x8xf32>
    %177 = arith.truncf %160 : vector<16x8xf32> to vector<16x8xbf16>
    %178 = arith.truncf %168 : vector<16x8xf32> to vector<16x8xbf16>
    %cst_93 = arith.constant dense<0.000000e+00> : vector<16x16xf32>
    %179 = tpu.matmul %177, %178, %cst_93 {dimension_numbers = #tpu.dot_dimension_numbers<[1], [1], [0], [0], [0, 0, 1, 0], [], []>} : vector<16x8xbf16>, vector<16x8xbf16>, vector<16x16xf32> -> vector<16x16xf32>
    %cst_94 = arith.constant dense<0xFF800000> : vector<16xf32>
    %180 = vector.multi_reduction <maximumf>, %179, %cst_94 [1] : vector<16x16xf32> to vector<16xf32>
    %181 = vector.shape_cast %180 : vector<16xf32> to vector<16x1xf32>
    %182 = vector.broadcast %181 : vector<16x1xf32> to vector<16x16xf32>
    %183 = arith.subf %179, %182 : vector<16x16xf32>
    %184 = math.exp %183 : vector<16x16xf32>
    %cst_95 = arith.constant dense<0.000000e+00> : vector<16xf32>
    %185 = vector.multi_reduction <add>, %184, %cst_95 [1] : vector<16x16xf32> to vector<16xf32>
    %186 = vector.shape_cast %185 : vector<16xf32> to vector<16x1xf32>
    %187 = tpu.reciprocal %186 {approx = true} : vector<16x1xf32> -> vector<16x1xf32>
    %188 = vector.broadcast %187 : vector<16x1xf32> to vector<16x16xf32>
    %189 = arith.mulf %184, %188 : vector<16x16xf32>
    %190 = arith.truncf %189 : vector<16x16xf32> to vector<16x16xbf16>
    %191 = arith.truncf %176 : vector<16x8xf32> to vector<16x8xbf16>
    %cst_96 = arith.constant dense<0.000000e+00> : vector<16x8xf32>
    %192 = tpu.matmul %190, %191, %cst_96 {dimension_numbers = #tpu.dot_dimension_numbers<[1], [0], [0], [1], [0, 0, 1, 1], [], []>} : vector<16x16xbf16>, vector<16x8xbf16>, vector<16x8xf32> -> vector<16x8xf32>
    %193 = arith.truncf %192 : vector<16x8xf32> to vector<16x8xbf16>
    %c2_97 = arith.constant 2 : index
    %c0_98 = arith.constant 0 : index
    %c0_99 = arith.constant 0 : index
    %194 = vector.load %arg12[%c2_97, %c0_98, %c0_99] : memref<6x8x48xf32, #tpu.memory_space<vmem>>, vector<1x8x48xf32>
    %195 = vector.shape_cast %194 : vector<1x8x48xf32> to vector<8x48xf32>
    %196 = arith.truncf %195 : vector<8x48xf32> to vector<8x48xbf16>
    %cst_100 = arith.constant dense<0.000000e+00> : vector<16x48xf32>
    %197 = tpu.matmul %193, %196, %cst_100 {dimension_numbers = #tpu.dot_dimension_numbers<[1], [0], [0], [1], [0, 0, 1, 1], [], []>} : vector<16x8xbf16>, vector<8x48xbf16>, vector<16x48xf32> -> vector<16x48xf32>
    %198 = arith.addf %150, %197 : vector<16x48xf32>
    %c3 = arith.constant 3 : index
    %c0_101 = arith.constant 0 : index
    %c0_102 = arith.constant 0 : index
    %199 = vector.load %arg6[%c3, %c0_101, %c0_102] : memref<6x48x8xf32, #tpu.memory_space<vmem>>, vector<1x48x8xf32>
    %200 = vector.shape_cast %199 : vector<1x48x8xf32> to vector<48x8xf32>
    %201 = arith.truncf %200 : vector<48x8xf32> to vector<48x8xbf16>
    %cst_103 = arith.constant dense<0.000000e+00> : vector<16x8xf32>
    %202 = tpu.matmul %53, %201, %cst_103 {dimension_numbers = #tpu.dot_dimension_numbers<[1], [0], [0], [1], [0, 0, 1, 1], [], []>} : vector<16x48xbf16>, vector<48x8xbf16>, vector<16x8xf32> -> vector<16x8xf32>
    %c3_104 = arith.constant 3 : index
    %c0_105 = arith.constant 0 : index
    %c0_106 = arith.constant 0 : index
    %203 = vector.load %arg7[%c3_104, %c0_105, %c0_106] : memref<6x1x8xf32, #tpu.memory_space<vmem>>, vector<1x1x8xf32>
    %204 = vector.shape_cast %203 : vector<1x1x8xf32> to vector<1x8xf32>
    %205 = vector.broadcast %204 : vector<1x8xf32> to vector<16x8xf32>
    %206 = arith.addf %202, %205 : vector<16x8xf32>
    %cst_107 = arith.constant 0.353553385 : f32
    %207 = vector.broadcast %cst_107 : f32 to vector<16x8xf32>
    %208 = arith.mulf %206, %207 : vector<16x8xf32>
    %c3_108 = arith.constant 3 : index
    %c0_109 = arith.constant 0 : index
    %c0_110 = arith.constant 0 : index
    %209 = vector.load %arg8[%c3_108, %c0_109, %c0_110] : memref<6x48x8xf32, #tpu.memory_space<vmem>>, vector<1x48x8xf32>
    %210 = vector.shape_cast %209 : vector<1x48x8xf32> to vector<48x8xf32>
    %211 = arith.truncf %210 : vector<48x8xf32> to vector<48x8xbf16>
    %cst_111 = arith.constant dense<0.000000e+00> : vector<16x8xf32>
    %212 = tpu.matmul %53, %211, %cst_111 {dimension_numbers = #tpu.dot_dimension_numbers<[1], [0], [0], [1], [0, 0, 1, 1], [], []>} : vector<16x48xbf16>, vector<48x8xbf16>, vector<16x8xf32> -> vector<16x8xf32>
    %c3_112 = arith.constant 3 : index
    %c0_113 = arith.constant 0 : index
    %c0_114 = arith.constant 0 : index
    %213 = vector.load %arg9[%c3_112, %c0_113, %c0_114] : memref<6x1x8xf32, #tpu.memory_space<vmem>>, vector<1x1x8xf32>
    %214 = vector.shape_cast %213 : vector<1x1x8xf32> to vector<1x8xf32>
    %215 = vector.broadcast %214 : vector<1x8xf32> to vector<16x8xf32>
    %216 = arith.addf %212, %215 : vector<16x8xf32>
    %c3_115 = arith.constant 3 : index
    %c0_116 = arith.constant 0 : index
    %c0_117 = arith.constant 0 : index
    %217 = vector.load %arg10[%c3_115, %c0_116, %c0_117] : memref<6x48x8xf32, #tpu.memory_space<vmem>>, vector<1x48x8xf32>
    %218 = vector.shape_cast %217 : vector<1x48x8xf32> to vector<48x8xf32>
    %219 = arith.truncf %218 : vector<48x8xf32> to vector<48x8xbf16>
    %cst_118 = arith.constant dense<0.000000e+00> : vector<16x8xf32>
    %220 = tpu.matmul %53, %219, %cst_118 {dimension_numbers = #tpu.dot_dimension_numbers<[1], [0], [0], [1], [0, 0, 1, 1], [], []>} : vector<16x48xbf16>, vector<48x8xbf16>, vector<16x8xf32> -> vector<16x8xf32>
    %c3_119 = arith.constant 3 : index
    %c0_120 = arith.constant 0 : index
    %c0_121 = arith.constant 0 : index
    %221 = vector.load %arg11[%c3_119, %c0_120, %c0_121] : memref<6x1x8xf32, #tpu.memory_space<vmem>>, vector<1x1x8xf32>
    %222 = vector.shape_cast %221 : vector<1x1x8xf32> to vector<1x8xf32>
    %223 = vector.broadcast %222 : vector<1x8xf32> to vector<16x8xf32>
    %224 = arith.addf %220, %223 : vector<16x8xf32>
    %225 = arith.truncf %208 : vector<16x8xf32> to vector<16x8xbf16>
    %226 = arith.truncf %216 : vector<16x8xf32> to vector<16x8xbf16>
    %cst_122 = arith.constant dense<0.000000e+00> : vector<16x16xf32>
    %227 = tpu.matmul %225, %226, %cst_122 {dimension_numbers = #tpu.dot_dimension_numbers<[1], [1], [0], [0], [0, 0, 1, 0], [], []>} : vector<16x8xbf16>, vector<16x8xbf16>, vector<16x16xf32> -> vector<16x16xf32>
    %cst_123 = arith.constant dense<0xFF800000> : vector<16xf32>
    %228 = vector.multi_reduction <maximumf>, %227, %cst_123 [1] : vector<16x16xf32> to vector<16xf32>
    %229 = vector.shape_cast %228 : vector<16xf32> to vector<16x1xf32>
    %230 = vector.broadcast %229 : vector<16x1xf32> to vector<16x16xf32>
    %231 = arith.subf %227, %230 : vector<16x16xf32>
    %232 = math.exp %231 : vector<16x16xf32>
    %cst_124 = arith.constant dense<0.000000e+00> : vector<16xf32>
    %233 = vector.multi_reduction <add>, %232, %cst_124 [1] : vector<16x16xf32> to vector<16xf32>
    %234 = vector.shape_cast %233 : vector<16xf32> to vector<16x1xf32>
    %235 = tpu.reciprocal %234 {approx = true} : vector<16x1xf32> -> vector<16x1xf32>
    %236 = vector.broadcast %235 : vector<16x1xf32> to vector<16x16xf32>
    %237 = arith.mulf %232, %236 : vector<16x16xf32>
    %238 = arith.truncf %237 : vector<16x16xf32> to vector<16x16xbf16>
    %239 = arith.truncf %224 : vector<16x8xf32> to vector<16x8xbf16>
    %cst_125 = arith.constant dense<0.000000e+00> : vector<16x8xf32>
    %240 = tpu.matmul %238, %239, %cst_125 {dimension_numbers = #tpu.dot_dimension_numbers<[1], [0], [0], [1], [0, 0, 1, 1], [], []>} : vector<16x16xbf16>, vector<16x8xbf16>, vector<16x8xf32> -> vector<16x8xf32>
    %241 = arith.truncf %240 : vector<16x8xf32> to vector<16x8xbf16>
    %c3_126 = arith.constant 3 : index
    %c0_127 = arith.constant 0 : index
    %c0_128 = arith.constant 0 : index
    %242 = vector.load %arg12[%c3_126, %c0_127, %c0_128] : memref<6x8x48xf32, #tpu.memory_space<vmem>>, vector<1x8x48xf32>
    %243 = vector.shape_cast %242 : vector<1x8x48xf32> to vector<8x48xf32>
    %244 = arith.truncf %243 : vector<8x48xf32> to vector<8x48xbf16>
    %cst_129 = arith.constant dense<0.000000e+00> : vector<16x48xf32>
    %245 = tpu.matmul %241, %244, %cst_129 {dimension_numbers = #tpu.dot_dimension_numbers<[1], [0], [0], [1], [0, 0, 1, 1], [], []>} : vector<16x8xbf16>, vector<8x48xbf16>, vector<16x48xf32> -> vector<16x48xf32>
    %246 = arith.addf %198, %245 : vector<16x48xf32>
    %c4 = arith.constant 4 : index
    %c0_130 = arith.constant 0 : index
    %c0_131 = arith.constant 0 : index
    %247 = vector.load %arg6[%c4, %c0_130, %c0_131] : memref<6x48x8xf32, #tpu.memory_space<vmem>>, vector<1x48x8xf32>
    %248 = vector.shape_cast %247 : vector<1x48x8xf32> to vector<48x8xf32>
    %249 = arith.truncf %248 : vector<48x8xf32> to vector<48x8xbf16>
    %cst_132 = arith.constant dense<0.000000e+00> : vector<16x8xf32>
    %250 = tpu.matmul %53, %249, %cst_132 {dimension_numbers = #tpu.dot_dimension_numbers<[1], [0], [0], [1], [0, 0, 1, 1], [], []>} : vector<16x48xbf16>, vector<48x8xbf16>, vector<16x8xf32> -> vector<16x8xf32>
    %c4_133 = arith.constant 4 : index
    %c0_134 = arith.constant 0 : index
    %c0_135 = arith.constant 0 : index
    %251 = vector.load %arg7[%c4_133, %c0_134, %c0_135] : memref<6x1x8xf32, #tpu.memory_space<vmem>>, vector<1x1x8xf32>
    %252 = vector.shape_cast %251 : vector<1x1x8xf32> to vector<1x8xf32>
    %253 = vector.broadcast %252 : vector<1x8xf32> to vector<16x8xf32>
    %254 = arith.addf %250, %253 : vector<16x8xf32>
    %cst_136 = arith.constant 0.353553385 : f32
    %255 = vector.broadcast %cst_136 : f32 to vector<16x8xf32>
    %256 = arith.mulf %254, %255 : vector<16x8xf32>
    %c4_137 = arith.constant 4 : index
    %c0_138 = arith.constant 0 : index
    %c0_139 = arith.constant 0 : index
    %257 = vector.load %arg8[%c4_137, %c0_138, %c0_139] : memref<6x48x8xf32, #tpu.memory_space<vmem>>, vector<1x48x8xf32>
    %258 = vector.shape_cast %257 : vector<1x48x8xf32> to vector<48x8xf32>
    %259 = arith.truncf %258 : vector<48x8xf32> to vector<48x8xbf16>
    %cst_140 = arith.constant dense<0.000000e+00> : vector<16x8xf32>
    %260 = tpu.matmul %53, %259, %cst_140 {dimension_numbers = #tpu.dot_dimension_numbers<[1], [0], [0], [1], [0, 0, 1, 1], [], []>} : vector<16x48xbf16>, vector<48x8xbf16>, vector<16x8xf32> -> vector<16x8xf32>
    %c4_141 = arith.constant 4 : index
    %c0_142 = arith.constant 0 : index
    %c0_143 = arith.constant 0 : index
    %261 = vector.load %arg9[%c4_141, %c0_142, %c0_143] : memref<6x1x8xf32, #tpu.memory_space<vmem>>, vector<1x1x8xf32>
    %262 = vector.shape_cast %261 : vector<1x1x8xf32> to vector<1x8xf32>
    %263 = vector.broadcast %262 : vector<1x8xf32> to vector<16x8xf32>
    %264 = arith.addf %260, %263 : vector<16x8xf32>
    %c4_144 = arith.constant 4 : index
    %c0_145 = arith.constant 0 : index
    %c0_146 = arith.constant 0 : index
    %265 = vector.load %arg10[%c4_144, %c0_145, %c0_146] : memref<6x48x8xf32, #tpu.memory_space<vmem>>, vector<1x48x8xf32>
    %266 = vector.shape_cast %265 : vector<1x48x8xf32> to vector<48x8xf32>
    %267 = arith.truncf %266 : vector<48x8xf32> to vector<48x8xbf16>
    %cst_147 = arith.constant dense<0.000000e+00> : vector<16x8xf32>
    %268 = tpu.matmul %53, %267, %cst_147 {dimension_numbers = #tpu.dot_dimension_numbers<[1], [0], [0], [1], [0, 0, 1, 1], [], []>} : vector<16x48xbf16>, vector<48x8xbf16>, vector<16x8xf32> -> vector<16x8xf32>
    %c4_148 = arith.constant 4 : index
    %c0_149 = arith.constant 0 : index
    %c0_150 = arith.constant 0 : index
    %269 = vector.load %arg11[%c4_148, %c0_149, %c0_150] : memref<6x1x8xf32, #tpu.memory_space<vmem>>, vector<1x1x8xf32>
    %270 = vector.shape_cast %269 : vector<1x1x8xf32> to vector<1x8xf32>
    %271 = vector.broadcast %270 : vector<1x8xf32> to vector<16x8xf32>
    %272 = arith.addf %268, %271 : vector<16x8xf32>
    %273 = arith.truncf %256 : vector<16x8xf32> to vector<16x8xbf16>
    %274 = arith.truncf %264 : vector<16x8xf32> to vector<16x8xbf16>
    %cst_151 = arith.constant dense<0.000000e+00> : vector<16x16xf32>
    %275 = tpu.matmul %273, %274, %cst_151 {dimension_numbers = #tpu.dot_dimension_numbers<[1], [1], [0], [0], [0, 0, 1, 0], [], []>} : vector<16x8xbf16>, vector<16x8xbf16>, vector<16x16xf32> -> vector<16x16xf32>
    %cst_152 = arith.constant dense<0xFF800000> : vector<16xf32>
    %276 = vector.multi_reduction <maximumf>, %275, %cst_152 [1] : vector<16x16xf32> to vector<16xf32>
    %277 = vector.shape_cast %276 : vector<16xf32> to vector<16x1xf32>
    %278 = vector.broadcast %277 : vector<16x1xf32> to vector<16x16xf32>
    %279 = arith.subf %275, %278 : vector<16x16xf32>
    %280 = math.exp %279 : vector<16x16xf32>
    %cst_153 = arith.constant dense<0.000000e+00> : vector<16xf32>
    %281 = vector.multi_reduction <add>, %280, %cst_153 [1] : vector<16x16xf32> to vector<16xf32>
    %282 = vector.shape_cast %281 : vector<16xf32> to vector<16x1xf32>
    %283 = tpu.reciprocal %282 {approx = true} : vector<16x1xf32> -> vector<16x1xf32>
    %284 = vector.broadcast %283 : vector<16x1xf32> to vector<16x16xf32>
    %285 = arith.mulf %280, %284 : vector<16x16xf32>
    %286 = arith.truncf %285 : vector<16x16xf32> to vector<16x16xbf16>
    %287 = arith.truncf %272 : vector<16x8xf32> to vector<16x8xbf16>
    %cst_154 = arith.constant dense<0.000000e+00> : vector<16x8xf32>
    %288 = tpu.matmul %286, %287, %cst_154 {dimension_numbers = #tpu.dot_dimension_numbers<[1], [0], [0], [1], [0, 0, 1, 1], [], []>} : vector<16x16xbf16>, vector<16x8xbf16>, vector<16x8xf32> -> vector<16x8xf32>
    %289 = arith.truncf %288 : vector<16x8xf32> to vector<16x8xbf16>
    %c4_155 = arith.constant 4 : index
    %c0_156 = arith.constant 0 : index
    %c0_157 = arith.constant 0 : index
    %290 = vector.load %arg12[%c4_155, %c0_156, %c0_157] : memref<6x8x48xf32, #tpu.memory_space<vmem>>, vector<1x8x48xf32>
    %291 = vector.shape_cast %290 : vector<1x8x48xf32> to vector<8x48xf32>
    %292 = arith.truncf %291 : vector<8x48xf32> to vector<8x48xbf16>
    %cst_158 = arith.constant dense<0.000000e+00> : vector<16x48xf32>
    %293 = tpu.matmul %289, %292, %cst_158 {dimension_numbers = #tpu.dot_dimension_numbers<[1], [0], [0], [1], [0, 0, 1, 1], [], []>} : vector<16x8xbf16>, vector<8x48xbf16>, vector<16x48xf32> -> vector<16x48xf32>
    %294 = arith.addf %246, %293 : vector<16x48xf32>
    %c5 = arith.constant 5 : index
    %c0_159 = arith.constant 0 : index
    %c0_160 = arith.constant 0 : index
    %295 = vector.load %arg6[%c5, %c0_159, %c0_160] : memref<6x48x8xf32, #tpu.memory_space<vmem>>, vector<1x48x8xf32>
    %296 = vector.shape_cast %295 : vector<1x48x8xf32> to vector<48x8xf32>
    %297 = arith.truncf %296 : vector<48x8xf32> to vector<48x8xbf16>
    %cst_161 = arith.constant dense<0.000000e+00> : vector<16x8xf32>
    %298 = tpu.matmul %53, %297, %cst_161 {dimension_numbers = #tpu.dot_dimension_numbers<[1], [0], [0], [1], [0, 0, 1, 1], [], []>} : vector<16x48xbf16>, vector<48x8xbf16>, vector<16x8xf32> -> vector<16x8xf32>
    %c5_162 = arith.constant 5 : index
    %c0_163 = arith.constant 0 : index
    %c0_164 = arith.constant 0 : index
    %299 = vector.load %arg7[%c5_162, %c0_163, %c0_164] : memref<6x1x8xf32, #tpu.memory_space<vmem>>, vector<1x1x8xf32>
    %300 = vector.shape_cast %299 : vector<1x1x8xf32> to vector<1x8xf32>
    %301 = vector.broadcast %300 : vector<1x8xf32> to vector<16x8xf32>
    %302 = arith.addf %298, %301 : vector<16x8xf32>
    %cst_165 = arith.constant 0.353553385 : f32
    %303 = vector.broadcast %cst_165 : f32 to vector<16x8xf32>
    %304 = arith.mulf %302, %303 : vector<16x8xf32>
    %c5_166 = arith.constant 5 : index
    %c0_167 = arith.constant 0 : index
    %c0_168 = arith.constant 0 : index
    %305 = vector.load %arg8[%c5_166, %c0_167, %c0_168] : memref<6x48x8xf32, #tpu.memory_space<vmem>>, vector<1x48x8xf32>
    %306 = vector.shape_cast %305 : vector<1x48x8xf32> to vector<48x8xf32>
    %307 = arith.truncf %306 : vector<48x8xf32> to vector<48x8xbf16>
    %cst_169 = arith.constant dense<0.000000e+00> : vector<16x8xf32>
    %308 = tpu.matmul %53, %307, %cst_169 {dimension_numbers = #tpu.dot_dimension_numbers<[1], [0], [0], [1], [0, 0, 1, 1], [], []>} : vector<16x48xbf16>, vector<48x8xbf16>, vector<16x8xf32> -> vector<16x8xf32>
    %c5_170 = arith.constant 5 : index
    %c0_171 = arith.constant 0 : index
    %c0_172 = arith.constant 0 : index
    %309 = vector.load %arg9[%c5_170, %c0_171, %c0_172] : memref<6x1x8xf32, #tpu.memory_space<vmem>>, vector<1x1x8xf32>
    %310 = vector.shape_cast %309 : vector<1x1x8xf32> to vector<1x8xf32>
    %311 = vector.broadcast %310 : vector<1x8xf32> to vector<16x8xf32>
    %312 = arith.addf %308, %311 : vector<16x8xf32>
    %c5_173 = arith.constant 5 : index
    %c0_174 = arith.constant 0 : index
    %c0_175 = arith.constant 0 : index
    %313 = vector.load %arg10[%c5_173, %c0_174, %c0_175] : memref<6x48x8xf32, #tpu.memory_space<vmem>>, vector<1x48x8xf32>
    %314 = vector.shape_cast %313 : vector<1x48x8xf32> to vector<48x8xf32>
    %315 = arith.truncf %314 : vector<48x8xf32> to vector<48x8xbf16>
    %cst_176 = arith.constant dense<0.000000e+00> : vector<16x8xf32>
    %316 = tpu.matmul %53, %315, %cst_176 {dimension_numbers = #tpu.dot_dimension_numbers<[1], [0], [0], [1], [0, 0, 1, 1], [], []>} : vector<16x48xbf16>, vector<48x8xbf16>, vector<16x8xf32> -> vector<16x8xf32>
    %c5_177 = arith.constant 5 : index
    %c0_178 = arith.constant 0 : index
    %c0_179 = arith.constant 0 : index
    %317 = vector.load %arg11[%c5_177, %c0_178, %c0_179] : memref<6x1x8xf32, #tpu.memory_space<vmem>>, vector<1x1x8xf32>
    %318 = vector.shape_cast %317 : vector<1x1x8xf32> to vector<1x8xf32>
    %319 = vector.broadcast %318 : vector<1x8xf32> to vector<16x8xf32>
    %320 = arith.addf %316, %319 : vector<16x8xf32>
    %321 = arith.truncf %304 : vector<16x8xf32> to vector<16x8xbf16>
    %322 = arith.truncf %312 : vector<16x8xf32> to vector<16x8xbf16>
    %cst_180 = arith.constant dense<0.000000e+00> : vector<16x16xf32>
    %323 = tpu.matmul %321, %322, %cst_180 {dimension_numbers = #tpu.dot_dimension_numbers<[1], [1], [0], [0], [0, 0, 1, 0], [], []>} : vector<16x8xbf16>, vector<16x8xbf16>, vector<16x16xf32> -> vector<16x16xf32>
    %cst_181 = arith.constant dense<0xFF800000> : vector<16xf32>
    %324 = vector.multi_reduction <maximumf>, %323, %cst_181 [1] : vector<16x16xf32> to vector<16xf32>
    %325 = vector.shape_cast %324 : vector<16xf32> to vector<16x1xf32>
    %326 = vector.broadcast %325 : vector<16x1xf32> to vector<16x16xf32>
    %327 = arith.subf %323, %326 : vector<16x16xf32>
    %328 = math.exp %327 : vector<16x16xf32>
    %cst_182 = arith.constant dense<0.000000e+00> : vector<16xf32>
    %329 = vector.multi_reduction <add>, %328, %cst_182 [1] : vector<16x16xf32> to vector<16xf32>
    %330 = vector.shape_cast %329 : vector<16xf32> to vector<16x1xf32>
    %331 = tpu.reciprocal %330 {approx = true} : vector<16x1xf32> -> vector<16x1xf32>
    %332 = vector.broadcast %331 : vector<16x1xf32> to vector<16x16xf32>
    %333 = arith.mulf %328, %332 : vector<16x16xf32>
    %334 = arith.truncf %333 : vector<16x16xf32> to vector<16x16xbf16>
    %335 = arith.truncf %320 : vector<16x8xf32> to vector<16x8xbf16>
    %cst_183 = arith.constant dense<0.000000e+00> : vector<16x8xf32>
    %336 = tpu.matmul %334, %335, %cst_183 {dimension_numbers = #tpu.dot_dimension_numbers<[1], [0], [0], [1], [0, 0, 1, 1], [], []>} : vector<16x16xbf16>, vector<16x8xbf16>, vector<16x8xf32> -> vector<16x8xf32>
    %337 = arith.truncf %336 : vector<16x8xf32> to vector<16x8xbf16>
    %c5_184 = arith.constant 5 : index
    %c0_185 = arith.constant 0 : index
    %c0_186 = arith.constant 0 : index
    %338 = vector.load %arg12[%c5_184, %c0_185, %c0_186] : memref<6x8x48xf32, #tpu.memory_space<vmem>>, vector<1x8x48xf32>
    %339 = vector.shape_cast %338 : vector<1x8x48xf32> to vector<8x48xf32>
    %340 = arith.truncf %339 : vector<8x48xf32> to vector<8x48xbf16>
    %cst_187 = arith.constant dense<0.000000e+00> : vector<16x48xf32>
    %341 = tpu.matmul %337, %340, %cst_187 {dimension_numbers = #tpu.dot_dimension_numbers<[1], [0], [0], [1], [0, 0, 1, 1], [], []>} : vector<16x8xbf16>, vector<8x48xbf16>, vector<16x48xf32> -> vector<16x48xf32>
    %342 = arith.addf %294, %341 : vector<16x48xf32>
    %c0_188 = arith.constant 0 : index
    %c0_189 = arith.constant 0 : index
    %343 = vector.load %arg13[%c0_188, %c0_189] : memref<1x48xf32, #tpu.memory_space<vmem>>, vector<1x48xf32>
    %344 = vector.broadcast %343 : vector<1x48xf32> to vector<16x48xf32>
    %345 = arith.addf %342, %344 : vector<16x48xf32>
    %346 = arith.addf %52, %345 : vector<16x48xf32>
    %cst_190 = arith.constant 2.000000e+00 : f32
    %347 = vector.broadcast %cst_190 : f32 to vector<16x48xf32>
    %348 = arith.mulf %347, %346 : vector<16x48xf32>
    %c0_191 = arith.constant 0 : index
    %c0_192 = arith.constant 0 : index
    %c0_193 = arith.constant 0 : index
    %349 = vector.load %arg14[%c0_191, %c0_192, %c0_193] : memref<1x16x48xf32, #tpu.memory_space<vmem>>, vector<1x16x48xf32>
    %350 = vector.shape_cast %349 : vector<1x16x48xf32> to vector<16x48xf32>
    %351 = vector.shape_cast %348 : vector<16x48xf32> to vector<1x16x48xf32>
    tpu.vector_store %arg14[%c0_191, %c0_192, %c0_193], %351 {strides = array<i32>} : memref<1x16x48xf32, #tpu.memory_space<vmem>>, vector<1x16x48xf32>,
    return
  }
  func.func @transform_0(%arg0: i32) -> (i32, i32, i32) {
    %c0_i32 = arith.constant 0 : i32
    %c0_i32_0 = arith.constant 0 : i32
    %c0_i32_1 = arith.constant 0 : i32
    return %arg0, %c0_i32, %c0_i32_0 : i32, i32, i32
  }
  func.func @transform_1(%arg0: i32) -> (i32, i32) {
    %c0_i32 = arith.constant 0 : i32
    %c0_i32_0 = arith.constant 0 : i32
    %c0_i32_1 = arith.constant 0 : i32
    return %c0_i32, %c0_i32_0 : i32, i32
  }
  func.func @transform_2(%arg0: i32) -> (i32, i32) {
    %c0_i32 = arith.constant 0 : i32
    %c0_i32_0 = arith.constant 0 : i32
    %c0_i32_1 = arith.constant 0 : i32
    return %c0_i32, %c0_i32_0 : i32, i32
  }
  func.func @transform_3(%arg0: i32) -> (i32, i32) {
    %c0_i32 = arith.constant 0 : i32
    %c0_i32_0 = arith.constant 0 : i32
    %c0_i32_1 = arith.constant 0 : i32
    return %c0_i32, %c0_i32_0 : i32, i32
  }
  func.func @transform_4(%arg0: i32) -> (i32, i32) {
    %c0_i32 = arith.constant 0 : i32
    %c0_i32_0 = arith.constant 0 : i32
    %c0_i32_1 = arith.constant 0 : i32
    return %c0_i32, %c0_i32_0 : i32, i32
  }
  func.func @transform_5(%arg0: i32) -> (i32, i32, i32) {
    %c0_i32 = arith.constant 0 : i32
    %c0_i32_0 = arith.constant 0 : i32
    %c0_i32_1 = arith.constant 0 : i32
    %c0_i32_2 = arith.constant 0 : i32
    return %c0_i32, %c0_i32_0, %c0_i32_1 : i32, i32, i32
  }
  func.func @transform_6(%arg0: i32) -> (i32, i32, i32) {
    %c0_i32 = arith.constant 0 : i32
    %c0_i32_0 = arith.constant 0 : i32
    %c0_i32_1 = arith.constant 0 : i32
    %c0_i32_2 = arith.constant 0 : i32
    return %c0_i32, %c0_i32_0, %c0_i32_1 : i32, i32, i32
  }
  func.func @transform_7(%arg0: i32) -> (i32, i32, i32) {
    %c0_i32 = arith.constant 0 : i32
    %c0_i32_0 = arith.constant 0 : i32
    %c0_i32_1 = arith.constant 0 : i32
    %c0_i32_2 = arith.constant 0 : i32
    return %c0_i32, %c0_i32_0, %c0_i32_1 : i32, i32, i32
  }
  func.func @transform_8(%arg0: i32) -> (i32, i32, i32) {
    %c0_i32 = arith.constant 0 : i32
    %c0_i32_0 = arith.constant 0 : i32
    %c0_i32_1 = arith.constant 0 : i32
    %c0_i32_2 = arith.constant 0 : i32
    return %c0_i32, %c0_i32_0, %c0_i32_1 : i32, i32, i32
  }
  func.func @transform_9(%arg0: i32) -> (i32, i32, i32) {
    %c0_i32 = arith.constant 0 : i32
    %c0_i32_0 = arith.constant 0 : i32
    %c0_i32_1 = arith.constant 0 : i32
    %c0_i32_2 = arith.constant 0 : i32
    return %c0_i32, %c0_i32_0, %c0_i32_1 : i32, i32, i32
  }
  func.func @transform_10(%arg0: i32) -> (i32, i32, i32) {
    %c0_i32 = arith.constant 0 : i32
    %c0_i32_0 = arith.constant 0 : i32
    %c0_i32_1 = arith.constant 0 : i32
    %c0_i32_2 = arith.constant 0 : i32
    return %c0_i32, %c0_i32_0, %c0_i32_1 : i32, i32, i32
  }
  func.func @transform_11(%arg0: i32) -> (i32, i32, i32) {
    %c0_i32 = arith.constant 0 : i32
    %c0_i32_0 = arith.constant 0 : i32
    %c0_i32_1 = arith.constant 0 : i32
    %c0_i32_2 = arith.constant 0 : i32
    return %c0_i32, %c0_i32_0, %c0_i32_1 : i32, i32, i32
  }
  func.func @transform_12(%arg0: i32) -> (i32, i32) {
    %c0_i32 = arith.constant 0 : i32
    %c0_i32_0 = arith.constant 0 : i32
    %c0_i32_1 = arith.constant 0 : i32
    return %c0_i32, %c0_i32_0 : i32, i32
  }
  func.func @transform_13(%arg0: i32) -> (i32, i32, i32) {
    %c0_i32 = arith.constant 0 : i32
    %c0_i32_0 = arith.constant 0 : i32
    %c0_i32_1 = arith.constant 0 : i32
    return %arg0, %c0_i32, %c0_i32_0 : i32, i32, i32
  }
}

</mosaic_0001>

<llo_original>
// kernel: tpu_custom_call.1
$region0: #{tpu_custom_call.1}
  #allocation0 [shape = 'u32[]', space=smem, size = 0x4, offset = 0x4, fixed_abs, tag = 'smem constant byte address 0x4 - core index']
  #allocation1 [shape = 'u32[144,128]{1,0:T(1,128)}', space=vmem, size = 0x12000, scoped, tag = 'internal scratch']
  %s0 = inlined_call_operand.vmem [shape: f32[2,22,48], index: 0, kind: input, shape index: {}]
  %s1 = inlined_call_operand.vmem [shape: f32[7,48], index: 1, kind: input, shape index: {}]
  %s2 = inlined_call_operand.vmem [shape: f32[1,48], index: 2, kind: input, shape index: {}]
  %s3 = inlined_call_operand.vmem [shape: f32[48,48], index: 3, kind: input, shape index: {}]
  %s4 = inlined_call_operand.vmem [shape: f32[1,48], index: 4, kind: input, shape index: {}]
  %s5 = inlined_call_operand.vmem [shape: f32[6,48,8], index: 5, kind: input, shape index: {}]
  %s6 = inlined_call_operand.vmem [shape: f32[6,1,8], index: 6, kind: input, shape index: {}]
  %s7 = inlined_call_operand.vmem [shape: f32[6,48,8], index: 7, kind: input, shape index: {}]
  %s8 = inlined_call_operand.vmem [shape: f32[6,1,8], index: 8, kind: input, shape index: {}]
  %s9 = inlined_call_operand.vmem [shape: f32[6,48,8], index: 9, kind: input, shape index: {}]
  %s10 = inlined_call_operand.vmem [shape: f32[6,1,8], index: 10, kind: input, shape index: {}]
  %s11 = inlined_call_operand.vmem [shape: f32[6,8,48], index: 11, kind: input, shape index: {}]
  %s12 = inlined_call_operand.vmem [shape: f32[1,48], index: 12, kind: input, shape index: {}]
  %s13 = inlined_call_operand.hbm [shape: f32[2,16,48], index: 13, kind: output, shape index: {}]
  %s14 = sld [smem:[#allocation0]]
  $region85: #{tpu_custom_call.1} parent=0
    _
  %s16 = ssub.s32 1, %s14
  %s17 = scalar_select 0, %s16, %s14
  $region1: #{tpu_custom_call.1} parent=0
    #allocation2 [shape = 'u8[16384]{0}', space=vmem, size = 0x4000, scoped, tag = 'output window, operand 0']
    #allocation3 [shape = 's32[2]{0}', space=sflag, size = 0x8, scoped, tag = 'scoped memory for tpu_custom_call.1']
    %18 = vsyncpa [#allocation3], 0
    %s19 = scalar_lea.sflag [#allocation3], 1
    %20 = vsyncpa %s19, 0
    loop: start=0, step=1, limit=4
    $region2: #{tpu_custom_call.1} parent=1 // loop_pre_header
      _
    $region3: #{tpu_custom_call.1} parent=1 // loop_header
      %s22 = sphi 0, %s26
      %p23 = scmp.ge.s32.totalorder %s22, 4
      %s32 = sphi 0, %s34
      %s35 = sphi 0, %s32
      %s36 = sphi 0, %s35
      %s52 = sphi 0, %s36
      %s56 = sphi 0, %s56
      %s58 = sphi 0, %s56
      %s59 = sphi 0, %s58
      %s73 = sphi 0, %s59
      %s77 = sphi 0, %s77
      %s79 = sphi 0, %s77
      %s80 = sphi 0, %s79
      %s94 = sphi 0, %s80
      %s98 = sphi 0, %s98
      %s100 = sphi 0, %s98
      %s101 = sphi 0, %s100
      %s115 = sphi 0, %s101
      %s119 = sphi 0, %s119
      %s121 = sphi 0, %s119
      %s122 = sphi 0, %s121
      %s136 = sphi 0, %s122
      %s140 = sphi 0, %s140
      %s142 = sphi 0, %s140
      %s143 = sphi 0, %s142
      %s157 = sphi 0, %s143
      %s161 = sphi 0, %s161
      %s163 = sphi 0, %s161
      %s164 = sphi 0, %s163
      %s178 = sphi 0, %s164
      %s182 = sphi 0, %s182
      %s184 = sphi 0, %s182
      %s185 = sphi 0, %s184
      %s199 = sphi 0, %s185
      %s203 = sphi 0, %s203
      %s205 = sphi 0, %s203
      %s206 = sphi 0, %s205
      %s220 = sphi 0, %s206
      %s224 = sphi 0, %s224
      %s226 = sphi 0, %s224
      %s227 = sphi 0, %s226
      %s241 = sphi 0, %s227
      %s245 = sphi 0, %s245
      %s247 = sphi 0, %s245
      %s248 = sphi 0, %s247
      %s262 = sphi 0, %s248
      %s266 = sphi 0, %s266
      %s268 = sphi 0, %s266
      %s269 = sphi 0, %s268
      %s283 = sphi 0, %s269
      %s287 = sphi 0, %s287
      %s289 = sphi 0, %s287
      %s290 = sphi 0, %s289
      %s304 = sphi 0, %s290
      %s310 = sphi 0, %s312
      %s313 = sphi 0, %s310
      %s314 = sphi 0, %s313
      %s330 = sphi 0, %s314
    $region4: #{tpu_custom_call.1} parent=1 // loop_header_branch
      %25 = sbr.rel (%p23) target = $region8
    $region5: #{tpu_custom_call.1} parent=1 // loop_body
      %s27 = ssub.s32 %s22, 1
      %s28 = ssub.s32 %s22, 2
      %s29 = sadd.s32 %s22, 1
      %s30 = ssub.s32 %s22, %s29
      %p31 = scmp.eq.s32.totalorder %s30, 0
      %s33 = sadd.s32 %s32, 1
      %s34 = scalar_select %p31, %s32, %s33
      %p37 = pneg %p31
      %p38 = scmp.eq.s32.totalorder %s22, 1
      %p39 = por %p37, %p38
      %p40 = scmp.ne.s32.totalorder %s32, %s35
      %p41 = scmp.eq.s32.totalorder %s22, 0
      %p42 = por %p40, %p41
      %p43 = scmp.ne.s32.totalorder %s32, %s35
      %p44 = scmp.eq.s32.totalorder %s27, 1
      %p45 = por %p43, %p44
      %p46 = scmp.ne.s32.totalorder %s35, %s36
      %p47 = scmp.eq.s32.totalorder %s27, 0
      %p48 = por %p46, %p47
      %p49 = scmp.ne.s32.totalorder %s35, %s36
      %p50 = scmp.eq.s32.totalorder %s28, 1
      %p51 = por %p49, %p50
      %p53 = scmp.ne.s32.totalorder %s36, %s52
      %p54 = scmp.eq.s32.totalorder %s28, 0
      %p55 = por %p53, %p54
      %s57 = sadd.s32 %s56, 1
      %p60 = scmp.eq.s32.totalorder %s22, 1
      %p61 = scmp.ne.s32.totalorder %s56, %s58
      %p62 = scmp.eq.s32.totalorder %s22, 0
      %p63 = por %p61, %p62
      %p64 = scmp.ne.s32.totalorder %s56, %s58
      %p65 = scmp.eq.s32.totalorder %s27, 1
      %p66 = por %p64, %p65
      %p67 = scmp.ne.s32.totalorder %s58, %s59
      %p68 = scmp.eq.s32.totalorder %s27, 0
      %p69 = por %p67, %p68
      %p70 = scmp.ne.s32.totalorder %s58, %s59
      %p71 = scmp.eq.s32.totalorder %s28, 1
      %p72 = por %p70, %p71
      %p74 = scmp.ne.s32.totalorder %s59, %s73
      %p75 = scmp.eq.s32.totalorder %s28, 0
      %p76 = por %p74, %p75
      %s78 = sadd.s32 %s77, 1
      %p81 = scmp.eq.s32.totalorder %s22, 1
      %p82 = scmp.ne.s32.totalorder %s77, %s79
      %p83 = scmp.eq.s32.totalorder %s22, 0
      %p84 = por %p82, %p83
      %p85 = scmp.ne.s32.totalorder %s77, %s79
      %p86 = scmp.eq.s32.totalorder %s27, 1
      %p87 = por %p85, %p86
      %p88 = scmp.ne.s32.totalorder %s79, %s80
      %p89 = scmp.eq.s32.totalorder %s27, 0
      %p90 = por %p88, %p89
      %p91 = scmp.ne.s32.totalorder %s79, %s80
      %p92 = scmp.eq.s32.totalorder %s28, 1
      %p93 = por %p91, %p92
      %p95 = scmp.ne.s32.totalorder %s80, %s94
      %p96 = scmp.eq.s32.totalorder %s28, 0
      %p97 = por %p95, %p96
      %s99 = sadd.s32 %s98, 1
      %p102 = scmp.eq.s32.totalorder %s22, 1
      %p103 = scmp.ne.s32.totalorder %s98, %s100
      %p104 = scmp.eq.s32.totalorder %s22, 0
      %p105 = por %p103, %p104
      %p106 = scmp.ne.s32.totalorder %s98, %s100
      %p107 = scmp.eq.s32.totalorder %s27, 1
      %p108 = por %p106, %p107
      %p109 = scmp.ne.s32.totalorder %s100, %s101
      %p110 = scmp.eq.s32.totalorder %s27, 0
      %p111 = por %p109, %p110
      %p112 = scmp.ne.s32.totalorder %s100, %s101
      %p113 = scmp.eq.s32.totalorder %s28, 1
      %p114 = por %p112, %p113
      %p116 = scmp.ne.s32.totalorder %s101, %s115
      %p117 = scmp.eq.s32.totalorder %s28, 0
      %p118 = por %p116, %p117
      %s120 = sadd.s32 %s119, 1
      %p123 = scmp.eq.s32.totalorder %s22, 1
      %p124 = scmp.ne.s32.totalorder %s119, %s121
      %p125 = scmp.eq.s32.totalorder %s22, 0
      %p126 = por %p124, %p125
      %p127 = scmp.ne.s32.totalorder %s119, %s121
      %p128 = scmp.eq.s32.totalorder %s27, 1
      %p129 = por %p127, %p128
      %p130 = scmp.ne.s32.totalorder %s121, %s122
      %p131 = scmp.eq.s32.totalorder %s27, 0
      %p132 = por %p130, %p131
      %p133 = scmp.ne.s32.totalorder %s121, %s122
      %p134 = scmp.eq.s32.totalorder %s28, 1
      %p135 = por %p133, %p134
      %p137 = scmp.ne.s32.totalorder %s122, %s136
      %p138 = scmp.eq.s32.totalorder %s28, 0
      %p139 = por %p137, %p138
      %s141 = sadd.s32 %s140, 1
      %p144 = scmp.eq.s32.totalorder %s22, 1
      %p145 = scmp.ne.s32.totalorder %s140, %s142
      %p146 = scmp.eq.s32.totalorder %s22, 0
      %p147 = por %p145, %p146
      %p148 = scmp.ne.s32.totalorder %s140, %s142
      %p149 = scmp.eq.s32.totalorder %s27, 1
      %p150 = por %p148, %p149
      %p151 = scmp.ne.s32.totalorder %s142, %s143
      %p152 = scmp.eq.s32.totalorder %s27, 0
      %p153 = por %p151, %p152
      %p154 = scmp.ne.s32.totalorder %s142, %s143
      %p155 = scmp.eq.s32.totalorder %s28, 1
      %p156 = por %p154, %p155
      %p158 = scmp.ne.s32.totalorder %s143, %s157
      %p159 = scmp.eq.s32.totalorder %s28, 0
      %p160 = por %p158, %p159
      %s162 = sadd.s32 %s161, 1
      %p165 = scmp.eq.s32.totalorder %s22, 1
      %p166 = scmp.ne.s32.totalorder %s161, %s163
      %p167 = scmp.eq.s32.totalorder %s22, 0
      %p168 = por %p166, %p167
      %p169 = scmp.ne.s32.totalorder %s161, %s163
      %p170 = scmp.eq.s32.totalorder %s27, 1
      %p171 = por %p169, %p170
      %p172 = scmp.ne.s32.totalorder %s163, %s164
      %p173 = scmp.eq.s32.totalorder %s27, 0
      %p174 = por %p172, %p173
      %p175 = scmp.ne.s32.totalorder %s163, %s164
      %p176 = scmp.eq.s32.totalorder %s28, 1
      %p177 = por %p175, %p176
      %p179 = scmp.ne.s32.totalorder %s164, %s178
      %p180 = scmp.eq.s32.totalorder %s28, 0
      %p181 = por %p179, %p180
      %s183 = sadd.s32 %s182, 1
      %p186 = scmp.eq.s32.totalorder %s22, 1
      %p187 = scmp.ne.s32.totalorder %s182, %s184
      %p188 = scmp.eq.s32.totalorder %s22, 0
      %p189 = por %p187, %p188
      %p190 = scmp.ne.s32.totalorder %s182, %s184
      %p191 = scmp.eq.s32.totalorder %s27, 1
      %p192 = por %p190, %p191
      %p193 = scmp.ne.s32.totalorder %s184, %s185
      %p194 = scmp.eq.s32.totalorder %s27, 0
      %p195 = por %p193, %p194
      %p196 = scmp.ne.s32.totalorder %s184, %s185
      %p197 = scmp.eq.s32.totalorder %s28, 1
      %p198 = por %p196, %p197
      %p200 = scmp.ne.s32.totalorder %s185, %s199
      %p201 = scmp.eq.s32.totalorder %s28, 0
      %p202 = por %p200, %p201
      %s204 = sadd.s32 %s203, 1
      %p207 = scmp.eq.s32.totalorder %s22, 1
      %p208 = scmp.ne.s32.totalorder %s203, %s205
      %p209 = scmp.eq.s32.totalorder %s22, 0
      %p210 = por %p208, %p209
      %p211 = scmp.ne.s32.totalorder %s203, %s205
      %p212 = scmp.eq.s32.totalorder %s27, 1
      %p213 = por %p211, %p212
      %p214 = scmp.ne.s32.totalorder %s205, %s206
      %p215 = scmp.eq.s32.totalorder %s27, 0
      %p216 = por %p214, %p215
      %p217 = scmp.ne.s32.totalorder %s205, %s206
      %p218 = scmp.eq.s32.totalorder %s28, 1
      %p219 = por %p217, %p218
      %p221 = scmp.ne.s32.totalorder %s206, %s220
      %p222 = scmp.eq.s32.totalorder %s28, 0
      %p223 = por %p221, %p222
      %s225 = sadd.s32 %s224, 1
      %p228 = scmp.eq.s32.totalorder %s22, 1
      %p229 = scmp.ne.s32.totalorder %s224, %s226
      %p230 = scmp.eq.s32.totalorder %s22, 0
      %p231 = por %p229, %p230
      %p232 = scmp.ne.s32.totalorder %s224, %s226
      %p233 = scmp.eq.s32.totalorder %s27, 1
      %p234 = por %p232, %p233
      %p235 = scmp.ne.s32.totalorder %s226, %s227
      %p236 = scmp.eq.s32.totalorder %s27, 0
      %p237 = por %p235, %p236
      %p238 = scmp.ne.s32.totalorder %s226, %s227
      %p239 = scmp.eq.s32.totalorder %s28, 1
      %p240 = por %p238, %p239
      %p242 = scmp.ne.s32.totalorder %s227, %s241
      %p243 = scmp.eq.s32.totalorder %s28, 0
      %p244 = por %p242, %p243
      %s246 = sadd.s32 %s245, 1
      %p249 = scmp.eq.s32.totalorder %s22, 1
      %p250 = scmp.ne.s32.totalorder %s245, %s247
      %p251 = scmp.eq.s32.totalorder %s22, 0
      %p252 = por %p250, %p251
      %p253 = scmp.ne.s32.totalorder %s245, %s247
      %p254 = scmp.eq.s32.totalorder %s27, 1
      %p255 = por %p253, %p254
      %p256 = scmp.ne.s32.totalorder %s247, %s248
      %p257 = scmp.eq.s32.totalorder %s27, 0
      %p258 = por %p256, %p257
      %p259 = scmp.ne.s32.totalorder %s247, %s248
      %p260 = scmp.eq.s32.totalorder %s28, 1
      %p261 = por %p259, %p260
      %p263 = scmp.ne.s32.totalorder %s248, %s262
      %p264 = scmp.eq.s32.totalorder %s28, 0
      %p265 = por %p263, %p264
      %s267 = sadd.s32 %s266, 1
      %p270 = scmp.eq.s32.totalorder %s22, 1
      %p271 = scmp.ne.s32.totalorder %s266, %s268
      %p272 = scmp.eq.s32.totalorder %s22, 0
      %p273 = por %p271, %p272
      %p274 = scmp.ne.s32.totalorder %s266, %s268
      %p275 = scmp.eq.s32.totalorder %s27, 1
      %p276 = por %p274, %p275
      %p277 = scmp.ne.s32.totalorder %s268, %s269
      %p278 = scmp.eq.s32.totalorder %s27, 0
      %p279 = por %p277, %p278
      %p280 = scmp.ne.s32.totalorder %s268, %s269
      %p281 = scmp.eq.s32.totalorder %s28, 1
      %p282 = por %p280, %p281
      %p284 = scmp.ne.s32.totalorder %s269, %s283
      %p285 = scmp.eq.s32.totalorder %s28, 0
      %p286 = por %p284, %p285
      %s288 = sadd.s32 %s287, 1
      %p291 = scmp.eq.s32.totalorder %s22, 1
      %p292 = scmp.ne.s32.totalorder %s287, %s289
      %p293 = scmp.eq.s32.totalorder %s22, 0
      %p294 = por %p292, %p293
      %p295 = scmp.ne.s32.totalorder %s287, %s289
      %p296 = scmp.eq.s32.totalorder %s27, 1
      %p297 = por %p295, %p296
      %p298 = scmp.ne.s32.totalorder %s289, %s290
      %p299 = scmp.eq.s32.totalorder %s27, 0
      %p300 = por %p298, %p299
      %p301 = scmp.ne.s32.totalorder %s289, %s290
      %p302 = scmp.eq.s32.totalorder %s28, 1
      %p303 = por %p301, %p302
      %p305 = scmp.ne.s32.totalorder %s290, %s304
      %p306 = scmp.eq.s32.totalorder %s28, 0
      %p307 = por %p305, %p306
      %s308 = ssub.s32 %s22, %s29
      %p309 = scmp.eq.s32.totalorder %s308, 0
      %s311 = sadd.s32 %s310, 1
      %s312 = scalar_select %p309, %s310, %s311
      %p315 = pneg %p309
      %p316 = scmp.eq.s32.totalorder %s22, 1
      %p317 = por %p315, %p316
      %p318 = scmp.ne.s32.totalorder %s310, %s313
      %p319 = scmp.eq.s32.totalorder %s22, 0
      %p320 = por %p318, %p319
      %p321 = scmp.ne.s32.totalorder %s310, %s313
      %p322 = scmp.eq.s32.totalorder %s27, 1
      %p323 = por %p321, %p322
      %p324 = scmp.ne.s32.totalorder %s313, %s314
      %p325 = scmp.eq.s32.totalorder %s27, 0
      %p326 = por %p324, %p325
      %p327 = scmp.ne.s32.totalorder %s313, %s314
      %p328 = scmp.eq.s32.totalorder %s28, 1
      %p329 = por %p327, %p328
      %p331 = scmp.ne.s32.totalorder %s314, %s330
      %p332 = scmp.eq.s32.totalorder %s28, 0
      %p333 = por %p331, %p332
      %p334 = scmp.le.s32.totalorder 1, %s22
      %p335 = scmp.lt.s32.totalorder %s22, 3
      %p336 = pnand %p334, %p335
      %p337 = pneg %p336
      // Predicated region
      $region9: #{tpu_custom_call.1} parent=5 // pred_check
        _
      $region10: #{tpu_custom_call.1} parent=5 // pred_check_branch
        %339 = sbr.rel (%p336) target = $region12
      $region11: #{tpu_custom_call.1} parent=5 // pred_region
        %s340 = ssub.s32 %s22, 1
        // Predicated region
        $region13: #{tpu_custom_call.1} parent=11 // pred_check
          %p341 = pneg %p69
        $region14: #{tpu_custom_call.1} parent=11 // pred_check_branch
          %343 = sbr.rel (%p341) target = $region16
        $region15: #{tpu_custom_call.1} parent=11 // pred_region
          _
        $region16: #{tpu_custom_call.1} parent=11 // pred_fallthru
          _
        // Predicated region
        $region17: #{tpu_custom_call.1} parent=11 // pred_check
          %p344 = pneg %p90
        $region18: #{tpu_custom_call.1} parent=11 // pred_check_branch
          %346 = sbr.rel (%p344) target = $region20
        $region19: #{tpu_custom_call.1} parent=11 // pred_region
          _
        $region20: #{tpu_custom_call.1} parent=11 // pred_fallthru
          _
        // Predicated region
        $region21: #{tpu_custom_call.1} parent=11 // pred_check
          %p347 = pneg %p111
        $region22: #{tpu_custom_call.1} parent=11 // pred_check_branch
          %349 = sbr.rel (%p347) target = $region24
        $region23: #{tpu_custom_call.1} parent=11 // pred_region
          _
        $region24: #{tpu_custom_call.1} parent=11 // pred_fallthru
          _
        // Predicated region
        $region25: #{tpu_custom_call.1} parent=11 // pred_check
          %p350 = pneg %p132
        $region26: #{tpu_custom_call.1} parent=11 // pred_check_branch
          %352 = sbr.rel (%p350) target = $region28
        $region27: #{tpu_custom_call.1} parent=11 // pred_region
          _
        $region28: #{tpu_custom_call.1} parent=11 // pred_fallthru
          _
        // Predicated region
        $region29: #{tpu_custom_call.1} parent=11 // pred_check
          %p353 = pneg %p153
        $region30: #{tpu_custom_call.1} parent=11 // pred_check_branch
          %355 = sbr.rel (%p353) target = $region32
        $region31: #{tpu_custom_call.1} parent=11 // pred_region
          _
        $region32: #{tpu_custom_call.1} parent=11 // pred_fallthru
          _
        // Predicated region
        $region33: #{tpu_custom_call.1} parent=11 // pred_check
          %p356 = pneg %p174
        $region34: #{tpu_custom_call.1} parent=11 // pred_check_branch
          %358 = sbr.rel (%p356) target = $region36
        $region35: #{tpu_custom_call.1} parent=11 // pred_region
          _
        $region36: #{tpu_custom_call.1} parent=11 // pred_fallthru
          _
        // Predicated region
        $region37: #{tpu_custom_call.1} parent=11 // pred_check
          %p359 = pneg %p195
        $region38: #{tpu_custom_call.1} parent=11 // pred_check_branch
          %361 = sbr.rel (%p359) target = $region40
        $region39: #{tpu_custom_call.1} parent=11 // pred_region
          _
        $region40: #{tpu_custom_call.1} parent=11 // pred_fallthru
          _
        // Predicated region
        $region41: #{tpu_custom_call.1} parent=11 // pred_check
          %p362 = pneg %p216
        $region42: #{tpu_custom_call.1} parent=11 // pred_check_branch
          %364 = sbr.rel (%p362) target = $region44
        $region43: #{tpu_custom_call.1} parent=11 // pred_region
          _
        $region44: #{tpu_custom_call.1} parent=11 // pred_fallthru
          _
        // Predicated region
        $region45: #{tpu_custom_call.1} parent=11 // pred_check
          %p365 = pneg %p237
        $region46: #{tpu_custom_call.1} parent=11 // pred_check_branch
          %367 = sbr.rel (%p365) target = $region48
        $region47: #{tpu_custom_call.1} parent=11 // pred_region
          _
        $region48: #{tpu_custom_call.1} parent=11 // pred_fallthru
          _
        // Predicated region
        $region49: #{tpu_custom_call.1} parent=11 // pred_check
          %p368 = pneg %p258
        $region50: #{tpu_custom_call.1} parent=11 // pred_check_branch
          %370 = sbr.rel (%p368) target = $region52
        $region51: #{tpu_custom_call.1} parent=11 // pred_region
          _
        $region52: #{tpu_custom_call.1} parent=11 // pred_fallthru
          _
        // Predicated region
        $region53: #{tpu_custom_call.1} parent=11 // pred_check
          %p371 = pneg %p279
        $region54: #{tpu_custom_call.1} parent=11 // pred_check_branch
          %373 = sbr.rel (%p371) target = $region56
        $region55: #{tpu_custom_call.1} parent=11 // pred_region
          _
        $region56: #{tpu_custom_call.1} parent=11 // pred_fallthru
          _
        // Predicated region
        $region57: #{tpu_custom_call.1} parent=11 // pred_check
          %p374 = pneg %p300
        $region58: #{tpu_custom_call.1} parent=11 // pred_check_branch
          %376 = sbr.rel (%p374) target = $region60
        $region59: #{tpu_custom_call.1} parent=11 // pred_region
          _
        $region60: #{tpu_custom_call.1} parent=11 // pred_fallthru
          _
      $region12: #{tpu_custom_call.1} parent=5 // pred_fallthru
        _
      %p377 = scmp.lt.s32.totalorder %s22, 2
      // Predicated region
      $region61: #{tpu_custom_call.1} parent=5 // pred_check
        %p378 = pneg %p377
      $region62: #{tpu_custom_call.1} parent=5 // pred_check_branch
        %380 = sbr.rel (%p378) target = $region64
      $region63: #{tpu_custom_call.1} parent=5 // pred_region
        // Predicated region
        $region65: #{tpu_custom_call.1} parent=63 // pred_check
          %p381 = pneg %p42
        $region66: #{tpu_custom_call.1} parent=63 // pred_check_branch
          %383 = sbr.rel (%p381) target = $region68
        $region67: #{tpu_custom_call.1} parent=63 // pred_region
          %p384 = scmp.lt.s32.totalorder %s22, 1
          %s385 = scalar_select %p384, %s22, 1
          %s386 = smul.addr %s385, 3
          %s387 = smul.addr %s386, 8
          %s388 = scalar_lea.vmem %s0, %s387
        $region68: #{tpu_custom_call.1} parent=63 // pred_fallthru
          _
      $region64: #{tpu_custom_call.1} parent=5 // pred_fallthru
        _
      %p389 = scmp.le.s32.totalorder 1, %s22
      %p390 = scmp.lt.s32.totalorder %s22, 3
      %p391 = pnand %p389, %p390
      %p392 = pneg %p391
      // Predicated region
      $region69: #{tpu_custom_call.1} parent=5 // pred_check
        _
      $region70: #{tpu_custom_call.1} parent=5 // pred_check_branch
        %394 = sbr.rel (%p391) target = $region72
      $region71: #{tpu_custom_call.1} parent=5 // pred_region
        %s395 = ssub.s32 %s22, 1
        %p396 = scmp.lt.s32.totalorder %s27, 1
        %s397 = scalar_select %p396, %s27, 1
        %s398 = smul.addr %s397, 3
        %s399 = smul.addr %s398, 8
        %s400 = scalar_lea.vmem %s0, %s399
        %p401 = pneg %p48
        %p402 = pneg %p45
        %p403 = pneg %p69
        %p404 = pneg %p66
        %p405 = pneg %p90
        %p406 = pneg %p87
        %p407 = pneg %p111
        %p408 = pneg %p108
        %p409 = pneg %p132
        %p410 = pneg %p129
        %p411 = pneg %p153
        %p412 = pneg %p150
        %p413 = pneg %p174
        %p414 = pneg %p171
        %p415 = pneg %p195
        %p416 = pneg %p192
        %p417 = pneg %p216
        %p418 = pneg %p213
        %p419 = pneg %p237
        %p420 = pneg %p234
        %p421 = pneg %p258
        %p422 = pneg %p255
        %p423 = pneg %p279
        %p424 = pneg %p276
        %p425 = pneg %p300
        %p426 = pneg %p297
        %p427 = pneg %p326
        %p428 = pneg %p323
        %s429 = sand.u32 %s313, 1
        %s430 = scalar_lea.sflag [#allocation3], %s429
        %s431 = sand.u32 %s313, 1
        %s432 = smul.addr %s431, 16
        %s433 = scalar_lea.vmem [#allocation2], %s432
        %p434 = scmp.lt.s32.totalorder %s27, 1
        %s435 = scalar_select %p434, %s27, 1
        %s436 = smul.addr %s435, 3
        %s437 = smul.addr %s436, 8
        %s438 = scalar_lea.vmem %s0, %s437
        %v440 = vld [vmem:[%s438] sm:$0xff]
        %v441 = vld [vmem:[%s438 + $0x8] sm:$0xff]
        %v442 = vld [vmem:[%s438 + $0x10] sm:$0x3f]
        %v443 = vld [vmem:[%s1] sm:$0x7f]
        %v444 = vlaneseq
        %v445 = vshrl.u32 %v444, 7
        %v446 = vsub.s32 0, %v445
        %v447 = vrot.slane %v443, %v446
        %v448 = vmul.f32 %v440, %v447
        %v449 = vmul.f32 %v441, %v447
        %v450 = vadd.f32 %v448, 0.0
        %v451 = vadd.f32 %v449, 0.0
        %v452 = vlaneseq
        %v453 = vshrl.u32 %v452, 7
        %v454 = vsub.s32 1, %v453
        %v455 = vrot.slane %v443, %v454
        %v456 = vmul.f32 %v440, %v455
        %v457 = vmul.f32 %v441, %v455
        %v458 = vmul.f32 %v442, %v455
        %vm462 = vcmask 1046528
        %v463 = vrot.slane %v456, 1
        %v464 = vrot.slane %v457, 1
        %v465 = vsel %vm462, %v463, %v464
        %v466 = vrot.slane %v458, 1
        %v467 = vsel %vm462, %v464, %v466
        %v470 = vadd.f32 %v450, %v465
        %v471 = vadd.f32 %v451, %v467
        %v472 = vlaneseq
        %v473 = vshrl.u32 %v472, 7
        %v474 = vsub.s32 2, %v473
        %v475 = vrot.slane %v443, %v474
        %v476 = vmul.f32 %v440, %v475
        %v477 = vmul.f32 %v441, %v475
        %v478 = vmul.f32 %v442, %v475
        %vm482 = vcmask 1045504
        %v483 = vrot.slane %v476, 2
        %v484 = vrot.slane %v477, 2
        %v485 = vsel %vm482, %v483, %v484
        %v486 = vrot.slane %v478, 2
        %v487 = vsel %vm482, %v484, %v486
        %v490 = vadd.f32 %v470, %v485
        %v491 = vadd.f32 %v471, %v487
        %v492 = vlaneseq
        %v493 = vshrl.u32 %v492, 7
        %v494 = vsub.s32 3, %v493
        %v495 = vrot.slane %v443, %v494
        %v496 = vmul.f32 %v440, %v495
        %v497 = vmul.f32 %v441, %v495
        %v498 = vmul.f32 %v442, %v495
        %vm502 = vcmask 1044480
        %v503 = vrot.slane %v496, 3
        %v504 = vrot.slane %v497, 3
        %v505 = vsel %vm502, %v503, %v504
        %v506 = vrot.slane %v498, 3
        %v507 = vsel %vm502, %v504, %v506
        %v510 = vadd.f32 %v490, %v505
        %v511 = vadd.f32 %v491, %v507
        %v512 = vlaneseq
        %v513 = vshrl.u32 %v512, 7
        %v514 = vsub.s32 4, %v513
        %v515 = vrot.slane %v443, %v514
        %v516 = vmul.f32 %v440, %v515
        %v517 = vmul.f32 %v441, %v515
        %v518 = vmul.f32 %v442, %v515
        %vm522 = vcmask 1043456
        %v523 = vrot.slane %v516, 4
        %v524 = vrot.slane %v517, 4
        %v525 = vsel %vm522, %v523, %v524
        %v526 = vrot.slane %v518, 4
        %v527 = vsel %vm522, %v524, %v526
        %v530 = vadd.f32 %v510, %v525
        %v531 = vadd.f32 %v511, %v527
        %v532 = vlaneseq
        %v533 = vshrl.u32 %v532, 7
        %v534 = vsub.s32 5, %v533
        %v535 = vrot.slane %v443, %v534
        %v536 = vmul.f32 %v440, %v535
        %v537 = vmul.f32 %v441, %v535
        %v538 = vmul.f32 %v442, %v535
        %vm542 = vcmask 1042432
        %v543 = vrot.slane %v536, 5
        %v544 = vrot.slane %v537, 5
        %v545 = vsel %vm542, %v543, %v544
        %v546 = vrot.slane %v538, 5
        %v547 = vsel %vm542, %v544, %v546
        %v550 = vadd.f32 %v530, %v545
        %v551 = vadd.f32 %v531, %v547
        %v552 = vlaneseq
        %v553 = vshrl.u32 %v552, 7
        %v554 = vsub.s32 6, %v553
        %v555 = vrot.slane %v443, %v554
        %v556 = vmul.f32 %v440, %v555
        %v557 = vmul.f32 %v441, %v555
        %v558 = vmul.f32 %v442, %v555
        %vm562 = vcmask 1041408
        %v563 = vrot.slane %v556, 6
        %v564 = vrot.slane %v557, 6
        %v565 = vsel %vm562, %v563, %v564
        %v566 = vrot.slane %v558, 6
        %v567 = vsel %vm562, %v564, %v566
        %v570 = vadd.f32 %v550, %v565
        %v571 = vadd.f32 %v551, %v567
        %v572 = vld [vmem:[%s2] sm:$0x1]
        %v574 = vlaneseq
        %v575 = vshrl.u32 %v574, 7
        %v576 = vsub.s32 0, %v575
        %v577 = vrot.slane %v572, %v576
        %v579 = vadd.f32 %v570, %v577
        %v580 = vadd.f32 %v571, %v577
        %v581 = vpack.c.bf16 %v580, %v579
        %v582 = vld [vmem:[%s3] sm:$0xff]
        %v583 = vld [vmem:[%s3 + $0x8] sm:$0xff]
        %v584 = vld [vmem:[%s3 + $0x10] sm:$0xff]
        %v585 = vld [vmem:[%s3 + $0x18] sm:$0xff]
        %v586 = vld [vmem:[%s3 + $0x20] sm:$0xff]
        %v587 = vld [vmem:[%s3 + $0x28] sm:$0xff]
        %v588 = vpack.c.bf16 %v583, %v582
        %v589 = vpack.c.bf16 %v585, %v584
        %v590 = vpack.c.bf16 %v587, %v586
        %v591 = vld [vmem:[%s4] sm:$0x1]
        %v593 = vlaneseq
        %v594 = vshrl.u32 %v593, 7
        %v595 = vsub.s32 0, %v594
        %v596 = vrot.slane %v591, %v595
        %vm598 = vcmask 392192
        %v600 = vsel %vm598, %v581, 0
        %602 = vmatprep.subr.bf16.mxu0 0
        %603 = vmatpush1.bf16.msra.mxu0 0
        %604 = vmatprep.subr.bf16.mxu0 0
        %605 = vmatpush1.bf16.msra.mxu0 0
        %606 = vmatprep.subr.bf16.mxu0 0
        %607 = vmatpush1.bf16.msra.mxu0 0
        %608 = vmatprep.subr.bf16.mxu0 0
        %609 = vmatpush1.bf16.msra.mxu0 0
        %610 = vmatprep.subr.bf16.mxu0 0
        %611 = vmatpush1.bf16.msra.mxu0 0
        %612 = vmatprep.subr.bf16.mxu0 0
        %613 = vmatpush1.bf16.msra.mxu0 %v590
        %614 = vmatprep.subr.bf16.mxu0 0
        %615 = vmatpush1.bf16.msra.mxu0 %v589
        %616 = vmatprep.subr.bf16.mxu0 0
        %617 = vmatpush1.bf16.msra.mxu0 %v588
        %618 = vmatprep.subr.bf16.mxu0 0
        %619 = vmatpush2.bf16.msra.mxu0 0
        %620 = vmatprep.subr.bf16.mxu0 0
        %621 = vmatpush2.bf16.msra.mxu0 0
        %622 = vmatprep.subr.bf16.mxu0 0
        %623 = vmatpush2.bf16.msra.mxu0 0
        %624 = vmatprep.subr.bf16.mxu0 0
        %625 = vmatpush2.bf16.msra.mxu0 0
        %626 = vmatprep.subr.bf16.mxu0 0
        %627 = vmatpush2.bf16.msra.mxu0 0
        %628 = vmatprep.subr.bf16.mxu0 0
        %629 = vmatpush2.bf16.msra.mxu0 0
        %630 = vmatprep.subr.bf16.mxu0 0
        %631 = vmatpush2.bf16.msra.mxu0 0
        %632 = vmatprep.subr.bf16.mxu0 0
        %633 = vmatpush2.bf16.msra.mxu0 0
        %634 = vmatprep.mubr.bf16.mxu0 0
        %635 = vmatmul.mubr.bf16.gmra.mxu0 %v600
        %v636 = vpop.f32.mrf.mxu0
        %v637 = vadd.f32 %v596, %v636
        %v638 = vpop.f32.mrf.mxu0
        %v639 = vpop.f32.mrf.mxu0
        %v640 = vadd.f32 %v596, %v639
        %v641 = vpop.f32.mrf.mxu0
        %642 = vdwg.mxu0
        %v645 = vrot.slane %v637, 5
        %v646 = vrot.slane %v640, 5
        %v647 = vsel %vm542, %v645, %v646
        %v651 = vadd.f32 %v440, %v645
        %v652 = vadd.f32 %v441, %v647
        %v653 = vadd.f32 %v442, %v646
        %v654 = vmax.f32 %v651, 0.0
        %v655 = vmax.f32 %v652, 0.0
        %v656 = vmax.f32 %v653, 0.0
        %v657 = vpack.c.bf16 %v655, %v654
        %v658 = vpack.c.bf16 %v656, %v656
        %v659 = vld [vmem:[%s5] sm:$0xff]
        %v660 = vld [vmem:[%s5 + $0x8] sm:$0xff]
        %v661 = vld [vmem:[%s5 + $0x10] sm:$0xff]
        %v662 = vld [vmem:[%s5 + $0x18] sm:$0xff]
        %v663 = vld [vmem:[%s5 + $0x20] sm:$0xff]
        %v664 = vld [vmem:[%s5 + $0x28] sm:$0xff]
        %v665 = vpack.c.bf16 %v660, %v659
        %v666 = vpack.c.bf16 %v662, %v661
        %v667 = vpack.c.bf16 %v664, %v663
        %v668 = vld [vmem:[%s6] sm:$0x1]
        %v670 = vlaneseq
        %v671 = vshrl.u32 %v670, 7
        %v672 = vsub.s32 0, %v671
        %v673 = vrot.slane %v668, %v672
        %vm675 = vsmask.f32 6400
        %v677 = vshrl.u32 %v657, 16
        %v679 = vrot.slane %v677, 1
        %v680 = vshll.u32 %v657, 16
        %v682 = vrot.slane %v680, 2
        %v683 = vor.u32 %v679, %v682
        %v685 = vshrl.u32 %v658, 16
        %v687 = vrot.slane %v685, 1
        %v688 = vshll.u32 %v658, 16
        %v690 = vrot.slane %v688, 2
        %v691 = vor.u32 %v687, %v690
        %v692 = vsel %vm675, %v683, %v691
        %v694 = vsel %vm598, %v692, 0
        %696 = vmatprep.subr.bf16.mxu0 0
        %697 = vmatpush1.bf16.msra.mxu0 0
        %698 = vmatprep.subr.bf16.mxu0 0
        %699 = vmatpush1.bf16.msra.mxu0 0
        %700 = vmatprep.subr.bf16.mxu0 0
        %701 = vmatpush1.bf16.msra.mxu0 0
        %702 = vmatprep.subr.bf16.mxu0 0
        %703 = vmatpush1.bf16.msra.mxu0 0
        %704 = vmatprep.subr.bf16.mxu0 0
        %705 = vmatpush1.bf16.msra.mxu0 0
        %706 = vmatprep.subr.bf16.mxu0 0
        %707 = vmatpush1.bf16.msra.mxu0 %v667
        %708 = vmatprep.subr.bf16.mxu0 0
        %709 = vmatpush1.bf16.msra.mxu0 %v666
        %710 = vmatprep.subr.bf16.mxu0 0
        %711 = vmatpush1.bf16.msra.mxu0 %v665
        %712 = vmatprep.subr.bf16.mxu0 0
        %713 = vmatpush2.bf16.msra.mxu0 0
        %714 = vmatprep.subr.bf16.mxu0 0
        %715 = vmatpush2.bf16.msra.mxu0 0
        %716 = vmatprep.subr.bf16.mxu0 0
        %717 = vmatpush2.bf16.msra.mxu0 0
        %718 = vmatprep.subr.bf16.mxu0 0
        %719 = vmatpush2.bf16.msra.mxu0 0
        %720 = vmatprep.subr.bf16.mxu0 0
        %721 = vmatpush2.bf16.msra.mxu0 0
        %722 = vmatprep.subr.bf16.mxu0 0
        %723 = vmatpush2.bf16.msra.mxu0 0
        %724 = vmatprep.subr.bf16.mxu0 0
        %725 = vmatpush2.bf16.msra.mxu0 0
        %726 = vmatprep.subr.bf16.mxu0 0
        %727 = vmatpush2.bf16.msra.mxu0 0
        %728 = vmatprep.mubr.bf16.mxu0 0
        %729 = vmatmul.mubr.bf16.gmra.mxu0 %v694
        %v730 = vpop.f32.mrf.mxu0
        %v731 = vadd.f32 %v673, %v730
        %v732 = vpop.f32.mrf.mxu0
        %v733 = vpop.f32.mrf.mxu0
        %v734 = vadd.f32 %v673, %v733
        %v735 = vpop.f32.mrf.mxu0
        %736 = vdwg.mxu0
        %v737 = vmul.f32 %v731, 0.35355338
        %v738 = vmul.f32 %v734, 0.35355338
        %v739 = vld [vmem:[%s7] sm:$0xff]
        %v740 = vld [vmem:[%s7 + $0x8] sm:$0xff]
        %v741 = vld [vmem:[%s7 + $0x10] sm:$0xff]
        %v742 = vld [vmem:[%s7 + $0x18] sm:$0xff]
        %v743 = vld [vmem:[%s7 + $0x20] sm:$0xff]
        %v744 = vld [vmem:[%s7 + $0x28] sm:$0xff]
        %v745 = vpack.c.bf16 %v740, %v739
        %v746 = vpack.c.bf16 %v742, %v741
        %v747 = vpack.c.bf16 %v744, %v743
        %v748 = vld [vmem:[%s8] sm:$0x1]
        %v750 = vlaneseq
        %v751 = vshrl.u32 %v750, 7
        %v752 = vsub.s32 0, %v751
        %v753 = vrot.slane %v748, %v752
        %755 = vmatprep.subr.bf16.mxu0 0
        %756 = vmatpush1.bf16.msra.mxu0 0
        %757 = vmatprep.subr.bf16.mxu0 0
        %758 = vmatpush1.bf16.msra.mxu0 0
        %759 = vmatprep.subr.bf16.mxu0 0
        %760 = vmatpush1.bf16.msra.mxu0 0
        %761 = vmatprep.subr.bf16.mxu0 0
        %762 = vmatpush1.bf16.msra.mxu0 0
        %763 = vmatprep.subr.bf16.mxu0 0
        %764 = vmatpush1.bf16.msra.mxu0 0
        %765 = vmatprep.subr.bf16.mxu0 0
        %766 = vmatpush1.bf16.msra.mxu0 %v747
        %767 = vmatprep.subr.bf16.mxu0 0
        %768 = vmatpush1.bf16.msra.mxu0 %v746
        %769 = vmatprep.subr.bf16.mxu0 0
        %770 = vmatpush1.bf16.msra.mxu0 %v745
        %771 = vmatprep.subr.bf16.mxu0 0
        %772 = vmatpush2.bf16.msra.mxu0 0
        %773 = vmatprep.subr.bf16.mxu0 0
        %774 = vmatpush2.bf16.msra.mxu0 0
        %775 = vmatprep.subr.bf16.mxu0 0
        %776 = vmatpush2.bf16.msra.mxu0 0
        %777 = vmatprep.subr.bf16.mxu0 0
        %778 = vmatpush2.bf16.msra.mxu0 0
        %779 = vmatprep.subr.bf16.mxu0 0
        %780 = vmatpush2.bf16.msra.mxu0 0
        %781 = vmatprep.subr.bf16.mxu0 0
        %782 = vmatpush2.bf16.msra.mxu0 0
        %783 = vmatprep.subr.bf16.mxu0 0
        %784 = vmatpush2.bf16.msra.mxu0 0
        %785 = vmatprep.subr.bf16.mxu0 0
        %786 = vmatpush2.bf16.msra.mxu0 0
        %787 = vmatprep.mubr.bf16.mxu0 0
        %788 = vmatmul.mubr.bf16.gmra.mxu0 %v694
        %v789 = vpop.f32.mrf.mxu0
        %v790 = vadd.f32 %v753, %v789
        %v791 = vpop.f32.mrf.mxu0
        %v792 = vpop.f32.mrf.mxu0
        %v793 = vadd.f32 %v753, %v792
        %v794 = vpop.f32.mrf.mxu0
        %795 = vdwg.mxu0
        %v796 = vld [vmem:[%s9] sm:$0xff]
        %v797 = vld [vmem:[%s9 + $0x8] sm:$0xff]
        %v798 = vld [vmem:[%s9 + $0x10] sm:$0xff]
        %v799 = vld [vmem:[%s9 + $0x18] sm:$0xff]
        %v800 = vld [vmem:[%s9 + $0x20] sm:$0xff]
        %v801 = vld [vmem:[%s9 + $0x28] sm:$0xff]
        %v802 = vpack.c.bf16 %v797, %v796
        %v803 = vpack.c.bf16 %v799, %v798
        %v804 = vpack.c.bf16 %v801, %v800
        %v805 = vld [vmem:[%s10] sm:$0x1]
        %v807 = vlaneseq
        %v808 = vshrl.u32 %v807, 7
        %v809 = vsub.s32 0, %v808
        %v810 = vrot.slane %v805, %v809
        %812 = vmatprep.subr.bf16.mxu0 0
        %813 = vmatpush1.bf16.msra.mxu0 0
        %814 = vmatprep.subr.bf16.mxu0 0
        %815 = vmatpush1.bf16.msra.mxu0 0
        %816 = vmatprep.subr.bf16.mxu0 0
        %817 = vmatpush1.bf16.msra.mxu0 0
        %818 = vmatprep.subr.bf16.mxu0 0
        %819 = vmatpush1.bf16.msra.mxu0 0
        %820 = vmatprep.subr.bf16.mxu0 0
        %821 = vmatpush1.bf16.msra.mxu0 0
        %822 = vmatprep.subr.bf16.mxu0 0
        %823 = vmatpush1.bf16.msra.mxu0 %v804
        %824 = vmatprep.subr.bf16.mxu0 0
        %825 = vmatpush1.bf16.msra.mxu0 %v803
        %826 = vmatprep.subr.bf16.mxu0 0
        %827 = vmatpush1.bf16.msra.mxu0 %v802
        %828 = vmatprep.subr.bf16.mxu0 0
        %829 = vmatpush2.bf16.msra.mxu0 0
        %830 = vmatprep.subr.bf16.mxu0 0
        %831 = vmatpush2.bf16.msra.mxu0 0
        %832 = vmatprep.subr.bf16.mxu0 0
        %833 = vmatpush2.bf16.msra.mxu0 0
        %834 = vmatprep.subr.bf16.mxu0 0
        %835 = vmatpush2.bf16.msra.mxu0 0
        %836 = vmatprep.subr.bf16.mxu0 0
        %837 = vmatpush2.bf16.msra.mxu0 0
        %838 = vmatprep.subr.bf16.mxu0 0
        %839 = vmatpush2.bf16.msra.mxu0 0
        %840 = vmatprep.subr.bf16.mxu0 0
        %841 = vmatpush2.bf16.msra.mxu0 0
        %842 = vmatprep.subr.bf16.mxu0 0
        %843 = vmatpush2.bf16.msra.mxu0 0
        %844 = vmatprep.mubr.bf16.mxu0 0
        %845 = vmatmul.mubr.bf16.gmra.mxu0 %v694
        %v846 = vpop.f32.mrf.mxu0
        %v847 = vadd.f32 %v810, %v846
        %v848 = vpop.f32.mrf.mxu0
        %v849 = vpop.f32.mrf.mxu0
        %v850 = vadd.f32 %v810, %v849
        %v851 = vpop.f32.mrf.mxu0
        %852 = vdwg.mxu0
        %v853 = vpack.c.bf16 %v738, %v737
        %v854 = vpack.c.bf16 %v793, %v790
        %vm855 = vcmask 64512
        %v857 = vsel %vm855, %v853, 0
        %v860 = vsel %vm855, %v854, 0
        %862 = vmatprep.subr.bf16.mxu0 0
        %863 = vmatpush1.bf16.xpose.msra.mxu0 0
        %864 = vmatprep.subr.bf16.mxu0 0
        %865 = vmatpush1.bf16.xpose.msra.mxu0 0
        %866 = vmatprep.subr.bf16.mxu0 0
        %867 = vmatpush1.bf16.xpose.msra.mxu0 0
        %868 = vmatprep.subr.bf16.mxu0 0
        %869 = vmatpush1.bf16.xpose.msra.mxu0 0
        %870 = vmatprep.subr.bf16.mxu0 0
        %871 = vmatpush1.bf16.xpose.msra.mxu0 0
        %872 = vmatprep.subr.bf16.mxu0 0
        %873 = vmatpush1.bf16.xpose.msra.mxu0 0
        %874 = vmatprep.subr.bf16.mxu0 0
        %875 = vmatpush1.bf16.xpose.msra.mxu0 0
        %876 = vmatprep.subr.bf16.mxu0 0
        %877 = vmatpush1.bf16.xpose.msra.mxu0 %v860
        %878 = vmatprep.subr.bf16.mxu0 0
        %879 = vmatpush2.bf16.xpose.msra.mxu0 0
        %880 = vmatprep.subr.bf16.mxu0 0
        %881 = vmatpush2.bf16.xpose.msra.mxu0 0
        %882 = vmatprep.subr.bf16.mxu0 0
        %883 = vmatpush2.bf16.xpose.msra.mxu0 0
        %884 = vmatprep.subr.bf16.mxu0 0
        %885 = vmatpush2.bf16.xpose.msra.mxu0 0
        %886 = vmatprep.subr.bf16.mxu0 0
        %887 = vmatpush2.bf16.xpose.msra.mxu0 0
        %888 = vmatprep.subr.bf16.mxu0 0
        %889 = vmatpush2.bf16.xpose.msra.mxu0 0
        %890 = vmatprep.subr.bf16.mxu0 0
        %891 = vmatpush2.bf16.xpose.msra.mxu0 0
        %892 = vmatprep.subr.bf16.mxu0 0
        %893 = vmatpush2.bf16.xpose.msra.mxu0 0
        %894 = vmatprep.mubr.bf16.mxu0 0
        %895 = vmatmul.mubr.bf16.gmra.mxu0 %v857
        %v896 = vpop.f32.mrf.mxu0
        %v897 = vadd.f32 0.0, %v896
        %v898 = vpop.f32.mrf.mxu0
        %v899 = vpop.f32.mrf.mxu0
        %v900 = vadd.f32 0.0, %v899
        %v901 = vpop.f32.mrf.mxu0
        %902 = vdwg.mxu0
        %vm903 = vcmask 130048
        %v904 = vsel %vm903, %v897, -inf
        %905 = vmax.xlane.f32.xlu0 %v904
        %v906 = vpop.xlane.xlu0 %905
        %v907 = vsel %vm903, %v900, -inf
        %908 = vmax.xlane.f32.xlu0 %v907
        %v909 = vpop.xlane.xlu0 %908
        %v910 = vsub.f32 %v897, %v906
        %v911 = vsub.f32 %v900, %v909
        %v912 = vmul.f32 %v910, 1.442695
        %v913 = vpow.pop %v912
        %v914 = vmul.f32 %v911, 1.442695
        %v915 = vpow.pop %v914
        %v916 = vsel %vm903, %v913, 0.0
        %917 = vadd.xlane.f32.xlu0 %v916
        %v918 = vpop.xlane.xlu0 %917
        %v919 = vsel %vm903, %v915, 0.0
        %920 = vadd.xlane.f32.xlu0 %v919
        %v921 = vpop.xlane.xlu0 %920
        %v922 = vrcp.pop %v918
        %v923 = vrcp.pop %v921
        %v924 = vmul.f32 %v913, %v922
        %v925 = vmul.f32 %v915, %v923
        %v926 = vpack.c.bf16 %v925, %v924
        %v927 = vpack.c.bf16 %v850, %v847
        %v929 = vsel %vm903, %v926, 0
        %931 = vmatprep.subr.bf16.mxu0 0
        %932 = vmatpush1.bf16.msra.mxu0 0
        %933 = vmatprep.subr.bf16.mxu0 0
        %934 = vmatpush1.bf16.msra.mxu0 0
        %935 = vmatprep.subr.bf16.mxu0 0
        %936 = vmatpush1.bf16.msra.mxu0 0
        %937 = vmatprep.subr.bf16.mxu0 0
        %938 = vmatpush1.bf16.msra.mxu0 0
        %939 = vmatprep.subr.bf16.mxu0 0
        %940 = vmatpush1.bf16.msra.mxu0 0
        %941 = vmatprep.subr.bf16.mxu0 0
        %942 = vmatpush1.bf16.msra.mxu0 0
        %943 = vmatprep.subr.bf16.mxu0 0
        %944 = vmatpush1.bf16.msra.mxu0 0
        %945 = vmatprep.subr.bf16.mxu0 0
        %946 = vmatpush1.bf16.msra.mxu0 %v927
        %947 = vmatprep.subr.bf16.mxu0 0
        %948 = vmatpush2.bf16.msra.mxu0 0
        %949 = vmatprep.subr.bf16.mxu0 0
        %950 = vmatpush2.bf16.msra.mxu0 0
        %951 = vmatprep.subr.bf16.mxu0 0
        %952 = vmatpush2.bf16.msra.mxu0 0
        %953 = vmatprep.subr.bf16.mxu0 0
        %954 = vmatpush2.bf16.msra.mxu0 0
        %955 = vmatprep.subr.bf16.mxu0 0
        %956 = vmatpush2.bf16.msra.mxu0 0
        %957 = vmatprep.subr.bf16.mxu0 0
        %958 = vmatpush2.bf16.msra.mxu0 0
        %959 = vmatprep.subr.bf16.mxu0 0
        %960 = vmatpush2.bf16.msra.mxu0 0
        %961 = vmatprep.subr.bf16.mxu0 0
        %962 = vmatpush2.bf16.msra.mxu0 0
        %963 = vmatprep.mubr.bf16.mxu0 0
        %964 = vmatmul.mubr.bf16.gmra.mxu0 %v929
        %v965 = vpop.f32.mrf.mxu0
        %v966 = vadd.f32 0.0, %v965
        %v967 = vpop.f32.mrf.mxu0
        %v968 = vpop.f32.mrf.mxu0
        %v969 = vadd.f32 0.0, %v968
        %v970 = vpop.f32.mrf.mxu0
        %971 = vdwg.mxu0
        %v972 = vpack.c.bf16 %v969, %v966
        %v973 = vld [vmem:[%s11] sm:$0xff]
        %v974 = vpack.c.bf16 %v973, %v973
        %s975 = scalar_lea.vmem %s5, 48
        %v976 = vld [vmem:[%s975] sm:$0xff]
        %v977 = vld [vmem:[%s975 + $0x8] sm:$0xff]
        %v978 = vld [vmem:[%s975 + $0x10] sm:$0xff]
        %v979 = vld [vmem:[%s975 + $0x18] sm:$0xff]
        %v980 = vld [vmem:[%s975 + $0x20] sm:$0xff]
        %v981 = vld [vmem:[%s975 + $0x28] sm:$0xff]
        %v982 = vpack.c.bf16 %v977, %v976
        %v983 = vpack.c.bf16 %v979, %v978
        %v984 = vpack.c.bf16 %v981, %v980
        %s985 = scalar_lea.vmem %s6, 1
        %v986 = vld [vmem:[%s985] sm:$0x1]
        %v988 = vlaneseq
        %v989 = vshrl.u32 %v988, 7
        %v990 = vsub.s32 0, %v989
        %v991 = vrot.slane %v986, %v990
        %993 = vmatprep.subr.bf16.mxu0 0
        %994 = vmatpush1.bf16.msra.mxu0 0
        %995 = vmatprep.subr.bf16.mxu0 0
        %996 = vmatpush1.bf16.msra.mxu0 0
        %997 = vmatprep.subr.bf16.mxu0 0
        %998 = vmatpush1.bf16.msra.mxu0 0
        %999 = vmatprep.subr.bf16.mxu0 0
        %1000 = vmatpush1.bf16.msra.mxu0 0
        %1001 = vmatprep.subr.bf16.mxu0 0
        %1002 = vmatpush1.bf16.msra.mxu0 0
        %1003 = vmatprep.subr.bf16.mxu0 0
        %1004 = vmatpush1.bf16.msra.mxu0 %v984
        %1005 = vmatprep.subr.bf16.mxu0 0
        %1006 = vmatpush1.bf16.msra.mxu0 %v983
        %1007 = vmatprep.subr.bf16.mxu0 0
        %1008 = vmatpush1.bf16.msra.mxu0 %v982
        %1009 = vmatprep.subr.bf16.mxu0 0
        %1010 = vmatpush2.bf16.msra.mxu0 0
        %1011 = vmatprep.subr.bf16.mxu0 0
        %1012 = vmatpush2.bf16.msra.mxu0 0
        %1013 = vmatprep.subr.bf16.mxu0 0
        %1014 = vmatpush2.bf16.msra.mxu0 0
        %1015 = vmatprep.subr.bf16.mxu0 0
        %1016 = vmatpush2.bf16.msra.mxu0 0
        %1017 = vmatprep.subr.bf16.mxu0 0
        %1018 = vmatpush2.bf16.msra.mxu0 0
        %1019 = vmatprep.subr.bf16.mxu0 0
        %1020 = vmatpush2.bf16.msra.mxu0 0
        %1021 = vmatprep.subr.bf16.mxu0 0
        %1022 = vmatpush2.bf16.msra.mxu0 0
        %1023 = vmatprep.subr.bf16.mxu0 0
        %1024 = vmatpush2.bf16.msra.mxu0 0
        %1025 = vmatprep.mubr.bf16.mxu0 0
        %1026 = vmatmul.mubr.bf16.gmra.mxu0 %v694
        %v1027 = vpop.f32.mrf.mxu0
        %v1028 = vadd.f32 %v991, %v1027
        %v1029 = vpop.f32.mrf.mxu0
        %v1030 = vpop.f32.mrf.mxu0
        %v1031 = vadd.f32 %v991, %v1030
        %v1032 = vpop.f32.mrf.mxu0
        %1033 = vdwg.mxu0
        %v1034 = vmul.f32 %v1028, 0.35355338
        %v1035 = vmul.f32 %v1031, 0.35355338
        %s1036 = scalar_lea.vmem %s7, 48
        %v1037 = vld [vmem:[%s1036] sm:$0xff]
        %v1038 = vld [vmem:[%s1036 + $0x8] sm:$0xff]
        %v1039 = vld [vmem:[%s1036 + $0x10] sm:$0xff]
        %v1040 = vld [vmem:[%s1036 + $0x18] sm:$0xff]
        %v1041 = vld [vmem:[%s1036 + $0x20] sm:$0xff]
        %v1042 = vld [vmem:[%s1036 + $0x28] sm:$0xff]
        %v1043 = vpack.c.bf16 %v1038, %v1037
        %v1044 = vpack.c.bf16 %v1040, %v1039
        %v1045 = vpack.c.bf16 %v1042, %v1041
        %s1046 = scalar_lea.vmem %s8, 1
        %v1047 = vld [vmem:[%s1046] sm:$0x1]
        %v1049 = vlaneseq
        %v1050 = vshrl.u32 %v1049, 7
        %v1051 = vsub.s32 0, %v1050
        %v1052 = vrot.slane %v1047, %v1051
        %1054 = vmatprep.subr.bf16.mxu0 0
        %1055 = vmatpush1.bf16.msra.mxu0 0
        %1056 = vmatprep.subr.bf16.mxu0 0
        %1057 = vmatpush1.bf16.msra.mxu0 0
        %1058 = vmatprep.subr.bf16.mxu0 0
        %1059 = vmatpush1.bf16.msra.mxu0 0
        %1060 = vmatprep.subr.bf16.mxu0 0
        %1061 = vmatpush1.bf16.msra.mxu0 0
        %1062 = vmatprep.subr.bf16.mxu0 0
        %1063 = vmatpush1.bf16.msra.mxu0 0
        %1064 = vmatprep.subr.bf16.mxu0 0
        %1065 = vmatpush1.bf16.msra.mxu0 %v1045
        %1066 = vmatprep.subr.bf16.mxu0 0
        %1067 = vmatpush1.bf16.msra.mxu0 %v1044
        %1068 = vmatprep.subr.bf16.mxu0 0
        %1069 = vmatpush1.bf16.msra.mxu0 %v1043
        %1070 = vmatprep.subr.bf16.mxu0 0
        %1071 = vmatpush2.bf16.msra.mxu0 0
        %1072 = vmatprep.subr.bf16.mxu0 0
        %1073 = vmatpush2.bf16.msra.mxu0 0
        %1074 = vmatprep.subr.bf16.mxu0 0
        %1075 = vmatpush2.bf16.msra.mxu0 0
        %1076 = vmatprep.subr.bf16.mxu0 0
        %1077 = vmatpush2.bf16.msra.mxu0 0
        %1078 = vmatprep.subr.bf16.mxu0 0
        %1079 = vmatpush2.bf16.msra.mxu0 0
        %1080 = vmatprep.subr.bf16.mxu0 0
        %1081 = vmatpush2.bf16.msra.mxu0 0
        %1082 = vmatprep.subr.bf16.mxu0 0
        %1083 = vmatpush2.bf16.msra.mxu0 0
        %1084 = vmatprep.subr.bf16.mxu0 0
        %1085 = vmatpush2.bf16.msra.mxu0 0
        %1086 = vmatprep.mubr.bf16.mxu0 0
        %1087 = vmatmul.mubr.bf16.gmra.mxu0 %v694
        %v1088 = vpop.f32.mrf.mxu0
        %v1089 = vadd.f32 %v1052, %v1088
        %v1090 = vpop.f32.mrf.mxu0
        %v1091 = vpop.f32.mrf.mxu0
        %v1092 = vadd.f32 %v1052, %v1091
        %v1093 = vpop.f32.mrf.mxu0
        %1094 = vdwg.mxu0
        %s1095 = scalar_lea.vmem %s9, 48
        %v1096 = vld [vmem:[%s1095] sm:$0xff]
        %v1097 = vld [vmem:[%s1095 + $0x8] sm:$0xff]
        %v1098 = vld [vmem:[%s1095 + $0x10] sm:$0xff]
        %v1099 = vld [vmem:[%s1095 + $0x18] sm:$0xff]
        %v1100 = vld [vmem:[%s1095 + $0x20] sm:$0xff]
        %v1101 = vld [vmem:[%s1095 + $0x28] sm:$0xff]
        %v1102 = vpack.c.bf16 %v1097, %v1096
        %v1103 = vpack.c.bf16 %v1099, %v1098
        %v1104 = vpack.c.bf16 %v1101, %v1100
        %s1105 = scalar_lea.vmem %s10, 1
        %v1106 = vld [vmem:[%s1105] sm:$0x1]
        %v1108 = vlaneseq
        %v1109 = vshrl.u32 %v1108, 7
        %v1110 = vsub.s32 0, %v1109
        %v1111 = vrot.slane %v1106, %v1110
        %1113 = vmatprep.subr.bf16.mxu0 0
        %1114 = vmatpush1.bf16.msra.mxu0 0
        %1115 = vmatprep.subr.bf16.mxu0 0
        %1116 = vmatpush1.bf16.msra.mxu0 0
        %1117 = vmatprep.subr.bf16.mxu0 0
        %1118 = vmatpush1.bf16.msra.mxu0 0
        %1119 = vmatprep.subr.bf16.mxu0 0
        %1120 = vmatpush1.bf16.msra.mxu0 0
        %1121 = vmatprep.subr.bf16.mxu0 0
        %1122 = vmatpush1.bf16.msra.mxu0 0
        %1123 = vmatprep.subr.bf16.mxu0 0
        %1124 = vmatpush1.bf16.msra.mxu0 %v1104
        %1125 = vmatprep.subr.bf16.mxu0 0
        %1126 = vmatpush1.bf16.msra.mxu0 %v1103
        %1127 = vmatprep.subr.bf16.mxu0 0
        %1128 = vmatpush1.bf16.msra.mxu0 %v1102
        %1129 = vmatprep.subr.bf16.mxu0 0
        %1130 = vmatpush2.bf16.msra.mxu0 0
        %1131 = vmatprep.subr.bf16.mxu0 0
        %1132 = vmatpush2.bf16.msra.mxu0 0
        %1133 = vmatprep.subr.bf16.mxu0 0
        %1134 = vmatpush2.bf16.msra.mxu0 0
        %1135 = vmatprep.subr.bf16.mxu0 0
        %1136 = vmatpush2.bf16.msra.mxu0 0
        %1137 = vmatprep.subr.bf16.mxu0 0
        %1138 = vmatpush2.bf16.msra.mxu0 0
        %1139 = vmatprep.subr.bf16.mxu0 0
        %1140 = vmatpush2.bf16.msra.mxu0 0
        %1141 = vmatprep.subr.bf16.mxu0 0
        %1142 = vmatpush2.bf16.msra.mxu0 0
        %1143 = vmatprep.subr.bf16.mxu0 0
        %1144 = vmatpush2.bf16.msra.mxu0 0
        %1145 = vmatprep.mubr.bf16.mxu0 0
        %1146 = vmatmul.mubr.bf16.gmra.mxu0 %v694
        %v1147 = vpop.f32.mrf.mxu0
        %v1148 = vadd.f32 %v1111, %v1147
        %v1149 = vpop.f32.mrf.mxu0
        %v1150 = vpop.f32.mrf.mxu0
        %v1151 = vadd.f32 %v1111, %v1150
        %v1152 = vpop.f32.mrf.mxu0
        %1153 = vdwg.mxu0
        %v1154 = vpack.c.bf16 %v1035, %v1034
        %v1155 = vpack.c.bf16 %v1092, %v1089
        %v1157 = vsel %vm855, %v1154, 0
        %v1160 = vsel %vm855, %v1155, 0
        %1162 = vmatprep.subr.bf16.mxu0 0
        %1163 = vmatpush1.bf16.xpose.msra.mxu0 0
        %1164 = vmatprep.subr.bf16.mxu0 0
        %1165 = vmatpush1.bf16.xpose.msra.mxu0 0
        %1166 = vmatprep.subr.bf16.mxu0 0
        %1167 = vmatpush1.bf16.xpose.msra.mxu0 0
        %1168 = vmatprep.subr.bf16.mxu0 0
        %1169 = vmatpush1.bf16.xpose.msra.mxu0 0
        %1170 = vmatprep.subr.bf16.mxu0 0
        %1171 = vmatpush1.bf16.xpose.msra.mxu0 0
        %1172 = vmatprep.subr.bf16.mxu0 0
        %1173 = vmatpush1.bf16.xpose.msra.mxu0 0
        %1174 = vmatprep.subr.bf16.mxu0 0
        %1175 = vmatpush1.bf16.xpose.msra.mxu0 0
        %1176 = vmatprep.subr.bf16.mxu0 0
        %1177 = vmatpush1.bf16.xpose.msra.mxu0 %v1160
        %1178 = vmatprep.subr.bf16.mxu0 0
        %1179 = vmatpush2.bf16.xpose.msra.mxu0 0
        %1180 = vmatprep.subr.bf16.mxu0 0
        %1181 = vmatpush2.bf16.xpose.msra.mxu0 0
        %1182 = vmatprep.subr.bf16.mxu0 0
        %1183 = vmatpush2.bf16.xpose.msra.mxu0 0
        %1184 = vmatprep.subr.bf16.mxu0 0
        %1185 = vmatpush2.bf16.xpose.msra.mxu0 0
        %1186 = vmatprep.subr.bf16.mxu0 0
        %1187 = vmatpush2.bf16.xpose.msra.mxu0 0
        %1188 = vmatprep.subr.bf16.mxu0 0
        %1189 = vmatpush2.bf16.xpose.msra.mxu0 0
        %1190 = vmatprep.subr.bf16.mxu0 0
        %1191 = vmatpush2.bf16.xpose.msra.mxu0 0
        %1192 = vmatprep.subr.bf16.mxu0 0
        %1193 = vmatpush2.bf16.xpose.msra.mxu0 0
        %1194 = vmatprep.mubr.bf16.mxu0 0
        %1195 = vmatmul.mubr.bf16.gmra.mxu0 %v1157
        %v1196 = vpop.f32.mrf.mxu0
        %v1197 = vadd.f32 0.0, %v1196
        %v1198 = vpop.f32.mrf.mxu0
        %v1199 = vpop.f32.mrf.mxu0
        %v1200 = vadd.f32 0.0, %v1199
        %v1201 = vpop.f32.mrf.mxu0
        %1202 = vdwg.mxu0
        %v1203 = vsel %vm903, %v1197, -inf
        %1204 = vmax.xlane.f32.xlu0 %v1203
        %v1205 = vpop.xlane.xlu0 %1204
        %v1206 = vsel %vm903, %v1200, -inf
        %1207 = vmax.xlane.f32.xlu0 %v1206
        %v1208 = vpop.xlane.xlu0 %1207
        %v1209 = vsub.f32 %v1197, %v1205
        %v1210 = vsub.f32 %v1200, %v1208
        %v1211 = vmul.f32 %v1209, 1.442695
        %v1212 = vpow.pop %v1211
        %v1213 = vmul.f32 %v1210, 1.442695
        %v1214 = vpow.pop %v1213
        %v1215 = vsel %vm903, %v1212, 0.0
        %1216 = vadd.xlane.f32.xlu0 %v1215
        %v1217 = vpop.xlane.xlu0 %1216
        %v1218 = vsel %vm903, %v1214, 0.0
        %1219 = vadd.xlane.f32.xlu0 %v1218
        %v1220 = vpop.xlane.xlu0 %1219
        %v1221 = vrcp.pop %v1217
        %v1222 = vrcp.pop %v1220
        %v1223 = vmul.f32 %v1212, %v1221
        %v1224 = vmul.f32 %v1214, %v1222
        %v1225 = vpack.c.bf16 %v1224, %v1223
        %v1226 = vpack.c.bf16 %v1151, %v1148
        %v1228 = vsel %vm903, %v1225, 0
        %1230 = vmatprep.subr.bf16.mxu0 0
        %1231 = vmatpush1.bf16.msra.mxu0 0
        %1232 = vmatprep.subr.bf16.mxu0 0
        %1233 = vmatpush1.bf16.msra.mxu0 0
        %1234 = vmatprep.subr.bf16.mxu0 0
        %1235 = vmatpush1.bf16.msra.mxu0 0
        %1236 = vmatprep.subr.bf16.mxu0 0
        %1237 = vmatpush1.bf16.msra.mxu0 0
        %1238 = vmatprep.subr.bf16.mxu0 0
        %1239 = vmatpush1.bf16.msra.mxu0 0
        %1240 = vmatprep.subr.bf16.mxu0 0
        %1241 = vmatpush1.bf16.msra.mxu0 0
        %1242 = vmatprep.subr.bf16.mxu0 0
        %1243 = vmatpush1.bf16.msra.mxu0 0
        %1244 = vmatprep.subr.bf16.mxu0 0
        %1245 = vmatpush1.bf16.msra.mxu0 %v1226
        %1246 = vmatprep.subr.bf16.mxu0 0
        %1247 = vmatpush2.bf16.msra.mxu0 0
        %1248 = vmatprep.subr.bf16.mxu0 0
        %1249 = vmatpush2.bf16.msra.mxu0 0
        %1250 = vmatprep.subr.bf16.mxu0 0
        %1251 = vmatpush2.bf16.msra.mxu0 0
        %1252 = vmatprep.subr.bf16.mxu0 0
        %1253 = vmatpush2.bf16.msra.mxu0 0
        %1254 = vmatprep.subr.bf16.mxu0 0
        %1255 = vmatpush2.bf16.msra.mxu0 0
        %1256 = vmatprep.subr.bf16.mxu0 0
        %1257 = vmatpush2.bf16.msra.mxu0 0
        %1258 = vmatprep.subr.bf16.mxu0 0
        %1259 = vmatpush2.bf16.msra.mxu0 0
        %1260 = vmatprep.subr.bf16.mxu0 0
        %1261 = vmatpush2.bf16.msra.mxu0 0
        %1262 = vmatprep.mubr.bf16.mxu0 0
        %1263 = vmatmul.mubr.bf16.gmra.mxu0 %v1228
        %v1264 = vpop.f32.mrf.mxu0
        %v1265 = vadd.f32 0.0, %v1264
        %v1266 = vpop.f32.mrf.mxu0
        %v1267 = vpop.f32.mrf.mxu0
        %v1268 = vadd.f32 0.0, %v1267
        %v1269 = vpop.f32.mrf.mxu0
        %1270 = vdwg.mxu0
        %v1271 = vpack.c.bf16 %v1268, %v1265
        %s1272 = scalar_lea.vmem %s11, 8
        %v1273 = vld [vmem:[%s1272] sm:$0xff]
        %v1274 = vpack.c.bf16 %v1273, %v1273
        %v1276 = vsel %vm855, %v1271, 0
        %v1279 = vsel %vm522, %v1274, 0
        %1281 = vmatprep.subr.bf16.mxu0 0
        %1282 = vmatpush1.bf16.msra.mxu0 0
        %1283 = vmatprep.subr.bf16.mxu0 0
        %1284 = vmatpush1.bf16.msra.mxu0 0
        %1285 = vmatprep.subr.bf16.mxu0 0
        %1286 = vmatpush1.bf16.msra.mxu0 0
        %1287 = vmatprep.subr.bf16.mxu0 0
        %1288 = vmatpush1.bf16.msra.mxu0 0
        %1289 = vmatprep.subr.bf16.mxu0 0
        %1290 = vmatpush1.bf16.msra.mxu0 0
        %1291 = vmatprep.subr.bf16.mxu0 0
        %1292 = vmatpush1.bf16.msra.mxu0 0
        %1293 = vmatprep.subr.bf16.mxu0 0
        %1294 = vmatpush1.bf16.msra.mxu0 0
        %1295 = vmatprep.subr.bf16.mxu0 0
        %1296 = vmatpush1.bf16.msra.mxu0 %v1279
        %1297 = vmatprep.subr.bf16.mxu0 0
        %1298 = vmatpush2.bf16.msra.mxu0 0
        %1299 = vmatprep.subr.bf16.mxu0 0
        %1300 = vmatpush2.bf16.msra.mxu0 0
        %1301 = vmatprep.subr.bf16.mxu0 0
        %1302 = vmatpush2.bf16.msra.mxu0 0
        %1303 = vmatprep.subr.bf16.mxu0 0
        %1304 = vmatpush2.bf16.msra.mxu0 0
        %1305 = vmatprep.subr.bf16.mxu0 0
        %1306 = vmatpush2.bf16.msra.mxu0 0
        %1307 = vmatprep.subr.bf16.mxu0 0
        %1308 = vmatpush2.bf16.msra.mxu0 0
        %1309 = vmatprep.subr.bf16.mxu0 0
        %1310 = vmatpush2.bf16.msra.mxu0 0
        %1311 = vmatprep.subr.bf16.mxu0 0
        %1312 = vmatpush2.bf16.msra.mxu0 0
        %1313 = vmatprep.mubr.bf16.mxu0 0
        %1314 = vmatmul.mubr.bf16.gmra.mxu0 %v1276
        %v1315 = vpop.f32.mrf.mxu0
        %v1316 = vadd.f32 0.0, %v1315
        %v1317 = vpop.f32.mrf.mxu0
        %v1318 = vpop.f32.mrf.mxu0
        %v1319 = vadd.f32 0.0, %v1318
        %v1320 = vpop.f32.mrf.mxu0
        %1321 = vdwg.mxu0
        %v1323 = vsel %vm855, %v972, 0
        %v1326 = vsel %vm522, %v974, 0
        %1328 = vmatprep.subr.bf16.mxu0 0
        %1329 = vmatpush1.bf16.msra.mxu0 0
        %1330 = vmatprep.subr.bf16.mxu0 0
        %1331 = vmatpush1.bf16.msra.mxu0 0
        %1332 = vmatprep.subr.bf16.mxu0 0
        %1333 = vmatpush1.bf16.msra.mxu0 0
        %1334 = vmatprep.subr.bf16.mxu0 0
        %1335 = vmatpush1.bf16.msra.mxu0 0
        %1336 = vmatprep.subr.bf16.mxu0 0
        %1337 = vmatpush1.bf16.msra.mxu0 0
        %1338 = vmatprep.subr.bf16.mxu0 0
        %1339 = vmatpush1.bf16.msra.mxu0 0
        %1340 = vmatprep.subr.bf16.mxu0 0
        %1341 = vmatpush1.bf16.msra.mxu0 0
        %1342 = vmatprep.subr.bf16.mxu0 0
        %1343 = vmatpush1.bf16.msra.mxu0 %v1326
        %1344 = vmatprep.subr.bf16.mxu0 0
        %1345 = vmatpush2.bf16.msra.mxu0 0
        %1346 = vmatprep.subr.bf16.mxu0 0
        %1347 = vmatpush2.bf16.msra.mxu0 0
        %1348 = vmatprep.subr.bf16.mxu0 0
        %1349 = vmatpush2.bf16.msra.mxu0 0
        %1350 = vmatprep.subr.bf16.mxu0 0
        %1351 = vmatpush2.bf16.msra.mxu0 0
        %1352 = vmatprep.subr.bf16.mxu0 0
        %1353 = vmatpush2.bf16.msra.mxu0 0
        %1354 = vmatprep.subr.bf16.mxu0 0
        %1355 = vmatpush2.bf16.msra.mxu0 0
        %1356 = vmatprep.subr.bf16.mxu0 0
        %1357 = vmatpush2.bf16.msra.mxu0 0
        %1358 = vmatprep.subr.bf16.mxu0 0
        %1359 = vmatpush2.bf16.msra.mxu0 0
        %1360 = vmatprep.mubr.bf16.mxu0 0
        %1361 = vmatmul.mubr.bf16.gmra.mxu0 %v1323
        %v1362 = vpop.f32.mrf.mxu0
        %v1363 = vadd.f32 %v1316, %v1362
        %v1364 = vpop.f32.mrf.mxu0
        %v1365 = vpop.f32.mrf.mxu0
        %v1366 = vadd.f32 %v1319, %v1365
        %v1367 = vpop.f32.mrf.mxu0
        %1368 = vdwg.mxu0
        %s1369 = scalar_lea.vmem %s5, 96
        %v1370 = vld [vmem:[%s1369] sm:$0xff]
        %v1371 = vld [vmem:[%s1369 + $0x8] sm:$0xff]
        %v1372 = vld [vmem:[%s1369 + $0x10] sm:$0xff]
        %v1373 = vld [vmem:[%s1369 + $0x18] sm:$0xff]
        %v1374 = vld [vmem:[%s1369 + $0x20] sm:$0xff]
        %v1375 = vld [vmem:[%s1369 + $0x28] sm:$0xff]
        %v1376 = vpack.c.bf16 %v1371, %v1370
        %v1377 = vpack.c.bf16 %v1373, %v1372
        %v1378 = vpack.c.bf16 %v1375, %v1374
        %s1379 = scalar_lea.vmem %s6, 2
        %v1380 = vld [vmem:[%s1379] sm:$0x1]
        %v1382 = vlaneseq
        %v1383 = vshrl.u32 %v1382, 7
        %v1384 = vsub.s32 0, %v1383
        %v1385 = vrot.slane %v1380, %v1384
        %1387 = vmatprep.subr.bf16.mxu0 0
        %1388 = vmatpush1.bf16.msra.mxu0 0
        %1389 = vmatprep.subr.bf16.mxu0 0
        %1390 = vmatpush1.bf16.msra.mxu0 0
        %1391 = vmatprep.subr.bf16.mxu0 0
        %1392 = vmatpush1.bf16.msra.mxu0 0
        %1393 = vmatprep.subr.bf16.mxu0 0
        %1394 = vmatpush1.bf16.msra.mxu0 0
        %1395 = vmatprep.subr.bf16.mxu0 0
        %1396 = vmatpush1.bf16.msra.mxu0 0
        %1397 = vmatprep.subr.bf16.mxu0 0
        %1398 = vmatpush1.bf16.msra.mxu0 %v1378
        %1399 = vmatprep.subr.bf16.mxu0 0
        %1400 = vmatpush1.bf16.msra.mxu0 %v1377
        %1401 = vmatprep.subr.bf16.mxu0 0
        %1402 = vmatpush1.bf16.msra.mxu0 %v1376
        %1403 = vmatprep.subr.bf16.mxu0 0
        %1404 = vmatpush2.bf16.msra.mxu0 0
        %1405 = vmatprep.subr.bf16.mxu0 0
        %1406 = vmatpush2.bf16.msra.mxu0 0
        %1407 = vmatprep.subr.bf16.mxu0 0
        %1408 = vmatpush2.bf16.msra.mxu0 0
        %1409 = vmatprep.subr.bf16.mxu0 0
        %1410 = vmatpush2.bf16.msra.mxu0 0
        %1411 = vmatprep.subr.bf16.mxu0 0
        %1412 = vmatpush2.bf16.msra.mxu0 0
        %1413 = vmatprep.subr.bf16.mxu0 0
        %1414 = vmatpush2.bf16.msra.mxu0 0
        %1415 = vmatprep.subr.bf16.mxu0 0
        %1416 = vmatpush2.bf16.msra.mxu0 0
        %1417 = vmatprep.subr.bf16.mxu0 0
        %1418 = vmatpush2.bf16.msra.mxu0 0
        %1419 = vmatprep.mubr.bf16.mxu0 0
        %1420 = vmatmul.mubr.bf16.gmra.mxu0 %v694
        %v1421 = vpop.f32.mrf.mxu0
        %v1422 = vadd.f32 %v1385, %v1421
        %v1423 = vpop.f32.mrf.mxu0
        %v1424 = vpop.f32.mrf.mxu0
        %v1425 = vadd.f32 %v1385, %v1424
        %v1426 = vpop.f32.mrf.mxu0
        %1427 = vdwg.mxu0
        %v1428 = vmul.f32 %v1422, 0.35355338
        %v1429 = vmul.f32 %v1425, 0.35355338
        %s1430 = scalar_lea.vmem %s7, 96
        %v1431 = vld [vmem:[%s1430] sm:$0xff]
        %v1432 = vld [vmem:[%s1430 + $0x8] sm:$0xff]
        %v1433 = vld [vmem:[%s1430 + $0x10] sm:$0xff]
        %v1434 = vld [vmem:[%s1430 + $0x18] sm:$0xff]
        %v1435 = vld [vmem:[%s1430 + $0x20] sm:$0xff]
        %v1436 = vld [vmem:[%s1430 + $0x28] sm:$0xff]
        %v1437 = vpack.c.bf16 %v1432, %v1431
        %v1438 = vpack.c.bf16 %v1434, %v1433
        %v1439 = vpack.c.bf16 %v1436, %v1435
        %s1440 = scalar_lea.vmem %s8, 2
        %v1441 = vld [vmem:[%s1440] sm:$0x1]
        %v1443 = vlaneseq
        %v1444 = vshrl.u32 %v1443, 7
        %v1445 = vsub.s32 0, %v1444
        %v1446 = vrot.slane %v1441, %v1445
        %1448 = vmatprep.subr.bf16.mxu0 0
        %1449 = vmatpush1.bf16.msra.mxu0 0
        %1450 = vmatprep.subr.bf16.mxu0 0
        %1451 = vmatpush1.bf16.msra.mxu0 0
        %1452 = vmatprep.subr.bf16.mxu0 0
        %1453 = vmatpush1.bf16.msra.mxu0 0
        %1454 = vmatprep.subr.bf16.mxu0 0
        %1455 = vmatpush1.bf16.msra.mxu0 0
        %1456 = vmatprep.subr.bf16.mxu0 0
        %1457 = vmatpush1.bf16.msra.mxu0 0
        %1458 = vmatprep.subr.bf16.mxu0 0
        %1459 = vmatpush1.bf16.msra.mxu0 %v1439
        %1460 = vmatprep.subr.bf16.mxu0 0
        %1461 = vmatpush1.bf16.msra.mxu0 %v1438
        %1462 = vmatprep.subr.bf16.mxu0 0
        %1463 = vmatpush1.bf16.msra.mxu0 %v1437
        %1464 = vmatprep.subr.bf16.mxu0 0
        %1465 = vmatpush2.bf16.msra.mxu0 0
        %1466 = vmatprep.subr.bf16.mxu0 0
        %1467 = vmatpush2.bf16.msra.mxu0 0
        %1468 = vmatprep.subr.bf16.mxu0 0
        %1469 = vmatpush2.bf16.msra.mxu0 0
        %1470 = vmatprep.subr.bf16.mxu0 0
        %1471 = vmatpush2.bf16.msra.mxu0 0
        %1472 = vmatprep.subr.bf16.mxu0 0
        %1473 = vmatpush2.bf16.msra.mxu0 0
        %1474 = vmatprep.subr.bf16.mxu0 0
        %1475 = vmatpush2.bf16.msra.mxu0 0
        %1476 = vmatprep.subr.bf16.mxu0 0
        %1477 = vmatpush2.bf16.msra.mxu0 0
        %1478 = vmatprep.subr.bf16.mxu0 0
        %1479 = vmatpush2.bf16.msra.mxu0 0
        %1480 = vmatprep.mubr.bf16.mxu0 0
        %1481 = vmatmul.mubr.bf16.gmra.mxu0 %v694
        %v1482 = vpop.f32.mrf.mxu0
        %v1483 = vadd.f32 %v1446, %v1482
        %v1484 = vpop.f32.mrf.mxu0
        %v1485 = vpop.f32.mrf.mxu0
        %v1486 = vadd.f32 %v1446, %v1485
        %v1487 = vpop.f32.mrf.mxu0
        %1488 = vdwg.mxu0
        %s1489 = scalar_lea.vmem %s9, 96
        %v1490 = vld [vmem:[%s1489] sm:$0xff]
        %v1491 = vld [vmem:[%s1489 + $0x8] sm:$0xff]
        %v1492 = vld [vmem:[%s1489 + $0x10] sm:$0xff]
        %v1493 = vld [vmem:[%s1489 + $0x18] sm:$0xff]
        %v1494 = vld [vmem:[%s1489 + $0x20] sm:$0xff]
        %v1495 = vld [vmem:[%s1489 + $0x28] sm:$0xff]
        %v1496 = vpack.c.bf16 %v1491, %v1490
        %v1497 = vpack.c.bf16 %v1493, %v1492
        %v1498 = vpack.c.bf16 %v1495, %v1494
        %s1499 = scalar_lea.vmem %s10, 2
        %v1500 = vld [vmem:[%s1499] sm:$0x1]
        %v1502 = vlaneseq
        %v1503 = vshrl.u32 %v1502, 7
        %v1504 = vsub.s32 0, %v1503
        %v1505 = vrot.slane %v1500, %v1504
        %1507 = vmatprep.subr.bf16.mxu0 0
        %1508 = vmatpush1.bf16.msra.mxu0 0
        %1509 = vmatprep.subr.bf16.mxu0 0
        %1510 = vmatpush1.bf16.msra.mxu0 0
        %1511 = vmatprep.subr.bf16.mxu0 0
        %1512 = vmatpush1.bf16.msra.mxu0 0
        %1513 = vmatprep.subr.bf16.mxu0 0
        %1514 = vmatpush1.bf16.msra.mxu0 0
        %1515 = vmatprep.subr.bf16.mxu0 0
        %1516 = vmatpush1.bf16.msra.mxu0 0
        %1517 = vmatprep.subr.bf16.mxu0 0
        %1518 = vmatpush1.bf16.msra.mxu0 %v1498
        %1519 = vmatprep.subr.bf16.mxu0 0
        %1520 = vmatpush1.bf16.msra.mxu0 %v1497
        %1521 = vmatprep.subr.bf16.mxu0 0
        %1522 = vmatpush1.bf16.msra.mxu0 %v1496
        %1523 = vmatprep.subr.bf16.mxu0 0
        %1524 = vmatpush2.bf16.msra.mxu0 0
        %1525 = vmatprep.subr.bf16.mxu0 0
        %1526 = vmatpush2.bf16.msra.mxu0 0
        %1527 = vmatprep.subr.bf16.mxu0 0
        %1528 = vmatpush2.bf16.msra.mxu0 0
        %1529 = vmatprep.subr.bf16.mxu0 0
        %1530 = vmatpush2.bf16.msra.mxu0 0
        %1531 = vmatprep.subr.bf16.mxu0 0
        %1532 = vmatpush2.bf16.msra.mxu0 0
        %1533 = vmatprep.subr.bf16.mxu0 0
        %1534 = vmatpush2.bf16.msra.mxu0 0
        %1535 = vmatprep.subr.bf16.mxu0 0
        %1536 = vmatpush2.bf16.msra.mxu0 0
        %1537 = vmatprep.subr.bf16.mxu0 0
        %1538 = vmatpush2.bf16.msra.mxu0 0
        %1539 = vmatprep.mubr.bf16.mxu0 0
        %1540 = vmatmul.mubr.bf16.gmra.mxu0 %v694
        %v1541 = vpop.f32.mrf.mxu0
        %v1542 = vadd.f32 %v1505, %v1541
        %v1543 = vpop.f32.mrf.mxu0
        %v1544 = vpop.f32.mrf.mxu0
        %v1545 = vadd.f32 %v1505, %v1544
        %v1546 = vpop.f32.mrf.mxu0
        %1547 = vdwg.mxu0
        %v1548 = vpack.c.bf16 %v1429, %v1428
        %v1549 = vpack.c.bf16 %v1486, %v1483
        %v1551 = vsel %vm855, %v1548, 0
        %v1554 = vsel %vm855, %v1549, 0
        %1556 = vmatprep.subr.bf16.mxu0 0
        %1557 = vmatpush1.bf16.xpose.msra.mxu0 0
        %1558 = vmatprep.subr.bf16.mxu0 0
        %1559 = vmatpush1.bf16.xpose.msra.mxu0 0
        %1560 = vmatprep.subr.bf16.mxu0 0
        %1561 = vmatpush1.bf16.xpose.msra.mxu0 0
        %1562 = vmatprep.subr.bf16.mxu0 0
        %1563 = vmatpush1.bf16.xpose.msra.mxu0 0
        %1564 = vmatprep.subr.bf16.mxu0 0
        %1565 = vmatpush1.bf16.xpose.msra.mxu0 0
        %1566 = vmatprep.subr.bf16.mxu0 0
        %1567 = vmatpush1.bf16.xpose.msra.mxu0 0
        %1568 = vmatprep.subr.bf16.mxu0 0
        %1569 = vmatpush1.bf16.xpose.msra.mxu0 0
        %1570 = vmatprep.subr.bf16.mxu0 0
        %1571 = vmatpush1.bf16.xpose.msra.mxu0 %v1554
        %1572 = vmatprep.subr.bf16.mxu0 0
        %1573 = vmatpush2.bf16.xpose.msra.mxu0 0
        %1574 = vmatprep.subr.bf16.mxu0 0
        %1575 = vmatpush2.bf16.xpose.msra.mxu0 0
        %1576 = vmatprep.subr.bf16.mxu0 0
        %1577 = vmatpush2.bf16.xpose.msra.mxu0 0
        %1578 = vmatprep.subr.bf16.mxu0 0
        %1579 = vmatpush2.bf16.xpose.msra.mxu0 0
        %1580 = vmatprep.subr.bf16.mxu0 0
        %1581 = vmatpush2.bf16.xpose.msra.mxu0 0
        %1582 = vmatprep.subr.bf16.mxu0 0
        %1583 = vmatpush2.bf16.xpose.msra.mxu0 0
        %1584 = vmatprep.subr.bf16.mxu0 0
        %1585 = vmatpush2.bf16.xpose.msra.mxu0 0
        %1586 = vmatprep.subr.bf16.mxu0 0
        %1587 = vmatpush2.bf16.xpose.msra.mxu0 0
        %1588 = vmatprep.mubr.bf16.mxu0 0
        %1589 = vmatmul.mubr.bf16.gmra.mxu0 %v1551
        %v1590 = vpop.f32.mrf.mxu0
        %v1591 = vadd.f32 0.0, %v1590
        %v1592 = vpop.f32.mrf.mxu0
        %v1593 = vpop.f32.mrf.mxu0
        %v1594 = vadd.f32 0.0, %v1593
        %v1595 = vpop.f32.mrf.mxu0
        %1596 = vdwg.mxu0
        %v1597 = vsel %vm903, %v1591, -inf
        %1598 = vmax.xlane.f32.xlu0 %v1597
        %v1599 = vpop.xlane.xlu0 %1598
        %v1600 = vsel %vm903, %v1594, -inf
        %1601 = vmax.xlane.f32.xlu0 %v1600
        %v1602 = vpop.xlane.xlu0 %1601
        %v1603 = vsub.f32 %v1591, %v1599
        %v1604 = vsub.f32 %v1594, %v1602
        %v1605 = vmul.f32 %v1603, 1.442695
        %v1606 = vpow.pop %v1605
        %v1607 = vmul.f32 %v1604, 1.442695
        %v1608 = vpow.pop %v1607
        %v1609 = vsel %vm903, %v1606, 0.0
        %1610 = vadd.xlane.f32.xlu0 %v1609
        %v1611 = vpop.xlane.xlu0 %1610
        %v1612 = vsel %vm903, %v1608, 0.0
        %1613 = vadd.xlane.f32.xlu0 %v1612
        %v1614 = vpop.xlane.xlu0 %1613
        %v1615 = vrcp.pop %v1611
        %v1616 = vrcp.pop %v1614
        %v1617 = vmul.f32 %v1606, %v1615
        %v1618 = vmul.f32 %v1608, %v1616
        %v1619 = vpack.c.bf16 %v1618, %v1617
        %v1620 = vpack.c.bf16 %v1545, %v1542
        %v1622 = vsel %vm903, %v1619, 0
        %1624 = vmatprep.subr.bf16.mxu0 0
        %1625 = vmatpush1.bf16.msra.mxu0 0
        %1626 = vmatprep.subr.bf16.mxu0 0
        %1627 = vmatpush1.bf16.msra.mxu0 0
        %1628 = vmatprep.subr.bf16.mxu0 0
        %1629 = vmatpush1.bf16.msra.mxu0 0
        %1630 = vmatprep.subr.bf16.mxu0 0
        %1631 = vmatpush1.bf16.msra.mxu0 0
        %1632 = vmatprep.subr.bf16.mxu0 0
        %1633 = vmatpush1.bf16.msra.mxu0 0
        %1634 = vmatprep.subr.bf16.mxu0 0
        %1635 = vmatpush1.bf16.msra.mxu0 0
        %1636 = vmatprep.subr.bf16.mxu0 0
        %1637 = vmatpush1.bf16.msra.mxu0 0
        %1638 = vmatprep.subr.bf16.mxu0 0
        %1639 = vmatpush1.bf16.msra.mxu0 %v1620
        %1640 = vmatprep.subr.bf16.mxu0 0
        %1641 = vmatpush2.bf16.msra.mxu0 0
        %1642 = vmatprep.subr.bf16.mxu0 0
        %1643 = vmatpush2.bf16.msra.mxu0 0
        %1644 = vmatprep.subr.bf16.mxu0 0
        %1645 = vmatpush2.bf16.msra.mxu0 0
        %1646 = vmatprep.subr.bf16.mxu0 0
        %1647 = vmatpush2.bf16.msra.mxu0 0
        %1648 = vmatprep.subr.bf16.mxu0 0
        %1649 = vmatpush2.bf16.msra.mxu0 0
        %1650 = vmatprep.subr.bf16.mxu0 0
        %1651 = vmatpush2.bf16.msra.mxu0 0
        %1652 = vmatprep.subr.bf16.mxu0 0
        %1653 = vmatpush2.bf16.msra.mxu0 0
        %1654 = vmatprep.subr.bf16.mxu0 0
        %1655 = vmatpush2.bf16.msra.mxu0 0
        %1656 = vmatprep.mubr.bf16.mxu0 0
        %1657 = vmatmul.mubr.bf16.gmra.mxu0 %v1622
        %v1658 = vpop.f32.mrf.mxu0
        %v1659 = vadd.f32 0.0, %v1658
        %v1660 = vpop.f32.mrf.mxu0
        %v1661 = vpop.f32.mrf.mxu0
        %v1662 = vadd.f32 0.0, %v1661
        %v1663 = vpop.f32.mrf.mxu0
        %1664 = vdwg.mxu0
        %v1665 = vpack.c.bf16 %v1662, %v1659
        %s1666 = scalar_lea.vmem %s11, 16
        %v1667 = vld [vmem:[%s1666] sm:$0xff]
        %v1668 = vpack.c.bf16 %v1667, %v1667
        %v1670 = vsel %vm855, %v1665, 0
        %v1673 = vsel %vm522, %v1668, 0
        %1675 = vmatprep.subr.bf16.mxu0 0
        %1676 = vmatpush1.bf16.msra.mxu0 0
        %1677 = vmatprep.subr.bf16.mxu0 0
        %1678 = vmatpush1.bf16.msra.mxu0 0
        %1679 = vmatprep.subr.bf16.mxu0 0
        %1680 = vmatpush1.bf16.msra.mxu0 0
        %1681 = vmatprep.subr.bf16.mxu0 0
        %1682 = vmatpush1.bf16.msra.mxu0 0
        %1683 = vmatprep.subr.bf16.mxu0 0
        %1684 = vmatpush1.bf16.msra.mxu0 0
        %1685 = vmatprep.subr.bf16.mxu0 0
        %1686 = vmatpush1.bf16.msra.mxu0 0
        %1687 = vmatprep.subr.bf16.mxu0 0
        %1688 = vmatpush1.bf16.msra.mxu0 0
        %1689 = vmatprep.subr.bf16.mxu0 0
        %1690 = vmatpush1.bf16.msra.mxu0 %v1673
        %1691 = vmatprep.subr.bf16.mxu0 0
        %1692 = vmatpush2.bf16.msra.mxu0 0
        %1693 = vmatprep.subr.bf16.mxu0 0
        %1694 = vmatpush2.bf16.msra.mxu0 0
        %1695 = vmatprep.subr.bf16.mxu0 0
        %1696 = vmatpush2.bf16.msra.mxu0 0
        %1697 = vmatprep.subr.bf16.mxu0 0
        %1698 = vmatpush2.bf16.msra.mxu0 0
        %1699 = vmatprep.subr.bf16.mxu0 0
        %1700 = vmatpush2.bf16.msra.mxu0 0
        %1701 = vmatprep.subr.bf16.mxu0 0
        %1702 = vmatpush2.bf16.msra.mxu0 0
        %1703 = vmatprep.subr.bf16.mxu0 0
        %1704 = vmatpush2.bf16.msra.mxu0 0
        %1705 = vmatprep.subr.bf16.mxu0 0
        %1706 = vmatpush2.bf16.msra.mxu0 0
        %1707 = vmatprep.mubr.bf16.mxu0 0
        %1708 = vmatmul.mubr.bf16.gmra.mxu0 %v1670
        %v1709 = vpop.f32.mrf.mxu0
        %v1710 = vadd.f32 0.0, %v1709
        %v1711 = vpop.f32.mrf.mxu0
        %v1712 = vpop.f32.mrf.mxu0
        %v1713 = vadd.f32 0.0, %v1712
        %v1714 = vpop.f32.mrf.mxu0
        %1715 = vdwg.mxu0
        %v1716 = vadd.f32 %v1363, %v1710
        %v1717 = vadd.f32 %v1366, %v1713
        %s1718 = scalar_lea.vmem %s5, 144
        %v1719 = vld [vmem:[%s1718] sm:$0xff]
        %v1720 = vld [vmem:[%s1718 + $0x8] sm:$0xff]
        %v1721 = vld [vmem:[%s1718 + $0x10] sm:$0xff]
        %v1722 = vld [vmem:[%s1718 + $0x18] sm:$0xff]
        %v1723 = vld [vmem:[%s1718 + $0x20] sm:$0xff]
        %v1724 = vld [vmem:[%s1718 + $0x28] sm:$0xff]
        %v1725 = vpack.c.bf16 %v1720, %v1719
        %v1726 = vpack.c.bf16 %v1722, %v1721
        %v1727 = vpack.c.bf16 %v1724, %v1723
        %s1728 = scalar_lea.vmem %s6, 3
        %v1729 = vld [vmem:[%s1728] sm:$0x1]
        %v1731 = vlaneseq
        %v1732 = vshrl.u32 %v1731, 7
        %v1733 = vsub.s32 0, %v1732
        %v1734 = vrot.slane %v1729, %v1733
        %1736 = vmatprep.subr.bf16.mxu0 0
        %1737 = vmatpush1.bf16.msra.mxu0 0
        %1738 = vmatprep.subr.bf16.mxu0 0
        %1739 = vmatpush1.bf16.msra.mxu0 0
        %1740 = vmatprep.subr.bf16.mxu0 0
        %1741 = vmatpush1.bf16.msra.mxu0 0
        %1742 = vmatprep.subr.bf16.mxu0 0
        %1743 = vmatpush1.bf16.msra.mxu0 0
        %1744 = vmatprep.subr.bf16.mxu0 0
        %1745 = vmatpush1.bf16.msra.mxu0 0
        %1746 = vmatprep.subr.bf16.mxu0 0
        %1747 = vmatpush1.bf16.msra.mxu0 %v1727
        %1748 = vmatprep.subr.bf16.mxu0 0
        %1749 = vmatpush1.bf16.msra.mxu0 %v1726
        %1750 = vmatprep.subr.bf16.mxu0 0
        %1751 = vmatpush1.bf16.msra.mxu0 %v1725
        %1752 = vmatprep.subr.bf16.mxu0 0
        %1753 = vmatpush2.bf16.msra.mxu0 0
        %1754 = vmatprep.subr.bf16.mxu0 0
        %1755 = vmatpush2.bf16.msra.mxu0 0
        %1756 = vmatprep.subr.bf16.mxu0 0
        %1757 = vmatpush2.bf16.msra.mxu0 0
        %1758 = vmatprep.subr.bf16.mxu0 0
        %1759 = vmatpush2.bf16.msra.mxu0 0
        %1760 = vmatprep.subr.bf16.mxu0 0
        %1761 = vmatpush2.bf16.msra.mxu0 0
        %1762 = vmatprep.subr.bf16.mxu0 0
        %1763 = vmatpush2.bf16.msra.mxu0 0
        %1764 = vmatprep.subr.bf16.mxu0 0
        %1765 = vmatpush2.bf16.msra.mxu0 0
        %1766 = vmatprep.subr.bf16.mxu0 0
        %1767 = vmatpush2.bf16.msra.mxu0 0
        %1768 = vmatprep.mubr.bf16.mxu0 0
        %1769 = vmatmul.mubr.bf16.gmra.mxu0 %v694
        %v1770 = vpop.f32.mrf.mxu0
        %v1771 = vadd.f32 %v1734, %v1770
        %v1772 = vpop.f32.mrf.mxu0
        %v1773 = vpop.f32.mrf.mxu0
        %v1774 = vadd.f32 %v1734, %v1773
        %v1775 = vpop.f32.mrf.mxu0
        %1776 = vdwg.mxu0
        %v1777 = vmul.f32 %v1771, 0.35355338
        %v1778 = vmul.f32 %v1774, 0.35355338
        %s1779 = scalar_lea.vmem %s7, 144
        %v1780 = vld [vmem:[%s1779] sm:$0xff]
        %v1781 = vld [vmem:[%s1779 + $0x8] sm:$0xff]
        %v1782 = vld [vmem:[%s1779 + $0x10] sm:$0xff]
        %v1783 = vld [vmem:[%s1779 + $0x18] sm:$0xff]
        %v1784 = vld [vmem:[%s1779 + $0x20] sm:$0xff]
        %v1785 = vld [vmem:[%s1779 + $0x28] sm:$0xff]
        %v1786 = vpack.c.bf16 %v1781, %v1780
        %v1787 = vpack.c.bf16 %v1783, %v1782
        %v1788 = vpack.c.bf16 %v1785, %v1784
        %s1789 = scalar_lea.vmem %s8, 3
        %v1790 = vld [vmem:[%s1789] sm:$0x1]
        %v1792 = vlaneseq
        %v1793 = vshrl.u32 %v1792, 7
        %v1794 = vsub.s32 0, %v1793
        %v1795 = vrot.slane %v1790, %v1794
        %1797 = vmatprep.subr.bf16.mxu0 0
        %1798 = vmatpush1.bf16.msra.mxu0 0
        %1799 = vmatprep.subr.bf16.mxu0 0
        %1800 = vmatpush1.bf16.msra.mxu0 0
        %1801 = vmatprep.subr.bf16.mxu0 0
        %1802 = vmatpush1.bf16.msra.mxu0 0
        %1803 = vmatprep.subr.bf16.mxu0 0
        %1804 = vmatpush1.bf16.msra.mxu0 0
        %1805 = vmatprep.subr.bf16.mxu0 0
        %1806 = vmatpush1.bf16.msra.mxu0 0
        %1807 = vmatprep.subr.bf16.mxu0 0
        %1808 = vmatpush1.bf16.msra.mxu0 %v1788
        %1809 = vmatprep.subr.bf16.mxu0 0
        %1810 = vmatpush1.bf16.msra.mxu0 %v1787
        %1811 = vmatprep.subr.bf16.mxu0 0
        %1812 = vmatpush1.bf16.msra.mxu0 %v1786
        %1813 = vmatprep.subr.bf16.mxu0 0
        %1814 = vmatpush2.bf16.msra.mxu0 0
        %1815 = vmatprep.subr.bf16.mxu0 0
        %1816 = vmatpush2.bf16.msra.mxu0 0
        %1817 = vmatprep.subr.bf16.mxu0 0
        %1818 = vmatpush2.bf16.msra.mxu0 0
        %1819 = vmatprep.subr.bf16.mxu0 0
        %1820 = vmatpush2.bf16.msra.mxu0 0
        %1821 = vmatprep.subr.bf16.mxu0 0
        %1822 = vmatpush2.bf16.msra.mxu0 0
        %1823 = vmatprep.subr.bf16.mxu0 0
        %1824 = vmatpush2.bf16.msra.mxu0 0
        %1825 = vmatprep.subr.bf16.mxu0 0
        %1826 = vmatpush2.bf16.msra.mxu0 0
        %1827 = vmatprep.subr.bf16.mxu0 0
        %1828 = vmatpush2.bf16.msra.mxu0 0
        %1829 = vmatprep.mubr.bf16.mxu0 0
        %1830 = vmatmul.mubr.bf16.gmra.mxu0 %v694
        %v1831 = vpop.f32.mrf.mxu0
        %v1832 = vadd.f32 %v1795, %v1831
        %v1833 = vpop.f32.mrf.mxu0
        %v1834 = vpop.f32.mrf.mxu0
        %v1835 = vadd.f32 %v1795, %v1834
        %v1836 = vpop.f32.mrf.mxu0
        %1837 = vdwg.mxu0
        %s1838 = scalar_lea.vmem %s9, 144
        %v1839 = vld [vmem:[%s1838] sm:$0xff]
        %v1840 = vld [vmem:[%s1838 + $0x8] sm:$0xff]
        %v1841 = vld [vmem:[%s1838 + $0x10] sm:$0xff]
        %v1842 = vld [vmem:[%s1838 + $0x18] sm:$0xff]
        %v1843 = vld [vmem:[%s1838 + $0x20] sm:$0xff]
        %v1844 = vld [vmem:[%s1838 + $0x28] sm:$0xff]
        %v1845 = vpack.c.bf16 %v1840, %v1839
        %v1846 = vpack.c.bf16 %v1842, %v1841
        %v1847 = vpack.c.bf16 %v1844, %v1843
        %s1848 = scalar_lea.vmem %s10, 3
        %v1849 = vld [vmem:[%s1848] sm:$0x1]
        %v1851 = vlaneseq
        %v1852 = vshrl.u32 %v1851, 7
        %v1853 = vsub.s32 0, %v1852
        %v1854 = vrot.slane %v1849, %v1853
        %1856 = vmatprep.subr.bf16.mxu0 0
        %1857 = vmatpush1.bf16.msra.mxu0 0
        %1858 = vmatprep.subr.bf16.mxu0 0
        %1859 = vmatpush1.bf16.msra.mxu0 0
        %1860 = vmatprep.subr.bf16.mxu0 0
        %1861 = vmatpush1.bf16.msra.mxu0 0
        %1862 = vmatprep.subr.bf16.mxu0 0
        %1863 = vmatpush1.bf16.msra.mxu0 0
        %1864 = vmatprep.subr.bf16.mxu0 0
        %1865 = vmatpush1.bf16.msra.mxu0 0
        %1866 = vmatprep.subr.bf16.mxu0 0
        %1867 = vmatpush1.bf16.msra.mxu0 %v1847
        %1868 = vmatprep.subr.bf16.mxu0 0
        %1869 = vmatpush1.bf16.msra.mxu0 %v1846
        %1870 = vmatprep.subr.bf16.mxu0 0
        %1871 = vmatpush1.bf16.msra.mxu0 %v1845
        %1872 = vmatprep.subr.bf16.mxu0 0
        %1873 = vmatpush2.bf16.msra.mxu0 0
        %1874 = vmatprep.subr.bf16.mxu0 0
        %1875 = vmatpush2.bf16.msra.mxu0 0
        %1876 = vmatprep.subr.bf16.mxu0 0
        %1877 = vmatpush2.bf16.msra.mxu0 0
        %1878 = vmatprep.subr.bf16.mxu0 0
        %1879 = vmatpush2.bf16.msra.mxu0 0
        %1880 = vmatprep.subr.bf16.mxu0 0
        %1881 = vmatpush2.bf16.msra.mxu0 0
        %1882 = vmatprep.subr.bf16.mxu0 0
        %1883 = vmatpush2.bf16.msra.mxu0 0
        %1884 = vmatprep.subr.bf16.mxu0 0
        %1885 = vmatpush2.bf16.msra.mxu0 0
        %1886 = vmatprep.subr.bf16.mxu0 0
        %1887 = vmatpush2.bf16.msra.mxu0 0
        %1888 = vmatprep.mubr.bf16.mxu0 0
        %1889 = vmatmul.mubr.bf16.gmra.mxu0 %v694
        %v1890 = vpop.f32.mrf.mxu0
        %v1891 = vadd.f32 %v1854, %v1890
        %v1892 = vpop.f32.mrf.mxu0
        %v1893 = vpop.f32.mrf.mxu0
        %v1894 = vadd.f32 %v1854, %v1893
        %v1895 = vpop.f32.mrf.mxu0
        %1896 = vdwg.mxu0
        %v1897 = vpack.c.bf16 %v1778, %v1777
        %v1898 = vpack.c.bf16 %v1835, %v1832
        %v1900 = vsel %vm855, %v1897, 0
        %v1903 = vsel %vm855, %v1898, 0
        %1905 = vmatprep.subr.bf16.mxu0 0
        %1906 = vmatpush1.bf16.xpose.msra.mxu0 0
        %1907 = vmatprep.subr.bf16.mxu0 0
        %1908 = vmatpush1.bf16.xpose.msra.mxu0 0
        %1909 = vmatprep.subr.bf16.mxu0 0
        %1910 = vmatpush1.bf16.xpose.msra.mxu0 0
        %1911 = vmatprep.subr.bf16.mxu0 0
        %1912 = vmatpush1.bf16.xpose.msra.mxu0 0
        %1913 = vmatprep.subr.bf16.mxu0 0
        %1914 = vmatpush1.bf16.xpose.msra.mxu0 0
        %1915 = vmatprep.subr.bf16.mxu0 0
        %1916 = vmatpush1.bf16.xpose.msra.mxu0 0
        %1917 = vmatprep.subr.bf16.mxu0 0
        %1918 = vmatpush1.bf16.xpose.msra.mxu0 0
        %1919 = vmatprep.subr.bf16.mxu0 0
        %1920 = vmatpush1.bf16.xpose.msra.mxu0 %v1903
        %1921 = vmatprep.subr.bf16.mxu0 0
        %1922 = vmatpush2.bf16.xpose.msra.mxu0 0
        %1923 = vmatprep.subr.bf16.mxu0 0
        %1924 = vmatpush2.bf16.xpose.msra.mxu0 0
        %1925 = vmatprep.subr.bf16.mxu0 0
        %1926 = vmatpush2.bf16.xpose.msra.mxu0 0
        %1927 = vmatprep.subr.bf16.mxu0 0
        %1928 = vmatpush2.bf16.xpose.msra.mxu0 0
        %1929 = vmatprep.subr.bf16.mxu0 0
        %1930 = vmatpush2.bf16.xpose.msra.mxu0 0
        %1931 = vmatprep.subr.bf16.mxu0 0
        %1932 = vmatpush2.bf16.xpose.msra.mxu0 0
        %1933 = vmatprep.subr.bf16.mxu0 0
        %1934 = vmatpush2.bf16.xpose.msra.mxu0 0
        %1935 = vmatprep.subr.bf16.mxu0 0
        %1936 = vmatpush2.bf16.xpose.msra.mxu0 0
        %1937 = vmatprep.mubr.bf16.mxu0 0
        %1938 = vmatmul.mubr.bf16.gmra.mxu0 %v1900
        %v1939 = vpop.f32.mrf.mxu0
        %v1940 = vadd.f32 0.0, %v1939
        %v1941 = vpop.f32.mrf.mxu0
        %v1942 = vpop.f32.mrf.mxu0
        %v1943 = vadd.f32 0.0, %v1942
        %v1944 = vpop.f32.mrf.mxu0
        %1945 = vdwg.mxu0
        %v1946 = vsel %vm903, %v1940, -inf
        %1947 = vmax.xlane.f32.xlu0 %v1946
        %v1948 = vpop.xlane.xlu0 %1947
        %v1949 = vsel %vm903, %v1943, -inf
        %1950 = vmax.xlane.f32.xlu0 %v1949
        %v1951 = vpop.xlane.xlu0 %1950
        %v1952 = vsub.f32 %v1940, %v1948
        %v1953 = vsub.f32 %v1943, %v1951
        %v1954 = vmul.f32 %v1952, 1.442695
        %v1955 = vpow.pop %v1954
        %v1956 = vmul.f32 %v1953, 1.442695
        %v1957 = vpow.pop %v1956
        %v1958 = vsel %vm903, %v1955, 0.0
        %1959 = vadd.xlane.f32.xlu0 %v1958
        %v1960 = vpop.xlane.xlu0 %1959
        %v1961 = vsel %vm903, %v1957, 0.0
        %1962 = vadd.xlane.f32.xlu0 %v1961
        %v1963 = vpop.xlane.xlu0 %1962
        %v1964 = vrcp.pop %v1960
        %v1965 = vrcp.pop %v1963
        %v1966 = vmul.f32 %v1955, %v1964
        %v1967 = vmul.f32 %v1957, %v1965
        %v1968 = vpack.c.bf16 %v1967, %v1966
        %v1969 = vpack.c.bf16 %v1894, %v1891
        %v1971 = vsel %vm903, %v1968, 0
        %1973 = vmatprep.subr.bf16.mxu0 0
        %1974 = vmatpush1.bf16.msra.mxu0 0
        %1975 = vmatprep.subr.bf16.mxu0 0
        %1976 = vmatpush1.bf16.msra.mxu0 0
        %1977 = vmatprep.subr.bf16.mxu0 0
        %1978 = vmatpush1.bf16.msra.mxu0 0
        %1979 = vmatprep.subr.bf16.mxu0 0
        %1980 = vmatpush1.bf16.msra.mxu0 0
        %1981 = vmatprep.subr.bf16.mxu0 0
        %1982 = vmatpush1.bf16.msra.mxu0 0
        %1983 = vmatprep.subr.bf16.mxu0 0
        %1984 = vmatpush1.bf16.msra.mxu0 0
        %1985 = vmatprep.subr.bf16.mxu0 0
        %1986 = vmatpush1.bf16.msra.mxu0 0
        %1987 = vmatprep.subr.bf16.mxu0 0
        %1988 = vmatpush1.bf16.msra.mxu0 %v1969
        %1989 = vmatprep.subr.bf16.mxu0 0
        %1990 = vmatpush2.bf16.msra.mxu0 0
        %1991 = vmatprep.subr.bf16.mxu0 0
        %1992 = vmatpush2.bf16.msra.mxu0 0
        %1993 = vmatprep.subr.bf16.mxu0 0
        %1994 = vmatpush2.bf16.msra.mxu0 0
        %1995 = vmatprep.subr.bf16.mxu0 0
        %1996 = vmatpush2.bf16.msra.mxu0 0
        %1997 = vmatprep.subr.bf16.mxu0 0
        %1998 = vmatpush2.bf16.msra.mxu0 0
        %1999 = vmatprep.subr.bf16.mxu0 0
        %2000 = vmatpush2.bf16.msra.mxu0 0
        %2001 = vmatprep.subr.bf16.mxu0 0
        %2002 = vmatpush2.bf16.msra.mxu0 0
        %2003 = vmatprep.subr.bf16.mxu0 0
        %2004 = vmatpush2.bf16.msra.mxu0 0
        %2005 = vmatprep.mubr.bf16.mxu0 0
        %2006 = vmatmul.mubr.bf16.gmra.mxu0 %v1971
        %v2007 = vpop.f32.mrf.mxu0
        %v2008 = vadd.f32 0.0, %v2007
        %v2009 = vpop.f32.mrf.mxu0
        %v2010 = vpop.f32.mrf.mxu0
        %v2011 = vadd.f32 0.0, %v2010
        %v2012 = vpop.f32.mrf.mxu0
        %2013 = vdwg.mxu0
        %v2014 = vpack.c.bf16 %v2011, %v2008
        %s2015 = scalar_lea.vmem %s11, 24
        %v2016 = vld [vmem:[%s2015] sm:$0xff]
        %v2017 = vpack.c.bf16 %v2016, %v2016
        %v2019 = vsel %vm855, %v2014, 0
        %v2022 = vsel %vm522, %v2017, 0
        %2024 = vmatprep.subr.bf16.mxu0 0
        %2025 = vmatpush1.bf16.msra.mxu0 0
        %2026 = vmatprep.subr.bf16.mxu0 0
        %2027 = vmatpush1.bf16.msra.mxu0 0
        %2028 = vmatprep.subr.bf16.mxu0 0
        %2029 = vmatpush1.bf16.msra.mxu0 0
        %2030 = vmatprep.subr.bf16.mxu0 0
        %2031 = vmatpush1.bf16.msra.mxu0 0
        %2032 = vmatprep.subr.bf16.mxu0 0
        %2033 = vmatpush1.bf16.msra.mxu0 0
        %2034 = vmatprep.subr.bf16.mxu0 0
        %2035 = vmatpush1.bf16.msra.mxu0 0
        %2036 = vmatprep.subr.bf16.mxu0 0
        %2037 = vmatpush1.bf16.msra.mxu0 0
        %2038 = vmatprep.subr.bf16.mxu0 0
        %2039 = vmatpush1.bf16.msra.mxu0 %v2022
        %2040 = vmatprep.subr.bf16.mxu0 0
        %2041 = vmatpush2.bf16.msra.mxu0 0
        %2042 = vmatprep.subr.bf16.mxu0 0
        %2043 = vmatpush2.bf16.msra.mxu0 0
        %2044 = vmatprep.subr.bf16.mxu0 0
        %2045 = vmatpush2.bf16.msra.mxu0 0
        %2046 = vmatprep.subr.bf16.mxu0 0
        %2047 = vmatpush2.bf16.msra.mxu0 0
        %2048 = vmatprep.subr.bf16.mxu0 0
        %2049 = vmatpush2.bf16.msra.mxu0 0
        %2050 = vmatprep.subr.bf16.mxu0 0
        %2051 = vmatpush2.bf16.msra.mxu0 0
        %2052 = vmatprep.subr.bf16.mxu0 0
        %2053 = vmatpush2.bf16.msra.mxu0 0
        %2054 = vmatprep.subr.bf16.mxu0 0
        %2055 = vmatpush2.bf16.msra.mxu0 0
        %2056 = vmatprep.mubr.bf16.mxu0 0
        %2057 = vmatmul.mubr.bf16.gmra.mxu0 %v2019
        %v2058 = vpop.f32.mrf.mxu0
        %v2059 = vadd.f32 0.0, %v2058
        %v2060 = vpop.f32.mrf.mxu0
        %v2061 = vpop.f32.mrf.mxu0
        %v2062 = vadd.f32 0.0, %v2061
        %v2063 = vpop.f32.mrf.mxu0
        %2064 = vdwg.mxu0
        %v2065 = vadd.f32 %v1716, %v2059
        %v2066 = vadd.f32 %v1717, %v2062
        %s2067 = scalar_lea.vmem %s5, 192
        %v2068 = vld [vmem:[%s2067] sm:$0xff]
        %v2069 = vld [vmem:[%s2067 + $0x8] sm:$0xff]
        %v2070 = vld [vmem:[%s2067 + $0x10] sm:$0xff]
        %v2071 = vld [vmem:[%s2067 + $0x18] sm:$0xff]
        %v2072 = vld [vmem:[%s2067 + $0x20] sm:$0xff]
        %v2073 = vld [vmem:[%s2067 + $0x28] sm:$0xff]
        %v2074 = vpack.c.bf16 %v2069, %v2068
        %v2075 = vpack.c.bf16 %v2071, %v2070
        %v2076 = vpack.c.bf16 %v2073, %v2072
        %s2077 = scalar_lea.vmem %s6, 4
        %v2078 = vld [vmem:[%s2077] sm:$0x1]
        %v2080 = vlaneseq
        %v2081 = vshrl.u32 %v2080, 7
        %v2082 = vsub.s32 0, %v2081
        %v2083 = vrot.slane %v2078, %v2082
        %2085 = vmatprep.subr.bf16.mxu0 0
        %2086 = vmatpush1.bf16.msra.mxu0 0
        %2087 = vmatprep.subr.bf16.mxu0 0
        %2088 = vmatpush1.bf16.msra.mxu0 0
        %2089 = vmatprep.subr.bf16.mxu0 0
        %2090 = vmatpush1.bf16.msra.mxu0 0
        %2091 = vmatprep.subr.bf16.mxu0 0
        %2092 = vmatpush1.bf16.msra.mxu0 0
        %2093 = vmatprep.subr.bf16.mxu0 0
        %2094 = vmatpush1.bf16.msra.mxu0 0
        %2095 = vmatprep.subr.bf16.mxu0 0
        %2096 = vmatpush1.bf16.msra.mxu0 %v2076
        %2097 = vmatprep.subr.bf16.mxu0 0
        %2098 = vmatpush1.bf16.msra.mxu0 %v2075
        %2099 = vmatprep.subr.bf16.mxu0 0
        %2100 = vmatpush1.bf16.msra.mxu0 %v2074
        %2101 = vmatprep.subr.bf16.mxu0 0
        %2102 = vmatpush2.bf16.msra.mxu0 0
        %2103 = vmatprep.subr.bf16.mxu0 0
        %2104 = vmatpush2.bf16.msra.mxu0 0
        %2105 = vmatprep.subr.bf16.mxu0 0
        %2106 = vmatpush2.bf16.msra.mxu0 0
        %2107 = vmatprep.subr.bf16.mxu0 0
        %2108 = vmatpush2.bf16.msra.mxu0 0
        %2109 = vmatprep.subr.bf16.mxu0 0
        %2110 = vmatpush2.bf16.msra.mxu0 0
        %2111 = vmatprep.subr.bf16.mxu0 0
        %2112 = vmatpush2.bf16.msra.mxu0 0
        %2113 = vmatprep.subr.bf16.mxu0 0
        %2114 = vmatpush2.bf16.msra.mxu0 0
        %2115 = vmatprep.subr.bf16.mxu0 0
        %2116 = vmatpush2.bf16.msra.mxu0 0
        %2117 = vmatprep.mubr.bf16.mxu0 0
        %2118 = vmatmul.mubr.bf16.gmra.mxu0 %v694
        %v2119 = vpop.f32.mrf.mxu0
        %v2120 = vadd.f32 %v2083, %v2119
        %v2121 = vpop.f32.mrf.mxu0
        %v2122 = vpop.f32.mrf.mxu0
        %v2123 = vadd.f32 %v2083, %v2122
        %v2124 = vpop.f32.mrf.mxu0
        %2125 = vdwg.mxu0
        %v2126 = vmul.f32 %v2120, 0.35355338
        %v2127 = vmul.f32 %v2123, 0.35355338
        %s2128 = scalar_lea.vmem %s7, 192
        %v2129 = vld [vmem:[%s2128] sm:$0xff]
        %v2130 = vld [vmem:[%s2128 + $0x8] sm:$0xff]
        %v2131 = vld [vmem:[%s2128 + $0x10] sm:$0xff]
        %v2132 = vld [vmem:[%s2128 + $0x18] sm:$0xff]
        %v2133 = vld [vmem:[%s2128 + $0x20] sm:$0xff]
        %v2134 = vld [vmem:[%s2128 + $0x28] sm:$0xff]
        %v2135 = vpack.c.bf16 %v2130, %v2129
        %v2136 = vpack.c.bf16 %v2132, %v2131
        %v2137 = vpack.c.bf16 %v2134, %v2133
        %s2138 = scalar_lea.vmem %s8, 4
        %v2139 = vld [vmem:[%s2138] sm:$0x1]
        %v2141 = vlaneseq
        %v2142 = vshrl.u32 %v2141, 7
        %v2143 = vsub.s32 0, %v2142
        %v2144 = vrot.slane %v2139, %v2143
        %2146 = vmatprep.subr.bf16.mxu0 0
        %2147 = vmatpush1.bf16.msra.mxu0 0
        %2148 = vmatprep.subr.bf16.mxu0 0
        %2149 = vmatpush1.bf16.msra.mxu0 0
        %2150 = vmatprep.subr.bf16.mxu0 0
        %2151 = vmatpush1.bf16.msra.mxu0 0
        %2152 = vmatprep.subr.bf16.mxu0 0
        %2153 = vmatpush1.bf16.msra.mxu0 0
        %2154 = vmatprep.subr.bf16.mxu0 0
        %2155 = vmatpush1.bf16.msra.mxu0 0
        %2156 = vmatprep.subr.bf16.mxu0 0
        %2157 = vmatpush1.bf16.msra.mxu0 %v2137
        %2158 = vmatprep.subr.bf16.mxu0 0
        %2159 = vmatpush1.bf16.msra.mxu0 %v2136
        %2160 = vmatprep.subr.bf16.mxu0 0
        %2161 = vmatpush1.bf16.msra.mxu0 %v2135
        %2162 = vmatprep.subr.bf16.mxu0 0
        %2163 = vmatpush2.bf16.msra.mxu0 0
        %2164 = vmatprep.subr.bf16.mxu0 0
        %2165 = vmatpush2.bf16.msra.mxu0 0
        %2166 = vmatprep.subr.bf16.mxu0 0
        %2167 = vmatpush2.bf16.msra.mxu0 0
        %2168 = vmatprep.subr.bf16.mxu0 0
        %2169 = vmatpush2.bf16.msra.mxu0 0
        %2170 = vmatprep.subr.bf16.mxu0 0
        %2171 = vmatpush2.bf16.msra.mxu0 0
        %2172 = vmatprep.subr.bf16.mxu0 0
        %2173 = vmatpush2.bf16.msra.mxu0 0
        %2174 = vmatprep.subr.bf16.mxu0 0
        %2175 = vmatpush2.bf16.msra.mxu0 0
        %2176 = vmatprep.subr.bf16.mxu0 0
        %2177 = vmatpush2.bf16.msra.mxu0 0
        %2178 = vmatprep.mubr.bf16.mxu0 0
        %2179 = vmatmul.mubr.bf16.gmra.mxu0 %v694
        %v2180 = vpop.f32.mrf.mxu0
        %v2181 = vadd.f32 %v2144, %v2180
        %v2182 = vpop.f32.mrf.mxu0
        %v2183 = vpop.f32.mrf.mxu0
        %v2184 = vadd.f32 %v2144, %v2183
        %v2185 = vpop.f32.mrf.mxu0
        %2186 = vdwg.mxu0
        %s2187 = scalar_lea.vmem %s9, 192
        %v2188 = vld [vmem:[%s2187] sm:$0xff]
        %v2189 = vld [vmem:[%s2187 + $0x8] sm:$0xff]
        %v2190 = vld [vmem:[%s2187 + $0x10] sm:$0xff]
        %v2191 = vld [vmem:[%s2187 + $0x18] sm:$0xff]
        %v2192 = vld [vmem:[%s2187 + $0x20] sm:$0xff]
        %v2193 = vld [vmem:[%s2187 + $0x28] sm:$0xff]
        %v2194 = vpack.c.bf16 %v2189, %v2188
        %v2195 = vpack.c.bf16 %v2191, %v2190
        %v2196 = vpack.c.bf16 %v2193, %v2192
        %s2197 = scalar_lea.vmem %s10, 4
        %v2198 = vld [vmem:[%s2197] sm:$0x1]
        %v2200 = vlaneseq
        %v2201 = vshrl.u32 %v2200, 7
        %v2202 = vsub.s32 0, %v2201
        %v2203 = vrot.slane %v2198, %v2202
        %2205 = vmatprep.subr.bf16.mxu0 0
        %2206 = vmatpush1.bf16.msra.mxu0 0
        %2207 = vmatprep.subr.bf16.mxu0 0
        %2208 = vmatpush1.bf16.msra.mxu0 0
        %2209 = vmatprep.subr.bf16.mxu0 0
        %2210 = vmatpush1.bf16.msra.mxu0 0
        %2211 = vmatprep.subr.bf16.mxu0 0
        %2212 = vmatpush1.bf16.msra.mxu0 0
        %2213 = vmatprep.subr.bf16.mxu0 0
        %2214 = vmatpush1.bf16.msra.mxu0 0
        %2215 = vmatprep.subr.bf16.mxu0 0
        %2216 = vmatpush1.bf16.msra.mxu0 %v2196
        %2217 = vmatprep.subr.bf16.mxu0 0
        %2218 = vmatpush1.bf16.msra.mxu0 %v2195
        %2219 = vmatprep.subr.bf16.mxu0 0
        %2220 = vmatpush1.bf16.msra.mxu0 %v2194
        %2221 = vmatprep.subr.bf16.mxu0 0
        %2222 = vmatpush2.bf16.msra.mxu0 0
        %2223 = vmatprep.subr.bf16.mxu0 0
        %2224 = vmatpush2.bf16.msra.mxu0 0
        %2225 = vmatprep.subr.bf16.mxu0 0
        %2226 = vmatpush2.bf16.msra.mxu0 0
        %2227 = vmatprep.subr.bf16.mxu0 0
        %2228 = vmatpush2.bf16.msra.mxu0 0
        %2229 = vmatprep.subr.bf16.mxu0 0
        %2230 = vmatpush2.bf16.msra.mxu0 0
        %2231 = vmatprep.subr.bf16.mxu0 0
        %2232 = vmatpush2.bf16.msra.mxu0 0
        %2233 = vmatprep.subr.bf16.mxu0 0
        %2234 = vmatpush2.bf16.msra.mxu0 0
        %2235 = vmatprep.subr.bf16.mxu0 0
        %2236 = vmatpush2.bf16.msra.mxu0 0
        %2237 = vmatprep.mubr.bf16.mxu0 0
        %2238 = vmatmul.mubr.bf16.gmra.mxu0 %v694
        %v2239 = vpop.f32.mrf.mxu0
        %v2240 = vadd.f32 %v2203, %v2239
        %v2241 = vpop.f32.mrf.mxu0
        %v2242 = vpop.f32.mrf.mxu0
        %v2243 = vadd.f32 %v2203, %v2242
        %v2244 = vpop.f32.mrf.mxu0
        %2245 = vdwg.mxu0
        %v2246 = vpack.c.bf16 %v2127, %v2126
        %v2247 = vpack.c.bf16 %v2184, %v2181
        %v2249 = vsel %vm855, %v2246, 0
        %v2252 = vsel %vm855, %v2247, 0
        %2254 = vmatprep.subr.bf16.mxu0 0
        %2255 = vmatpush1.bf16.xpose.msra.mxu0 0
        %2256 = vmatprep.subr.bf16.mxu0 0
        %2257 = vmatpush1.bf16.xpose.msra.mxu0 0
        %2258 = vmatprep.subr.bf16.mxu0 0
        %2259 = vmatpush1.bf16.xpose.msra.mxu0 0
        %2260 = vmatprep.subr.bf16.mxu0 0
        %2261 = vmatpush1.bf16.xpose.msra.mxu0 0
        %2262 = vmatprep.subr.bf16.mxu0 0
        %2263 = vmatpush1.bf16.xpose.msra.mxu0 0
        %2264 = vmatprep.subr.bf16.mxu0 0
        %2265 = vmatpush1.bf16.xpose.msra.mxu0 0
        %2266 = vmatprep.subr.bf16.mxu0 0
        %2267 = vmatpush1.bf16.xpose.msra.mxu0 0
        %2268 = vmatprep.subr.bf16.mxu0 0
        %2269 = vmatpush1.bf16.xpose.msra.mxu0 %v2252
        %2270 = vmatprep.subr.bf16.mxu0 0
        %2271 = vmatpush2.bf16.xpose.msra.mxu0 0
        %2272 = vmatprep.subr.bf16.mxu0 0
        %2273 = vmatpush2.bf16.xpose.msra.mxu0 0
        %2274 = vmatprep.subr.bf16.mxu0 0
        %2275 = vmatpush2.bf16.xpose.msra.mxu0 0
        %2276 = vmatprep.subr.bf16.mxu0 0
        %2277 = vmatpush2.bf16.xpose.msra.mxu0 0
        %2278 = vmatprep.subr.bf16.mxu0 0
        %2279 = vmatpush2.bf16.xpose.msra.mxu0 0
        %2280 = vmatprep.subr.bf16.mxu0 0
        %2281 = vmatpush2.bf16.xpose.msra.mxu0 0
        %2282 = vmatprep.subr.bf16.mxu0 0
        %2283 = vmatpush2.bf16.xpose.msra.mxu0 0
        %2284 = vmatprep.subr.bf16.mxu0 0
        %2285 = vmatpush2.bf16.xpose.msra.mxu0 0
        %2286 = vmatprep.mubr.bf16.mxu0 0
        %2287 = vmatmul.mubr.bf16.gmra.mxu0 %v2249
        %v2288 = vpop.f32.mrf.mxu0
        %v2289 = vadd.f32 0.0, %v2288
        %v2290 = vpop.f32.mrf.mxu0
        %v2291 = vpop.f32.mrf.mxu0
        %v2292 = vadd.f32 0.0, %v2291
        %v2293 = vpop.f32.mrf.mxu0
        %2294 = vdwg.mxu0
        %v2295 = vsel %vm903, %v2289, -inf
        %2296 = vmax.xlane.f32.xlu0 %v2295
        %v2297 = vpop.xlane.xlu0 %2296
        %v2298 = vsel %vm903, %v2292, -inf
        %2299 = vmax.xlane.f32.xlu0 %v2298
        %v2300 = vpop.xlane.xlu0 %2299
        %v2301 = vsub.f32 %v2289, %v2297
        %v2302 = vsub.f32 %v2292, %v2300
        %v2303 = vmul.f32 %v2301, 1.442695
        %v2304 = vpow.pop %v2303
        %v2305 = vmul.f32 %v2302, 1.442695
        %v2306 = vpow.pop %v2305
        %v2307 = vsel %vm903, %v2304, 0.0
        %2308 = vadd.xlane.f32.xlu0 %v2307
        %v2309 = vpop.xlane.xlu0 %2308
        %v2310 = vsel %vm903, %v2306, 0.0
        %2311 = vadd.xlane.f32.xlu0 %v2310
        %v2312 = vpop.xlane.xlu0 %2311
        %v2313 = vrcp.pop %v2309
        %v2314 = vrcp.pop %v2312
        %v2315 = vmul.f32 %v2304, %v2313
        %v2316 = vmul.f32 %v2306, %v2314
        %v2317 = vpack.c.bf16 %v2316, %v2315
        %v2318 = vpack.c.bf16 %v2243, %v2240
        %v2320 = vsel %vm903, %v2317, 0
        %2322 = vmatprep.subr.bf16.mxu0 0
        %2323 = vmatpush1.bf16.msra.mxu0 0
        %2324 = vmatprep.subr.bf16.mxu0 0
        %2325 = vmatpush1.bf16.msra.mxu0 0
        %2326 = vmatprep.subr.bf16.mxu0 0
        %2327 = vmatpush1.bf16.msra.mxu0 0
        %2328 = vmatprep.subr.bf16.mxu0 0
        %2329 = vmatpush1.bf16.msra.mxu0 0
        %2330 = vmatprep.subr.bf16.mxu0 0
        %2331 = vmatpush1.bf16.msra.mxu0 0
        %2332 = vmatprep.subr.bf16.mxu0 0
        %2333 = vmatpush1.bf16.msra.mxu0 0
        %2334 = vmatprep.subr.bf16.mxu0 0
        %2335 = vmatpush1.bf16.msra.mxu0 0
        %2336 = vmatprep.subr.bf16.mxu0 0
        %2337 = vmatpush1.bf16.msra.mxu0 %v2318
        %2338 = vmatprep.subr.bf16.mxu0 0
        %2339 = vmatpush2.bf16.msra.mxu0 0
        %2340 = vmatprep.subr.bf16.mxu0 0
        %2341 = vmatpush2.bf16.msra.mxu0 0
        %2342 = vmatprep.subr.bf16.mxu0 0
        %2343 = vmatpush2.bf16.msra.mxu0 0
        %2344 = vmatprep.subr.bf16.mxu0 0
        %2345 = vmatpush2.bf16.msra.mxu0 0
        %2346 = vmatprep.subr.bf16.mxu0 0
        %2347 = vmatpush2.bf16.msra.mxu0 0
        %2348 = vmatprep.subr.bf16.mxu0 0
        %2349 = vmatpush2.bf16.msra.mxu0 0
        %2350 = vmatprep.subr.bf16.mxu0 0
        %2351 = vmatpush2.bf16.msra.mxu0 0
        %2352 = vmatprep.subr.bf16.mxu0 0
        %2353 = vmatpush2.bf16.msra.mxu0 0
        %2354 = vmatprep.mubr.bf16.mxu0 0
        %2355 = vmatmul.mubr.bf16.gmra.mxu0 %v2320
        %v2356 = vpop.f32.mrf.mxu0
        %v2357 = vadd.f32 0.0, %v2356
        %v2358 = vpop.f32.mrf.mxu0
        %v2359 = vpop.f32.mrf.mxu0
        %v2360 = vadd.f32 0.0, %v2359
        %v2361 = vpop.f32.mrf.mxu0
        %2362 = vdwg.mxu0
        %v2363 = vpack.c.bf16 %v2360, %v2357
        %s2364 = scalar_lea.vmem %s11, 32
        %v2365 = vld [vmem:[%s2364] sm:$0xff]
        %v2366 = vpack.c.bf16 %v2365, %v2365
        %v2368 = vsel %vm855, %v2363, 0
        %v2371 = vsel %vm522, %v2366, 0
        %2373 = vmatprep.subr.bf16.mxu0 0
        %2374 = vmatpush1.bf16.msra.mxu0 0
        %2375 = vmatprep.subr.bf16.mxu0 0
        %2376 = vmatpush1.bf16.msra.mxu0 0
        %2377 = vmatprep.subr.bf16.mxu0 0
        %2378 = vmatpush1.bf16.msra.mxu0 0
        %2379 = vmatprep.subr.bf16.mxu0 0
        %2380 = vmatpush1.bf16.msra.mxu0 0
        %2381 = vmatprep.subr.bf16.mxu0 0
        %2382 = vmatpush1.bf16.msra.mxu0 0
        %2383 = vmatprep.subr.bf16.mxu0 0
        %2384 = vmatpush1.bf16.msra.mxu0 0
        %2385 = vmatprep.subr.bf16.mxu0 0
        %2386 = vmatpush1.bf16.msra.mxu0 0
        %2387 = vmatprep.subr.bf16.mxu0 0
        %2388 = vmatpush1.bf16.msra.mxu0 %v2371
        %2389 = vmatprep.subr.bf16.mxu0 0
        %2390 = vmatpush2.bf16.msra.mxu0 0
        %2391 = vmatprep.subr.bf16.mxu0 0
        %2392 = vmatpush2.bf16.msra.mxu0 0
        %2393 = vmatprep.subr.bf16.mxu0 0
        %2394 = vmatpush2.bf16.msra.mxu0 0
        %2395 = vmatprep.subr.bf16.mxu0 0
        %2396 = vmatpush2.bf16.msra.mxu0 0
        %2397 = vmatprep.subr.bf16.mxu0 0
        %2398 = vmatpush2.bf16.msra.mxu0 0
        %2399 = vmatprep.subr.bf16.mxu0 0
        %2400 = vmatpush2.bf16.msra.mxu0 0
        %2401 = vmatprep.subr.bf16.mxu0 0
        %2402 = vmatpush2.bf16.msra.mxu0 0
        %2403 = vmatprep.subr.bf16.mxu0 0
        %2404 = vmatpush2.bf16.msra.mxu0 0
        %2405 = vmatprep.mubr.bf16.mxu0 0
        %2406 = vmatmul.mubr.bf16.gmra.mxu0 %v2368
        %v2407 = vpop.f32.mrf.mxu0
        %v2408 = vadd.f32 0.0, %v2407
        %v2409 = vpop.f32.mrf.mxu0
        %v2410 = vpop.f32.mrf.mxu0
        %v2411 = vadd.f32 0.0, %v2410
        %v2412 = vpop.f32.mrf.mxu0
        %2413 = vdwg.mxu0
        %v2414 = vadd.f32 %v2065, %v2408
        %v2415 = vadd.f32 %v2066, %v2411
        %s2416 = scalar_lea.vmem %s5, 240
        %v2417 = vld [vmem:[%s2416] sm:$0xff]
        %v2418 = vld [vmem:[%s2416 + $0x8] sm:$0xff]
        %v2419 = vld [vmem:[%s2416 + $0x10] sm:$0xff]
        %v2420 = vld [vmem:[%s2416 + $0x18] sm:$0xff]
        %v2421 = vld [vmem:[%s2416 + $0x20] sm:$0xff]
        %v2422 = vld [vmem:[%s2416 + $0x28] sm:$0xff]
        %v2423 = vpack.c.bf16 %v2418, %v2417
        %v2424 = vpack.c.bf16 %v2420, %v2419
        %v2425 = vpack.c.bf16 %v2422, %v2421
        %s2426 = scalar_lea.vmem %s6, 5
        %v2427 = vld [vmem:[%s2426] sm:$0x1]
        %v2429 = vlaneseq
        %v2430 = vshrl.u32 %v2429, 7
        %v2431 = vsub.s32 0, %v2430
        %v2432 = vrot.slane %v2427, %v2431
        %2434 = vmatprep.subr.bf16.mxu0 0
        %2435 = vmatpush1.bf16.msra.mxu0 0
        %2436 = vmatprep.subr.bf16.mxu0 0
        %2437 = vmatpush1.bf16.msra.mxu0 0
        %2438 = vmatprep.subr.bf16.mxu0 0
        %2439 = vmatpush1.bf16.msra.mxu0 0
        %2440 = vmatprep.subr.bf16.mxu0 0
        %2441 = vmatpush1.bf16.msra.mxu0 0
        %2442 = vmatprep.subr.bf16.mxu0 0
        %2443 = vmatpush1.bf16.msra.mxu0 0
        %2444 = vmatprep.subr.bf16.mxu0 0
        %2445 = vmatpush1.bf16.msra.mxu0 %v2425
        %2446 = vmatprep.subr.bf16.mxu0 0
        %2447 = vmatpush1.bf16.msra.mxu0 %v2424
        %2448 = vmatprep.subr.bf16.mxu0 0
        %2449 = vmatpush1.bf16.msra.mxu0 %v2423
        %2450 = vmatprep.subr.bf16.mxu0 0
        %2451 = vmatpush2.bf16.msra.mxu0 0
        %2452 = vmatprep.subr.bf16.mxu0 0
        %2453 = vmatpush2.bf16.msra.mxu0 0
        %2454 = vmatprep.subr.bf16.mxu0 0
        %2455 = vmatpush2.bf16.msra.mxu0 0
        %2456 = vmatprep.subr.bf16.mxu0 0
        %2457 = vmatpush2.bf16.msra.mxu0 0
        %2458 = vmatprep.subr.bf16.mxu0 0
        %2459 = vmatpush2.bf16.msra.mxu0 0
        %2460 = vmatprep.subr.bf16.mxu0 0
        %2461 = vmatpush2.bf16.msra.mxu0 0
        %2462 = vmatprep.subr.bf16.mxu0 0
        %2463 = vmatpush2.bf16.msra.mxu0 0
        %2464 = vmatprep.subr.bf16.mxu0 0
        %2465 = vmatpush2.bf16.msra.mxu0 0
        %2466 = vmatprep.mubr.bf16.mxu0 0
        %2467 = vmatmul.mubr.bf16.gmra.mxu0 %v694
        %v2468 = vpop.f32.mrf.mxu0
        %v2469 = vadd.f32 %v2432, %v2468
        %v2470 = vpop.f32.mrf.mxu0
        %v2471 = vpop.f32.mrf.mxu0
        %v2472 = vadd.f32 %v2432, %v2471
        %v2473 = vpop.f32.mrf.mxu0
        %2474 = vdwg.mxu0
        %v2475 = vmul.f32 %v2469, 0.35355338
        %v2476 = vmul.f32 %v2472, 0.35355338
        %s2477 = scalar_lea.vmem %s7, 240
        %v2478 = vld [vmem:[%s2477] sm:$0xff]
        %v2479 = vld [vmem:[%s2477 + $0x8] sm:$0xff]
        %v2480 = vld [vmem:[%s2477 + $0x10] sm:$0xff]
        %v2481 = vld [vmem:[%s2477 + $0x18] sm:$0xff]
        %v2482 = vld [vmem:[%s2477 + $0x20] sm:$0xff]
        %v2483 = vld [vmem:[%s2477 + $0x28] sm:$0xff]
        %v2484 = vpack.c.bf16 %v2479, %v2478
        %v2485 = vpack.c.bf16 %v2481, %v2480
        %v2486 = vpack.c.bf16 %v2483, %v2482
        %s2487 = scalar_lea.vmem %s8, 5
        %v2488 = vld [vmem:[%s2487] sm:$0x1]
        %v2490 = vlaneseq
        %v2491 = vshrl.u32 %v2490, 7
        %v2492 = vsub.s32 0, %v2491
        %v2493 = vrot.slane %v2488, %v2492
        %2495 = vmatprep.subr.bf16.mxu0 0
        %2496 = vmatpush1.bf16.msra.mxu0 0
        %2497 = vmatprep.subr.bf16.mxu0 0
        %2498 = vmatpush1.bf16.msra.mxu0 0
        %2499 = vmatprep.subr.bf16.mxu0 0
        %2500 = vmatpush1.bf16.msra.mxu0 0
        %2501 = vmatprep.subr.bf16.mxu0 0
        %2502 = vmatpush1.bf16.msra.mxu0 0
        %2503 = vmatprep.subr.bf16.mxu0 0
        %2504 = vmatpush1.bf16.msra.mxu0 0
        %2505 = vmatprep.subr.bf16.mxu0 0
        %2506 = vmatpush1.bf16.msra.mxu0 %v2486
        %2507 = vmatprep.subr.bf16.mxu0 0
        %2508 = vmatpush1.bf16.msra.mxu0 %v2485
        %2509 = vmatprep.subr.bf16.mxu0 0
        %2510 = vmatpush1.bf16.msra.mxu0 %v2484
        %2511 = vmatprep.subr.bf16.mxu0 0
        %2512 = vmatpush2.bf16.msra.mxu0 0
        %2513 = vmatprep.subr.bf16.mxu0 0
        %2514 = vmatpush2.bf16.msra.mxu0 0
        %2515 = vmatprep.subr.bf16.mxu0 0
        %2516 = vmatpush2.bf16.msra.mxu0 0
        %2517 = vmatprep.subr.bf16.mxu0 0
        %2518 = vmatpush2.bf16.msra.mxu0 0
        %2519 = vmatprep.subr.bf16.mxu0 0
        %2520 = vmatpush2.bf16.msra.mxu0 0
        %2521 = vmatprep.subr.bf16.mxu0 0
        %2522 = vmatpush2.bf16.msra.mxu0 0
        %2523 = vmatprep.subr.bf16.mxu0 0
        %2524 = vmatpush2.bf16.msra.mxu0 0
        %2525 = vmatprep.subr.bf16.mxu0 0
        %2526 = vmatpush2.bf16.msra.mxu0 0
        %2527 = vmatprep.mubr.bf16.mxu0 0
        %2528 = vmatmul.mubr.bf16.gmra.mxu0 %v694
        %v2529 = vpop.f32.mrf.mxu0
        %v2530 = vadd.f32 %v2493, %v2529
        %v2531 = vpop.f32.mrf.mxu0
        %v2532 = vpop.f32.mrf.mxu0
        %v2533 = vadd.f32 %v2493, %v2532
        %v2534 = vpop.f32.mrf.mxu0
        %2535 = vdwg.mxu0
        %s2536 = scalar_lea.vmem %s9, 240
        %v2537 = vld [vmem:[%s2536] sm:$0xff]
        %v2538 = vld [vmem:[%s2536 + $0x8] sm:$0xff]
        %v2539 = vld [vmem:[%s2536 + $0x10] sm:$0xff]
        %v2540 = vld [vmem:[%s2536 + $0x18] sm:$0xff]
        %v2541 = vld [vmem:[%s2536 + $0x20] sm:$0xff]
        %v2542 = vld [vmem:[%s2536 + $0x28] sm:$0xff]
        %v2543 = vpack.c.bf16 %v2538, %v2537
        %v2544 = vpack.c.bf16 %v2540, %v2539
        %v2545 = vpack.c.bf16 %v2542, %v2541
        %s2546 = scalar_lea.vmem %s10, 5
        %v2547 = vld [vmem:[%s2546] sm:$0x1]
        %v2549 = vlaneseq
        %v2550 = vshrl.u32 %v2549, 7
        %v2551 = vsub.s32 0, %v2550
        %v2552 = vrot.slane %v2547, %v2551
        %2554 = vmatprep.subr.bf16.mxu0 0
        %2555 = vmatpush1.bf16.msra.mxu0 0
        %2556 = vmatprep.subr.bf16.mxu0 0
        %2557 = vmatpush1.bf16.msra.mxu0 0
        %2558 = vmatprep.subr.bf16.mxu0 0
        %2559 = vmatpush1.bf16.msra.mxu0 0
        %2560 = vmatprep.subr.bf16.mxu0 0
        %2561 = vmatpush1.bf16.msra.mxu0 0
        %2562 = vmatprep.subr.bf16.mxu0 0
        %2563 = vmatpush1.bf16.msra.mxu0 0
        %2564 = vmatprep.subr.bf16.mxu0 0
        %2565 = vmatpush1.bf16.msra.mxu0 %v2545
        %2566 = vmatprep.subr.bf16.mxu0 0
        %2567 = vmatpush1.bf16.msra.mxu0 %v2544
        %2568 = vmatprep.subr.bf16.mxu0 0
        %2569 = vmatpush1.bf16.msra.mxu0 %v2543
        %2570 = vmatprep.subr.bf16.mxu0 0
        %2571 = vmatpush2.bf16.msra.mxu0 0
        %2572 = vmatprep.subr.bf16.mxu0 0
        %2573 = vmatpush2.bf16.msra.mxu0 0
        %2574 = vmatprep.subr.bf16.mxu0 0
        %2575 = vmatpush2.bf16.msra.mxu0 0
        %2576 = vmatprep.subr.bf16.mxu0 0
        %2577 = vmatpush2.bf16.msra.mxu0 0
        %2578 = vmatprep.subr.bf16.mxu0 0
        %2579 = vmatpush2.bf16.msra.mxu0 0
        %2580 = vmatprep.subr.bf16.mxu0 0
        %2581 = vmatpush2.bf16.msra.mxu0 0
        %2582 = vmatprep.subr.bf16.mxu0 0
        %2583 = vmatpush2.bf16.msra.mxu0 0
        %2584 = vmatprep.subr.bf16.mxu0 0
        %2585 = vmatpush2.bf16.msra.mxu0 0
        %2586 = vmatprep.mubr.bf16.mxu0 0
        %2587 = vmatmul.mubr.bf16.gmra.mxu0 %v694
        %v2588 = vpop.f32.mrf.mxu0
        %v2589 = vadd.f32 %v2552, %v2588
        %v2590 = vpop.f32.mrf.mxu0
        %v2591 = vpop.f32.mrf.mxu0
        %v2592 = vadd.f32 %v2552, %v2591
        %v2593 = vpop.f32.mrf.mxu0
        %2594 = vdwg.mxu0
        %v2595 = vpack.c.bf16 %v2476, %v2475
        %v2596 = vpack.c.bf16 %v2533, %v2530
        %v2598 = vsel %vm855, %v2595, 0
        %v2601 = vsel %vm855, %v2596, 0
        %2603 = vmatprep.subr.bf16.mxu0 0
        %2604 = vmatpush1.bf16.xpose.msra.mxu0 0
        %2605 = vmatprep.subr.bf16.mxu0 0
        %2606 = vmatpush1.bf16.xpose.msra.mxu0 0
        %2607 = vmatprep.subr.bf16.mxu0 0
        %2608 = vmatpush1.bf16.xpose.msra.mxu0 0
        %2609 = vmatprep.subr.bf16.mxu0 0
        %2610 = vmatpush1.bf16.xpose.msra.mxu0 0
        %2611 = vmatprep.subr.bf16.mxu0 0
        %2612 = vmatpush1.bf16.xpose.msra.mxu0 0
        %2613 = vmatprep.subr.bf16.mxu0 0
        %2614 = vmatpush1.bf16.xpose.msra.mxu0 0
        %2615 = vmatprep.subr.bf16.mxu0 0
        %2616 = vmatpush1.bf16.xpose.msra.mxu0 0
        %2617 = vmatprep.subr.bf16.mxu0 0
        %2618 = vmatpush1.bf16.xpose.msra.mxu0 %v2601
        %2619 = vmatprep.subr.bf16.mxu0 0
        %2620 = vmatpush2.bf16.xpose.msra.mxu0 0
        %2621 = vmatprep.subr.bf16.mxu0 0
        %2622 = vmatpush2.bf16.xpose.msra.mxu0 0
        %2623 = vmatprep.subr.bf16.mxu0 0
        %2624 = vmatpush2.bf16.xpose.msra.mxu0 0
        %2625 = vmatprep.subr.bf16.mxu0 0
        %2626 = vmatpush2.bf16.xpose.msra.mxu0 0
        %2627 = vmatprep.subr.bf16.mxu0 0
        %2628 = vmatpush2.bf16.xpose.msra.mxu0 0
        %2629 = vmatprep.subr.bf16.mxu0 0
        %2630 = vmatpush2.bf16.xpose.msra.mxu0 0
        %2631 = vmatprep.subr.bf16.mxu0 0
        %2632 = vmatpush2.bf16.xpose.msra.mxu0 0
        %2633 = vmatprep.subr.bf16.mxu0 0
        %2634 = vmatpush2.bf16.xpose.msra.mxu0 0
        %2635 = vmatprep.mubr.bf16.mxu0 0
        %2636 = vmatmul.mubr.bf16.gmra.mxu0 %v2598
        %v2637 = vpop.f32.mrf.mxu0
        %v2638 = vadd.f32 0.0, %v2637
        %v2639 = vpop.f32.mrf.mxu0
        %v2640 = vpop.f32.mrf.mxu0
        %v2641 = vadd.f32 0.0, %v2640
        %v2642 = vpop.f32.mrf.mxu0
        %2643 = vdwg.mxu0
        %v2644 = vsel %vm903, %v2638, -inf
        %2645 = vmax.xlane.f32.xlu0 %v2644
        %v2646 = vpop.xlane.xlu0 %2645
        %v2647 = vsel %vm903, %v2641, -inf
        %2648 = vmax.xlane.f32.xlu0 %v2647
        %v2649 = vpop.xlane.xlu0 %2648
        %v2650 = vsub.f32 %v2638, %v2646
        %v2651 = vsub.f32 %v2641, %v2649
        %v2652 = vmul.f32 %v2650, 1.442695
        %v2653 = vpow.pop %v2652
        %v2654 = vmul.f32 %v2651, 1.442695
        %v2655 = vpow.pop %v2654
        %v2656 = vsel %vm903, %v2653, 0.0
        %2657 = vadd.xlane.f32.xlu0 %v2656
        %v2658 = vpop.xlane.xlu0 %2657
        %v2659 = vsel %vm903, %v2655, 0.0
        %2660 = vadd.xlane.f32.xlu0 %v2659
        %v2661 = vpop.xlane.xlu0 %2660
        %v2662 = vrcp.pop %v2658
        %v2663 = vrcp.pop %v2661
        %v2664 = vmul.f32 %v2653, %v2662
        %v2665 = vmul.f32 %v2655, %v2663
        %v2666 = vpack.c.bf16 %v2665, %v2664
        %v2667 = vpack.c.bf16 %v2592, %v2589
        %v2669 = vsel %vm903, %v2666, 0
        %2671 = vmatprep.subr.bf16.mxu0 0
        %2672 = vmatpush1.bf16.msra.mxu0 0
        %2673 = vmatprep.subr.bf16.mxu0 0
        %2674 = vmatpush1.bf16.msra.mxu0 0
        %2675 = vmatprep.subr.bf16.mxu0 0
        %2676 = vmatpush1.bf16.msra.mxu0 0
        %2677 = vmatprep.subr.bf16.mxu0 0
        %2678 = vmatpush1.bf16.msra.mxu0 0
        %2679 = vmatprep.subr.bf16.mxu0 0
        %2680 = vmatpush1.bf16.msra.mxu0 0
        %2681 = vmatprep.subr.bf16.mxu0 0
        %2682 = vmatpush1.bf16.msra.mxu0 0
        %2683 = vmatprep.subr.bf16.mxu0 0
        %2684 = vmatpush1.bf16.msra.mxu0 0
        %2685 = vmatprep.subr.bf16.mxu0 0
        %2686 = vmatpush1.bf16.msra.mxu0 %v2667
        %2687 = vmatprep.subr.bf16.mxu0 0
        %2688 = vmatpush2.bf16.msra.mxu0 0
        %2689 = vmatprep.subr.bf16.mxu0 0
        %2690 = vmatpush2.bf16.msra.mxu0 0
        %2691 = vmatprep.subr.bf16.mxu0 0
        %2692 = vmatpush2.bf16.msra.mxu0 0
        %2693 = vmatprep.subr.bf16.mxu0 0
        %2694 = vmatpush2.bf16.msra.mxu0 0
        %2695 = vmatprep.subr.bf16.mxu0 0
        %2696 = vmatpush2.bf16.msra.mxu0 0
        %2697 = vmatprep.subr.bf16.mxu0 0
        %2698 = vmatpush2.bf16.msra.mxu0 0
        %2699 = vmatprep.subr.bf16.mxu0 0
        %2700 = vmatpush2.bf16.msra.mxu0 0
        %2701 = vmatprep.subr.bf16.mxu0 0
        %2702 = vmatpush2.bf16.msra.mxu0 0
        %2703 = vmatprep.mubr.bf16.mxu0 0
        %2704 = vmatmul.mubr.bf16.gmra.mxu0 %v2669
        %v2705 = vpop.f32.mrf.mxu0
        %v2706 = vadd.f32 0.0, %v2705
        %v2707 = vpop.f32.mrf.mxu0
        %v2708 = vpop.f32.mrf.mxu0
        %v2709 = vadd.f32 0.0, %v2708
        %v2710 = vpop.f32.mrf.mxu0
        %2711 = vdwg.mxu0
        %v2712 = vpack.c.bf16 %v2709, %v2706
        %s2713 = scalar_lea.vmem %s11, 40
        %v2714 = vld [vmem:[%s2713] sm:$0xff]
        %v2715 = vpack.c.bf16 %v2714, %v2714
        %v2717 = vsel %vm855, %v2712, 0
        %v2720 = vsel %vm522, %v2715, 0
        %2722 = vmatprep.subr.bf16.mxu0 0
        %2723 = vmatpush1.bf16.msra.mxu0 0
        %2724 = vmatprep.subr.bf16.mxu0 0
        %2725 = vmatpush1.bf16.msra.mxu0 0
        %2726 = vmatprep.subr.bf16.mxu0 0
        %2727 = vmatpush1.bf16.msra.mxu0 0
        %2728 = vmatprep.subr.bf16.mxu0 0
        %2729 = vmatpush1.bf16.msra.mxu0 0
        %2730 = vmatprep.subr.bf16.mxu0 0
        %2731 = vmatpush1.bf16.msra.mxu0 0
        %2732 = vmatprep.subr.bf16.mxu0 0
        %2733 = vmatpush1.bf16.msra.mxu0 0
        %2734 = vmatprep.subr.bf16.mxu0 0
        %2735 = vmatpush1.bf16.msra.mxu0 0
        %2736 = vmatprep.subr.bf16.mxu0 0
        %2737 = vmatpush1.bf16.msra.mxu0 %v2720
        %2738 = vmatprep.subr.bf16.mxu0 0
        %2739 = vmatpush2.bf16.msra.mxu0 0
        %2740 = vmatprep.subr.bf16.mxu0 0
        %2741 = vmatpush2.bf16.msra.mxu0 0
        %2742 = vmatprep.subr.bf16.mxu0 0
        %2743 = vmatpush2.bf16.msra.mxu0 0
        %2744 = vmatprep.subr.bf16.mxu0 0
        %2745 = vmatpush2.bf16.msra.mxu0 0
        %2746 = vmatprep.subr.bf16.mxu0 0
        %2747 = vmatpush2.bf16.msra.mxu0 0
        %2748 = vmatprep.subr.bf16.mxu0 0
        %2749 = vmatpush2.bf16.msra.mxu0 0
        %2750 = vmatprep.subr.bf16.mxu0 0
        %2751 = vmatpush2.bf16.msra.mxu0 0
        %2752 = vmatprep.subr.bf16.mxu0 0
        %2753 = vmatpush2.bf16.msra.mxu0 0
        %2754 = vmatprep.mubr.bf16.mxu0 0
        %2755 = vmatmul.mubr.bf16.gmra.mxu0 %v2717
        %v2756 = vpop.f32.mrf.mxu0
        %v2757 = vadd.f32 0.0, %v2756
        %v2758 = vpop.f32.mrf.mxu0
        %v2759 = vpop.f32.mrf.mxu0
        %v2760 = vadd.f32 0.0, %v2759
        %v2761 = vpop.f32.mrf.mxu0
        %2762 = vdwg.mxu0
        %v2763 = vadd.f32 %v2414, %v2757
        %v2764 = vadd.f32 %v2415, %v2760
        %v2765 = vld [vmem:[%s12] sm:$0x1]
        %v2767 = vlaneseq
        %v2768 = vshrl.u32 %v2767, 7
        %v2769 = vsub.s32 0, %v2768
        %v2770 = vrot.slane %v2765, %v2769
        %v2772 = vadd.f32 %v2763, %v2770
        %v2773 = vadd.f32 %v2764, %v2770
        %v2776 = vrot.slane %v2772, 5
        %v2777 = vrot.slane %v2773, 5
        %v2778 = vsel %vm542, %v2776, %v2777
        %v2782 = vadd.f32 %v654, %v2776
        %v2783 = vadd.f32 %v655, %v2778
        %v2784 = vadd.f32 %v656, %v2777
        %v2785 = vmul.f32 %v2782, 2.0
        %v2786 = vmul.f32 %v2783, 2.0
        %v2787 = vmul.f32 %v2784, 2.0
        %vm2788 = vcmask 392195
        %2789 = vst.msk [vmem:[%s433 - $0x3] sm:$0xf8] %vm2788, %v2785
        %2790 = vst.msk [vmem:[%s433 + $0x5] sm:$0xff] %vm598, %v2786
        %vm2791 = vcmask 387072
        %2792 = vst.msk [vmem:[%s433 + $0xd] sm:$0x7] %vm2791, %v2787
        %s2793 = sand.u32 %s313, 1
        %s2794 = scalar_lea.sflag [#allocation3], %s2793
        %s2795 = sand.u32 %s313, 1
        %s2796 = smul.addr %s2795, 16
        %s2797 = scalar_lea.vmem [#allocation2], %s2796
        // Predicated region
        $region73: #{tpu_custom_call.1} parent=71 // pred_check
          %p2798 = pneg %p323
        $region74: #{tpu_custom_call.1} parent=71 // pred_check_branch
          %2800 = sbr.rel (%p2798) target = $region76
        $region75: #{tpu_custom_call.1} parent=71 // pred_region
          %s2802 = ssub.s32 256, 256
          %2803 = vsyncadd %s2794, %s2802
          %s2804 = smul.addr %s27, 2
          %s2805 = smul.addr %s2804, 128
          %s2806 = scalar_lea.hbm %s13, %s2805
          %s2807 = sshll.u32 %s2797, 4
          %s2808 = int_to_ptr.vmem [resolvable:$true] %s2807
          %2813 = dma.vmem_to_hbm [thread:$0]  %s2808, 256, %s2806, %s2794, 128, 128, 8
        $region76: #{tpu_custom_call.1} parent=71 // pred_fallthru
          _
      $region72: #{tpu_custom_call.1} parent=5 // pred_fallthru
        _
      %p2814 = scmp.le.s32.totalorder 2, %s22
      // Predicated region
      $region77: #{tpu_custom_call.1} parent=5 // pred_check
        %p2815 = pneg %p2814
      $region78: #{tpu_custom_call.1} parent=5 // pred_check_branch
        %2817 = sbr.rel (%p2815) target = $region80
      $region79: #{tpu_custom_call.1} parent=5 // pred_region
        %s2818 = ssub.s32 %s22, 2
        // Predicated region
        $region81: #{tpu_custom_call.1} parent=79 // pred_check
          %p2819 = pneg %p329
        $region82: #{tpu_custom_call.1} parent=79 // pred_check_branch
          %2821 = sbr.rel (%p2819) target = $region84
        $region83: #{tpu_custom_call.1} parent=79 // pred_region
          %s2822 = sand.u32 %s314, 1
          %s2823 = scalar_lea.sflag [#allocation3], %s2822
          %s2824 = sand.u32 %s314, 1
          %s2825 = smul.addr %s2824, 16
          %s2826 = scalar_lea.vmem [#allocation2], %s2825
          %2827 = dma.done %s2823, 256
        $region84: #{tpu_custom_call.1} parent=79 // pred_fallthru
          _
      $region80: #{tpu_custom_call.1} parent=5 // pred_fallthru
        _
    $region6: #{tpu_custom_call.1} parent=1 // loop_footer
      %s26 = sadd.s32 1, %s22
    $region7: #{tpu_custom_call.1} parent=1 // loop_footer_branch
      %21 = sbr.rel target = $region3
    $region8: #{tpu_custom_call.1} parent=1 // loop_exit
      _
    %2828 = vsyncpa [#allocation3], 1
    %s2829 = scalar_lea.sflag [#allocation3], 1
    %2830 = vsyncpa %s2829, 1

</llo_original>
